<compile_context>
chip_gen: v7x
topology: tpu7x:2x2x1
jax: 0.10.0
libtpu: 0.0.40
codegen_flags: <defaults>
</compile_context>

<pallas_src>
import functools
import math

import jax
import jax.numpy as jnp
from jax.experimental import pallas as pl
from jax.experimental.pallas import tpu as pltpu


_VMEM_LIMIT = 32 * 1024 * 1024  # safe scoped-VMEM limit on v5e/v6e/v7x


# ----------------------------------------------------------------------------
# tiling helpers
# ----------------------------------------------------------------------------
def _row_tile(m, cap=256):
    """Largest row tile (multiple of 8) that divides m, capped at `cap`."""
    if m <= cap:
        return m
    for t in (cap, 128, 64, 32, 16, 8):
        if m % t == 0:
            return t
    return m


def _col_tile(f, cap=512):
    """d_ff reduction tile (multiple of 128) that divides f, capped at `cap`."""
    if f <= cap:
        return f
    for t in (cap, 256, 128):
        if f % t == 0:
            return t
    return f


def _cparams(semantics):
    return pltpu.CompilerParams(
        dimension_semantics=semantics, vmem_limit_bytes=_VMEM_LIMIT
    )


# ----------------------------------------------------------------------------
# in-kernel math helpers
# ----------------------------------------------------------------------------
def _ln_rows(x, gamma, beta, eps, d):
    """Custom LayerNormalization: unbiased std, eps added to std."""
    mean = jnp.mean(x, axis=-1, keepdims=True)
    diff = x - mean
    var = jnp.sum(diff * diff, axis=-1, keepdims=True) / (d - 1)
    inv = pl.reciprocal(jnp.sqrt(var) + eps, approx=True)
    return gamma * diff * inv + beta


# ----------------------------------------------------------------------------
# Pallas kernels
# ----------------------------------------------------------------------------
def _ln_qkv_kernel(x_ref, g_ref, be_ref, wq_ref, bq_ref, wk_ref, bk_ref,
                   wv_ref, bv_ref, q_ref, k_ref, v_ref, *, eps, d):
    x = x_ref[...].astype(jnp.float32)
    xn = _ln_rows(x, g_ref[...], be_ref[...], eps, d).astype(wq_ref.dtype)
    q_ref[...] = (jnp.dot(xn, wq_ref[...], preferred_element_type=jnp.float32)
                  + bq_ref[...]).astype(q_ref.dtype)
    k_ref[...] = (jnp.dot(xn, wk_ref[...], preferred_element_type=jnp.float32)
                  + bk_ref[...]).astype(k_ref.dtype)
    v_ref[...] = (jnp.dot(xn, wv_ref[...], preferred_element_type=jnp.float32)
                  + bv_ref[...]).astype(v_ref.dtype)


def _ln_proj_kernel(x_ref, g_ref, be_ref, w_ref, b_ref, o_ref, *, eps, d):
    x = x_ref[...].astype(jnp.float32)
    xn = _ln_rows(x, g_ref[...], be_ref[...], eps, d).astype(w_ref.dtype)
    o_ref[...] = (jnp.dot(xn, w_ref[...], preferred_element_type=jnp.float32)
                  + b_ref[...]).astype(o_ref.dtype)


def _kv_proj_kernel(x_ref, wk_ref, bk_ref, wv_ref, bv_ref, k_ref, v_ref):
    x = x_ref[...]
    k_ref[...] = (jnp.dot(x, wk_ref[...], preferred_element_type=jnp.float32)
                  + bk_ref[...]).astype(k_ref.dtype)
    v_ref[...] = (jnp.dot(x, wv_ref[...], preferred_element_type=jnp.float32)
                  + bv_ref[...]).astype(v_ref.dtype)


def _proj_res_kernel(x_ref, w_ref, b_ref, r_ref, o_ref):
    y = jnp.dot(x_ref[...], w_ref[...], preferred_element_type=jnp.float32)
    y = y + b_ref[...] + r_ref[...].astype(jnp.float32)
    o_ref[...] = y.astype(o_ref.dtype)


def _attn_kernel(q_ref, k_ref, v_ref, m_ref, o_ref, *, heads, dh, scale):
    # blocks: q (1,Sq,H*Dh), k/v (1,Sk,H*Dh), mask (1,1,Sq_m,Sk), out (1,Sq,H*Dh)
    q = q_ref[0].astype(jnp.float32)            # (Sq, H*Dh)
    k = k_ref[0].astype(jnp.float32)            # (Sk, H*Dh)
    v = v_ref[0]                                # (Sk, H*Dh)
    m = m_ref[0, 0]                             # (Sq_m, Sk), 0 == masked
    sq = q.shape[0]
    sk = k.shape[0]
    keep = jnp.broadcast_to(m != 0.0, (sq, sk))  # broadcast once, outside loop
    for h in range(heads):                       # static unroll over heads
        lo = h * dh
        hi = lo + dh
        qh = q[:, lo:hi] * scale
        kh = k[:, lo:hi]
        vh = v[:, lo:hi]
        s = jnp.dot(qh, kh.T, preferred_element_type=jnp.float32)
        s = jnp.where(keep, s, jnp.float32(-1e9))          # masked_fill
        s = s - jnp.max(s, axis=-1, keepdims=True)          # stable softmax
        p = jnp.exp(s)
        p = p * pl.reciprocal(jnp.sum(p, axis=-1, keepdims=True), approx=True)
        oh = jnp.dot(p.astype(vh.dtype), vh, preferred_element_type=jnp.float32)
        o_ref[0, :, lo:hi] = oh.astype(o_ref.dtype)


def _ffn_kernel(x_ref, g_ref, be_ref, w1_ref, b1_ref, w2_ref, b2_ref, o_ref,
                xn_scr, acc_scr, *, eps, d):
    f = pl.program_id(1)

    @pl.when(f == 0)
    def _():
        x = x_ref[...].astype(jnp.float32)
        xn_scr[...] = _ln_rows(x, g_ref[...], be_ref[...], eps, d)
        acc_scr[...] = jnp.zeros_like(acc_scr)

    h = jnp.dot(xn_scr[...].astype(w1_ref.dtype), w1_ref[...],
                preferred_element_type=jnp.float32) + b1_ref[...]
    h = jnp.maximum(h, 0.0)
    acc_scr[...] += jnp.dot(h.astype(w2_ref.dtype), w2_ref[...],
                            preferred_element_type=jnp.float32)

    @pl.when(f == pl.num_programs(1) - 1)
    def _():
        y = acc_scr[...] + b2_ref[...] + x_ref[...].astype(jnp.float32)  # +residual
        o_ref[...] = y.astype(o_ref.dtype)


def _layernorm_kernel(x_ref, g_ref, b_ref, o_ref, *, eps, d):
    x = x_ref[...].astype(jnp.float32)
    o_ref[...] = _ln_rows(x, g_ref[...], b_ref[...], eps, d).astype(o_ref.dtype)


# ----------------------------------------------------------------------------
# kernel wrappers
# ----------------------------------------------------------------------------
def ln_qkv(x2d, gamma, beta, wq, bq, wk, bk, wv, bv, eps=1e-6):
    M, D = x2d.shape
    N = wq.shape[1]
    tm = _row_tile(M)
    row = pl.BlockSpec((tm, D), lambda i: (i, 0))
    vec_d = pl.BlockSpec((1, D), lambda i: (0, 0))
    w_spec = pl.BlockSpec((D, N), lambda i: (0, 0))
    b_spec = pl.BlockSpec((1, N), lambda i: (0, 0))
    o_spec = pl.BlockSpec((tm, N), lambda i: (i, 0))
    kern = functools.partial(_ln_qkv_kernel, eps=eps, d=D)
    return pl.pallas_call(
        kern,
        out_shape=tuple(jax.ShapeDtypeStruct((M, N), x2d.dtype) for _ in range(3)),
        grid=(M // tm,),
        in_specs=[row, vec_d, vec_d, w_spec, b_spec, w_spec, b_spec, w_spec, b_spec],
        out_specs=(o_spec, o_spec, o_spec),
        compiler_params=_cparams(("parallel",)),
    )(x2d, gamma.reshape(1, D), beta.reshape(1, D),
      wq, bq.reshape(1, N), wk, bk.reshape(1, N), wv, bv.reshape(1, N))


def ln_proj(x2d, gamma, beta, w, b, eps=1e-6):
    M, D = x2d.shape
    N = w.shape[1]
    tm = _row_tile(M)
    kern = functools.partial(_ln_proj_kernel, eps=eps, d=D)
    return pl.pallas_call(
        kern,
        out_shape=jax.ShapeDtypeStruct((M, N), x2d.dtype),
        grid=(M // tm,),
        in_specs=[
            pl.BlockSpec((tm, D), lambda i: (i, 0)),
            pl.BlockSpec((1, D), lambda i: (0, 0)),
            pl.BlockSpec((1, D), lambda i: (0, 0)),
            pl.BlockSpec((D, N), lambda i: (0, 0)),
            pl.BlockSpec((1, N), lambda i: (0, 0)),
        ],
        out_specs=pl.BlockSpec((tm, N), lambda i: (i, 0)),
        compiler_params=_cparams(("parallel",)),
    )(x2d, gamma.reshape(1, D), beta.reshape(1, D), w, b.reshape(1, N))


def kv_proj(x2d, wk, bk, wv, bv):
    M, D = x2d.shape
    N = wk.shape[1]
    tm = _row_tile(M)
    w_spec = pl.BlockSpec((D, N), lambda i: (0, 0))
    b_spec = pl.BlockSpec((1, N), lambda i: (0, 0))
    o_spec = pl.BlockSpec((tm, N), lambda i: (i, 0))
    return pl.pallas_call(
        _kv_proj_kernel,
        out_shape=tuple(jax.ShapeDtypeStruct((M, N), x2d.dtype) for _ in range(2)),
        grid=(M // tm,),
        in_specs=[pl.BlockSpec((tm, D), lambda i: (i, 0)), w_spec, b_spec, w_spec, b_spec],
        out_specs=(o_spec, o_spec),
        compiler_params=_cparams(("parallel",)),
    )(x2d, wk, bk.reshape(1, N), wv, bv.reshape(1, N))


def proj_residual(x2d, w, b, resid2d):
    M, K = x2d.shape
    N = w.shape[1]
    tm = _row_tile(M)
    return pl.pallas_call(
        _proj_res_kernel,
        out_shape=jax.ShapeDtypeStruct((M, N), resid2d.dtype),
        grid=(M // tm,),
        in_specs=[
            pl.BlockSpec((tm, K), lambda i: (i, 0)),
            pl.BlockSpec((K, N), lambda i: (0, 0)),
            pl.BlockSpec((1, N), lambda i: (0, 0)),
            pl.BlockSpec((tm, N), lambda i: (i, 0)),
        ],
        out_specs=pl.BlockSpec((tm, N), lambda i: (i, 0)),
        compiler_params=_cparams(("parallel",)),
    )(x2d, w, b.reshape(1, N), resid2d)


def attention(q, k, v, mask, heads):
    """q: (B,Sq,H*Dh), k/v: (B,Sk,H*Dh), mask: (Bm,1,Sq_m,Sk) with 0 = masked."""
    B, Sq, D = q.shape
    Sk = k.shape[1]
    dh = D // heads
    mask = mask.astype(jnp.float32)
    Sq_m, Sk_m = mask.shape[2], mask.shape[3]
    assert Sk_m == Sk and Sq_m in (1, Sq)
    m_idx = (lambda b: (b, 0, 0, 0)) if mask.shape[0] == B else (lambda b: (0, 0, 0, 0))
    kern = functools.partial(_attn_kernel, heads=heads, dh=dh,
                             scale=1.0 / math.sqrt(dh))
    return pl.pallas_call(
        kern,
        out_shape=jax.ShapeDtypeStruct((B, Sq, D), q.dtype),
        grid=(B,),
        in_specs=[
            pl.BlockSpec((1, Sq, D), lambda b: (b, 0, 0)),
            pl.BlockSpec((1, Sk, D), lambda b: (b, 0, 0)),
            pl.BlockSpec((1, Sk, D), lambda b: (b, 0, 0)),
            pl.BlockSpec((1, 1, Sq_m, Sk), m_idx),
        ],
        out_specs=pl.BlockSpec((1, Sq, D), lambda b: (b, 0, 0)),
        compiler_params=_cparams(("parallel",)),
    )(q, k, v, mask)


def ffn(x2d, gamma, beta, w1, b1, w2, b2, eps=1e-6):
    M, D = x2d.shape
    F = w1.shape[1]
    tm = _row_tile(M)
    tf = _col_tile(F)
    kern = functools.partial(_ffn_kernel, eps=eps, d=D)
    return pl.pallas_call(
        kern,
        out_shape=jax.ShapeDtypeStruct((M, D), x2d.dtype),
        grid=(M // tm, F // tf),
        in_specs=[
            pl.BlockSpec((tm, D), lambda i, f: (i, 0)),   # x (resident over f)
            pl.BlockSpec((1, D), lambda i, f: (0, 0)),    # gamma
            pl.BlockSpec((1, D), lambda i, f: (0, 0)),    # beta
            pl.BlockSpec((D, tf), lambda i, f: (0, f)),   # w1 slice
            pl.BlockSpec((1, tf), lambda i, f: (0, f)),   # b1 slice
            pl.BlockSpec((tf, D), lambda i, f: (f, 0)),   # w2 slice
            pl.BlockSpec((1, D), lambda i, f: (0, 0)),    # b2
        ],
        out_specs=pl.BlockSpec((tm, D), lambda i, f: (i, 0)),
        scratch_shapes=[
            pltpu.VMEM((tm, D), jnp.float32),   # LN(x) cache
            pltpu.VMEM((tm, D), jnp.float32),   # f32 accumulator
        ],
        compiler_params=_cparams(("parallel", "arbitrary")),
    )(x2d, gamma.reshape(1, D), beta.reshape(1, D),
      w1, b1.reshape(1, F), w2, b2.reshape(1, D))


def layer_norm(x, alpha, bias, eps=1e-6):
    B, S, D = x.shape
    M = B * S
    x2d = x.reshape(M, D)
    tm = _row_tile(M)
    kern = functools.partial(_layernorm_kernel, eps=eps, d=D)
    out = pl.pallas_call(
        kern,
        out_shape=jax.ShapeDtypeStruct((M, D), x.dtype),
        grid=(M // tm,),
        in_specs=[
            pl.BlockSpec((tm, D), lambda i: (i, 0)),
            pl.BlockSpec((1, D), lambda i: (0, 0)),
            pl.BlockSpec((1, D), lambda i: (0, 0)),
        ],
        out_specs=pl.BlockSpec((tm, D), lambda i: (i, 0)),
        compiler_params=_cparams(("parallel",)),
    )(x2d, alpha.reshape(1, D), bias.reshape(1, D))
    return out.reshape(B, S, D)


# ----------------------------------------------------------------------------
# decoder block / stack (glue = only free leading-dim reshapes)
# ----------------------------------------------------------------------------
def decoder_block(p, x, enc, padding_mask, look_ahead_mask, heads):
    B, S, D = x.shape
    Se = enc.shape[1]
    x2d = x.reshape(B * S, D)
    enc2d = enc.reshape(B * Se, D)

    # residual connection 1: masked self-attention (pre-norm, fused LN+QKV)
    sa = p["self_attn"]
    q, k, v = ln_qkv(x2d, p["ln1_a"], p["ln1_b"],
                     sa["wq"], sa["bq"], sa["wk"], sa["bk"], sa["wv"], sa["bv"])
    o = attention(q.reshape(B, S, D), k.reshape(B, S, D), v.reshape(B, S, D),
                  look_ahead_mask, heads)
    x2d = proj_residual(o.reshape(B * S, D), sa["wo"], sa["bo"], x2d)

    # residual connection 2: cross-attention over encoder output
    ca = p["cross_attn"]
    q = ln_proj(x2d, p["ln2_a"], p["ln2_b"], ca["wq"], ca["bq"])
    k, v = kv_proj(enc2d, ca["wk"], ca["bk"], ca["wv"], ca["bv"])
    o = attention(q.reshape(B, S, D), k.reshape(B, Se, D), v.reshape(B, Se, D),
                  padding_mask, heads)
    x2d = proj_residual(o.reshape(B * S, D), ca["wo"], ca["bo"], x2d)

    # residual connection 3: fused LN + FFN (+ residual), d_ff reduction in-grid
    x2d = ffn(x2d, p["ln3_a"], p["ln3_b"], p["w1"], p["b1"], p["w2"], p["b2"])
    return x2d.reshape(B, S, D)


def decoder_forward(params, x, encoder_output, padding_mask, look_ahead_mask, heads):
    for lp in params["layers"]:
        x = decoder_block(lp, x, encoder_output, padding_mask, look_ahead_mask, heads)
    return layer_norm(x, params["final_a"], params["final_b"])


# ----------------------------------------------------------------------------
# Deterministic parameter initialization
# ----------------------------------------------------------------------------
def _init_linear(key, fan_in, fan_out):
    k1, k2 = jax.random.split(key)
    bound = 1.0 / math.sqrt(fan_in)
    w = jax.random.uniform(k1, (fan_in, fan_out), jnp.float32, -bound, bound)
    b = jax.random.uniform(k2, (fan_out,), jnp.float32, -bound, bound)
    return w, b


def _init_attn(key, d_model):
    ks = jax.random.split(key, 4)
    p = {}
    for name, kk in zip(("q", "k", "v", "o"), ks):
        w, b = _init_linear(kk, d_model, d_model)
        p["w" + name] = w
        p["b" + name] = b
    return p


def init_decoder_params(key, n_layers, d_model, d_ff):
    layers = []
    keys = jax.random.split(key, n_layers + 1)
    for lk in keys[:-1]:
        k_sa, k_ca, k_ff1, k_ff2 = jax.random.split(lk, 4)
        w1, b1 = _init_linear(k_ff1, d_model, d_ff)
        w2, b2 = _init_linear(k_ff2, d_ff, d_model)
        layers.append({
            "self_attn": _init_attn(k_sa, d_model),
            "cross_attn": _init_attn(k_ca, d_model),
            "w1": w1, "b1": b1, "w2": w2, "b2": b2,
            "ln1_a": jnp.ones((d_model,), jnp.float32),
            "ln1_b": jnp.zeros((d_model,), jnp.float32),
            "ln2_a": jnp.ones((d_model,), jnp.float32),
            "ln2_b": jnp.zeros((d_model,), jnp.float32),
            "ln3_a": jnp.ones((d_model,), jnp.float32),
            "ln3_b": jnp.zeros((d_model,), jnp.float32),
        })
    return {
        "layers": layers,
        "final_a": jnp.ones((d_model,), jnp.float32),
        "final_b": jnp.zeros((d_model,), jnp.float32),
    }


# ----------------------------------------------------------------------------
if __name__ == "__main__":
    B, S_tgt, S_src = 2, 8, 8
    D_MODEL, HEADS, D_FF, N_LAYERS = 32, 4, 64, 2

    root = jax.random.PRNGKey(0)
    k_p, k_x, k_e = jax.random.split(root, 3)

    params = init_decoder_params(k_p, N_LAYERS, D_MODEL, D_FF)

    x = jax.random.normal(k_x, (B, S_tgt, D_MODEL), jnp.float32)
    encoder_output = jax.random.normal(k_e, (B, S_src, D_MODEL), jnp.float32)

    # padding mask (B, 1, 1, S_src): 1 = keep, 0 = masked (pad last 2 src tokens of batch 1)
    padding_mask = jnp.ones((B, 1, 1, S_src), jnp.float32)
    padding_mask = padding_mask.at[1, :, :, -2:].set(0.0)
    # look-ahead (causal) mask (B, 1, S_tgt, S_tgt)
    look_ahead_mask = jnp.broadcast_to(
        jnp.tril(jnp.ones((S_tgt, S_tgt), jnp.float32))[None, None],
        (B, 1, S_tgt, S_tgt),
    )

    fwd = jax.jit(functools.partial(decoder_forward, heads=HEADS))
    out = fwd(params, x, encoder_output, padding_mask, look_ahead_mask)
    out = jax.block_until_ready(out)
    assert out.shape == (B, S_tgt, D_MODEL)
    assert bool(jnp.all(jnp.isfinite(out)))
    print("KERNEL_OK")
</pallas_src>

<mosaic_0001>
module attributes {stable_mosaic.version = 11 : i64} {
  func.func @_ln_qkv_kernel(%arg0: i32, %arg1: memref<16x32xf32, #tpu.memory_space<vmem>>, %arg2: memref<1x32xf32, #tpu.memory_space<vmem>>, %arg3: memref<1x32xf32, #tpu.memory_space<vmem>>, %arg4: memref<32x32xf32, #tpu.memory_space<vmem>>, %arg5: memref<1x32xf32, #tpu.memory_space<vmem>>, %arg6: memref<32x32xf32, #tpu.memory_space<vmem>>, %arg7: memref<1x32xf32, #tpu.memory_space<vmem>>, %arg8: memref<32x32xf32, #tpu.memory_space<vmem>>, %arg9: memref<1x32xf32, #tpu.memory_space<vmem>>, %arg10: memref<16x32xf32, #tpu.memory_space<vmem>>, %arg11: memref<16x32xf32, #tpu.memory_space<vmem>>, %arg12: memref<16x32xf32, #tpu.memory_space<vmem>>) attributes {dimension_semantics = [#tpu.dimension_semantics<parallel>], iteration_bounds = array<i64: 1>, scalar_prefetch = 0 : i64, scratch_operands = 0 : i64, tpu.core_type = #tpu.core_type<tc>, window_params = [{transform_indices = @transform_0, window_bounds = array<i64: 16, 32>}, {pipeline_mode = #tpu.pipeline_mode<synchronous>, transform_indices = @transform_1, window_bounds = array<i64: 1, 32>}, {pipeline_mode = #tpu.pipeline_mode<synchronous>, transform_indices = @transform_2, window_bounds = array<i64: 1, 32>}, {pipeline_mode = #tpu.pipeline_mode<synchronous>, transform_indices = @transform_3, window_bounds = array<i64: 32, 32>}, {pipeline_mode = #tpu.pipeline_mode<synchronous>, transform_indices = @transform_4, window_bounds = array<i64: 1, 32>}, {pipeline_mode = #tpu.pipeline_mode<synchronous>, transform_indices = @transform_5, window_bounds = array<i64: 32, 32>}, {pipeline_mode = #tpu.pipeline_mode<synchronous>, transform_indices = @transform_6, window_bounds = array<i64: 1, 32>}, {pipeline_mode = #tpu.pipeline_mode<synchronous>, transform_indices = @transform_7, window_bounds = array<i64: 32, 32>}, {pipeline_mode = #tpu.pipeline_mode<synchronous>, transform_indices = @transform_8, window_bounds = array<i64: 1, 32>}, {transform_indices = @transform_9, window_bounds = array<i64: 16, 32>}, {transform_indices = @transform_10, window_bounds = array<i64: 16, 32>}, {transform_indices = @transform_11, window_bounds = array<i64: 16, 32>}]} {
    %c0 = arith.constant 0 : index
    %c0_0 = arith.constant 0 : index
    %0 = vector.load %arg1[%c0, %c0_0] : memref<16x32xf32, #tpu.memory_space<vmem>>, vector<16x32xf32>
    %c0_1 = arith.constant 0 : index
    %c0_2 = arith.constant 0 : index
    %1 = vector.load %arg2[%c0_1, %c0_2] : memref<1x32xf32, #tpu.memory_space<vmem>>, vector<1x32xf32>
    %c0_3 = arith.constant 0 : index
    %c0_4 = arith.constant 0 : index
    %2 = vector.load %arg3[%c0_3, %c0_4] : memref<1x32xf32, #tpu.memory_space<vmem>>, vector<1x32xf32>
    %cst = arith.constant dense<0.000000e+00> : vector<16xf32>
    %3 = vector.multi_reduction <add>, %0, %cst [1] : vector<16x32xf32> to vector<16xf32>
    %4 = vector.shape_cast %3 : vector<16xf32> to vector<16x1xf32>
    %cst_5 = arith.constant 3.200000e+01 : f32
    %5 = vector.broadcast %cst_5 : f32 to vector<16x1xf32>
    %6 = arith.divf %4, %5 : vector<16x1xf32>
    %7 = vector.broadcast %6 : vector<16x1xf32> to vector<16x32xf32>
    %8 = arith.subf %0, %7 : vector<16x32xf32>
    %9 = arith.mulf %8, %8 : vector<16x32xf32>
    %cst_6 = arith.constant dense<0.000000e+00> : vector<16xf32>
    %10 = vector.multi_reduction <add>, %9, %cst_6 [1] : vector<16x32xf32> to vector<16xf32>
    %11 = vector.shape_cast %10 : vector<16xf32> to vector<16x1xf32>
    %cst_7 = arith.constant 3.100000e+01 : f32
    %12 = vector.broadcast %cst_7 : f32 to vector<16x1xf32>
    %13 = arith.divf %11, %12 : vector<16x1xf32>
    %14 = math.sqrt %13 : vector<16x1xf32>
    %cst_8 = arith.constant 9.99999997E-7 : f32
    %15 = vector.broadcast %cst_8 : f32 to vector<16x1xf32>
    %16 = arith.addf %14, %15 : vector<16x1xf32>
    %17 = tpu.reciprocal %16 {approx = true} : vector<16x1xf32> -> vector<16x1xf32>
    %18 = vector.broadcast %1 : vector<1x32xf32> to vector<16x32xf32>
    %19 = arith.mulf %18, %8 : vector<16x32xf32>
    %20 = vector.broadcast %17 : vector<16x1xf32> to vector<16x32xf32>
    %21 = arith.mulf %19, %20 : vector<16x32xf32>
    %22 = vector.broadcast %2 : vector<1x32xf32> to vector<16x32xf32>
    %23 = arith.addf %21, %22 : vector<16x32xf32>
    %c0_9 = arith.constant 0 : index
    %c0_10 = arith.constant 0 : index
    %24 = vector.load %arg4[%c0_9, %c0_10] : memref<32x32xf32, #tpu.memory_space<vmem>>, vector<32x32xf32>
    %cst_11 = arith.constant dense<0.000000e+00> : vector<16x32xf32>
    %25 = tpu.matmul %23, %24, %cst_11 {dimension_numbers = #tpu.dot_dimension_numbers<[1], [0], [0], [1], [0, 0, 1, 1], [], []>} : vector<16x32xf32>, vector<32x32xf32>, vector<16x32xf32> -> vector<16x32xf32>
    %c0_12 = arith.constant 0 : index
    %c0_13 = arith.constant 0 : index
    %26 = vector.load %arg5[%c0_12, %c0_13] : memref<1x32xf32, #tpu.memory_space<vmem>>, vector<1x32xf32>
    %27 = vector.broadcast %26 : vector<1x32xf32> to vector<16x32xf32>
    %28 = arith.addf %25, %27 : vector<16x32xf32>
    %c0_14 = arith.constant 0 : index
    %c0_15 = arith.constant 0 : index
    %29 = vector.load %arg10[%c0_14, %c0_15] : memref<16x32xf32, #tpu.memory_space<vmem>>, vector<16x32xf32>
    tpu.vector_store %arg10[%c0_14, %c0_15], %28 {strides = array<i32>} : memref<16x32xf32, #tpu.memory_space<vmem>>, vector<16x32xf32>,
    %c0_16 = arith.constant 0 : index
    %c0_17 = arith.constant 0 : index
    %30 = vector.load %arg6[%c0_16, %c0_17] : memref<32x32xf32, #tpu.memory_space<vmem>>, vector<32x32xf32>
    %cst_18 = arith.constant dense<0.000000e+00> : vector<16x32xf32>
    %31 = tpu.matmul %23, %30, %cst_18 {dimension_numbers = #tpu.dot_dimension_numbers<[1], [0], [0], [1], [0, 0, 1, 1], [], []>} : vector<16x32xf32>, vector<32x32xf32>, vector<16x32xf32> -> vector<16x32xf32>
    %c0_19 = arith.constant 0 : index
    %c0_20 = arith.constant 0 : index
    %32 = vector.load %arg7[%c0_19, %c0_20] : memref<1x32xf32, #tpu.memory_space<vmem>>, vector<1x32xf32>
    %33 = vector.broadcast %32 : vector<1x32xf32> to vector<16x32xf32>
    %34 = arith.addf %31, %33 : vector<16x32xf32>
    %c0_21 = arith.constant 0 : index
    %c0_22 = arith.constant 0 : index
    %35 = vector.load %arg11[%c0_21, %c0_22] : memref<16x32xf32, #tpu.memory_space<vmem>>, vector<16x32xf32>
    tpu.vector_store %arg11[%c0_21, %c0_22], %34 {strides = array<i32>} : memref<16x32xf32, #tpu.memory_space<vmem>>, vector<16x32xf32>,
    %c0_23 = arith.constant 0 : index
    %c0_24 = arith.constant 0 : index
    %36 = vector.load %arg8[%c0_23, %c0_24] : memref<32x32xf32, #tpu.memory_space<vmem>>, vector<32x32xf32>
    %cst_25 = arith.constant dense<0.000000e+00> : vector<16x32xf32>
    %37 = tpu.matmul %23, %36, %cst_25 {dimension_numbers = #tpu.dot_dimension_numbers<[1], [0], [0], [1], [0, 0, 1, 1], [], []>} : vector<16x32xf32>, vector<32x32xf32>, vector<16x32xf32> -> vector<16x32xf32>
    %c0_26 = arith.constant 0 : index
    %c0_27 = arith.constant 0 : index
    %38 = vector.load %arg9[%c0_26, %c0_27] : memref<1x32xf32, #tpu.memory_space<vmem>>, vector<1x32xf32>
    %39 = vector.broadcast %38 : vector<1x32xf32> to vector<16x32xf32>
    %40 = arith.addf %37, %39 : vector<16x32xf32>
    %c0_28 = arith.constant 0 : index
    %c0_29 = arith.constant 0 : index
    %41 = vector.load %arg12[%c0_28, %c0_29] : memref<16x32xf32, #tpu.memory_space<vmem>>, vector<16x32xf32>
    tpu.vector_store %arg12[%c0_28, %c0_29], %40 {strides = array<i32>} : memref<16x32xf32, #tpu.memory_space<vmem>>, vector<16x32xf32>,
    return
  }
  func.func @transform_0(%arg0: i32) -> (i32, i32) {
    %c0_i32 = arith.constant 0 : i32
    %c0_i32_0 = arith.constant 0 : i32
    return %arg0, %c0_i32 : i32, i32
  }
  func.func @transform_1(%arg0: i32) -> (i32, i32) {
    %c0_i32 = arith.constant 0 : i32
    %c0_i32_0 = arith.constant 0 : i32
    %c0_i32_1 = arith.constant 0 : i32
    return %c0_i32, %c0_i32_0 : i32, i32
  }
  func.func @transform_2(%arg0: i32) -> (i32, i32) {
    %c0_i32 = arith.constant 0 : i32
    %c0_i32_0 = arith.constant 0 : i32
    %c0_i32_1 = arith.constant 0 : i32
    return %c0_i32, %c0_i32_0 : i32, i32
  }
  func.func @transform_3(%arg0: i32) -> (i32, i32) {
    %c0_i32 = arith.constant 0 : i32
    %c0_i32_0 = arith.constant 0 : i32
    %c0_i32_1 = arith.constant 0 : i32
    return %c0_i32, %c0_i32_0 : i32, i32
  }
  func.func @transform_4(%arg0: i32) -> (i32, i32) {
    %c0_i32 = arith.constant 0 : i32
    %c0_i32_0 = arith.constant 0 : i32
    %c0_i32_1 = arith.constant 0 : i32
    return %c0_i32, %c0_i32_0 : i32, i32
  }
  func.func @transform_5(%arg0: i32) -> (i32, i32) {
    %c0_i32 = arith.constant 0 : i32
    %c0_i32_0 = arith.constant 0 : i32
    %c0_i32_1 = arith.constant 0 : i32
    return %c0_i32, %c0_i32_0 : i32, i32
  }
  func.func @transform_6(%arg0: i32) -> (i32, i32) {
    %c0_i32 = arith.constant 0 : i32
    %c0_i32_0 = arith.constant 0 : i32
    %c0_i32_1 = arith.constant 0 : i32
    return %c0_i32, %c0_i32_0 : i32, i32
  }
  func.func @transform_7(%arg0: i32) -> (i32, i32) {
    %c0_i32 = arith.constant 0 : i32
    %c0_i32_0 = arith.constant 0 : i32
    %c0_i32_1 = arith.constant 0 : i32
    return %c0_i32, %c0_i32_0 : i32, i32
  }
  func.func @transform_8(%arg0: i32) -> (i32, i32) {
    %c0_i32 = arith.constant 0 : i32
    %c0_i32_0 = arith.constant 0 : i32
    %c0_i32_1 = arith.constant 0 : i32
    return %c0_i32, %c0_i32_0 : i32, i32
  }
  func.func @transform_9(%arg0: i32) -> (i32, i32) {
    %c0_i32 = arith.constant 0 : i32
    %c0_i32_0 = arith.constant 0 : i32
    return %arg0, %c0_i32 : i32, i32
  }
  func.func @transform_10(%arg0: i32) -> (i32, i32) {
    %c0_i32 = arith.constant 0 : i32
    %c0_i32_0 = arith.constant 0 : i32
    return %arg0, %c0_i32 : i32, i32
  }
  func.func @transform_11(%arg0: i32) -> (i32, i32) {
    %c0_i32 = arith.constant 0 : i32
    %c0_i32_0 = arith.constant 0 : i32
    return %arg0, %c0_i32 : i32, i32
  }
}

module attributes {stable_mosaic.version = 11 : i64} {
  func.func @_proj_res_kernel(%arg0: i32, %arg1: memref<16x32xf32, #tpu.memory_space<vmem>>, %arg2: memref<32x32xf32, #tpu.memory_space<vmem>>, %arg3: memref<1x32xf32, #tpu.memory_space<vmem>>, %arg4: memref<16x32xf32, #tpu.memory_space<vmem>>, %arg5: memref<16x32xf32, #tpu.memory_space<vmem>>) attributes {dimension_semantics = [#tpu.dimension_semantics<parallel>], iteration_bounds = array<i64: 1>, scalar_prefetch = 0 : i64, scratch_operands = 0 : i64, tpu.core_type = #tpu.core_type<tc>, window_params = [{transform_indices = @transform_0, window_bounds = array<i64: 16, 32>}, {pipeline_mode = #tpu.pipeline_mode<synchronous>, transform_indices = @transform_1, window_bounds = array<i64: 32, 32>}, {pipeline_mode = #tpu.pipeline_mode<synchronous>, transform_indices = @transform_2, window_bounds = array<i64: 1, 32>}, {transform_indices = @transform_3, window_bounds = array<i64: 16, 32>}, {transform_indices = @transform_4, window_bounds = array<i64: 16, 32>}]} {
    %c0 = arith.constant 0 : index
    %c0_0 = arith.constant 0 : index
    %0 = vector.load %arg1[%c0, %c0_0] : memref<16x32xf32, #tpu.memory_space<vmem>>, vector<16x32xf32>
    %c0_1 = arith.constant 0 : index
    %c0_2 = arith.constant 0 : index
    %1 = vector.load %arg2[%c0_1, %c0_2] : memref<32x32xf32, #tpu.memory_space<vmem>>, vector<32x32xf32>
    %cst = arith.constant dense<0.000000e+00> : vector<16x32xf32>
    %2 = tpu.matmul %0, %1, %cst {dimension_numbers = #tpu.dot_dimension_numbers<[1], [0], [0], [1], [0, 0, 1, 1], [], []>} : vector<16x32xf32>, vector<32x32xf32>, vector<16x32xf32> -> vector<16x32xf32>
    %c0_3 = arith.constant 0 : index
    %c0_4 = arith.constant 0 : index
    %3 = vector.load %arg3[%c0_3, %c0_4] : memref<1x32xf32, #tpu.memory_space<vmem>>, vector<1x32xf32>
    %4 = vector.broadcast %3 : vector<1x32xf32> to vector<16x32xf32>
    %5 = arith.addf %2, %4 : vector<16x32xf32>
    %c0_5 = arith.constant 0 : index
    %c0_6 = arith.constant 0 : index
    %6 = vector.load %arg4[%c0_5, %c0_6] : memref<16x32xf32, #tpu.memory_space<vmem>>, vector<16x32xf32>
    %7 = arith.addf %5, %6 : vector<16x32xf32>
    %c0_7 = arith.constant 0 : index
    %c0_8 = arith.constant 0 : index
    %8 = vector.load %arg5[%c0_7, %c0_8] : memref<16x32xf32, #tpu.memory_space<vmem>>, vector<16x32xf32>
    tpu.vector_store %arg5[%c0_7, %c0_8], %7 {strides = array<i32>} : memref<16x32xf32, #tpu.memory_space<vmem>>, vector<16x32xf32>,
    return
  }
  func.func @transform_0(%arg0: i32) -> (i32, i32) {
    %c0_i32 = arith.constant 0 : i32
    %c0_i32_0 = arith.constant 0 : i32
    return %arg0, %c0_i32 : i32, i32
  }
  func.func @transform_1(%arg0: i32) -> (i32, i32) {
    %c0_i32 = arith.constant 0 : i32
    %c0_i32_0 = arith.constant 0 : i32
    %c0_i32_1 = arith.constant 0 : i32
    return %c0_i32, %c0_i32_0 : i32, i32
  }
  func.func @transform_2(%arg0: i32) -> (i32, i32) {
    %c0_i32 = arith.constant 0 : i32
    %c0_i32_0 = arith.constant 0 : i32
    %c0_i32_1 = arith.constant 0 : i32
    return %c0_i32, %c0_i32_0 : i32, i32
  }
  func.func @transform_3(%arg0: i32) -> (i32, i32) {
    %c0_i32 = arith.constant 0 : i32
    %c0_i32_0 = arith.constant 0 : i32
    return %arg0, %c0_i32 : i32, i32
  }
  func.func @transform_4(%arg0: i32) -> (i32, i32) {
    %c0_i32 = arith.constant 0 : i32
    %c0_i32_0 = arith.constant 0 : i32
    return %arg0, %c0_i32 : i32, i32
  }
}

module attributes {stable_mosaic.version = 11 : i64} {
  func.func @_ln_proj_kernel(%arg0: i32, %arg1: memref<16x32xf32, #tpu.memory_space<vmem>>, %arg2: memref<1x32xf32, #tpu.memory_space<vmem>>, %arg3: memref<1x32xf32, #tpu.memory_space<vmem>>, %arg4: memref<32x32xf32, #tpu.memory_space<vmem>>, %arg5: memref<1x32xf32, #tpu.memory_space<vmem>>, %arg6: memref<16x32xf32, #tpu.memory_space<vmem>>) attributes {dimension_semantics = [#tpu.dimension_semantics<parallel>], iteration_bounds = array<i64: 1>, scalar_prefetch = 0 : i64, scratch_operands = 0 : i64, tpu.core_type = #tpu.core_type<tc>, window_params = [{transform_indices = @transform_0, window_bounds = array<i64: 16, 32>}, {pipeline_mode = #tpu.pipeline_mode<synchronous>, transform_indices = @transform_1, window_bounds = array<i64: 1, 32>}, {pipeline_mode = #tpu.pipeline_mode<synchronous>, transform_indices = @transform_2, window_bounds = array<i64: 1, 32>}, {pipeline_mode = #tpu.pipeline_mode<synchronous>, transform_indices = @transform_3, window_bounds = array<i64: 32, 32>}, {pipeline_mode = #tpu.pipeline_mode<synchronous>, transform_indices = @transform_4, window_bounds = array<i64: 1, 32>}, {transform_indices = @transform_5, window_bounds = array<i64: 16, 32>}]} {
    %c0 = arith.constant 0 : index
    %c0_0 = arith.constant 0 : index
    %0 = vector.load %arg1[%c0, %c0_0] : memref<16x32xf32, #tpu.memory_space<vmem>>, vector<16x32xf32>
    %c0_1 = arith.constant 0 : index
    %c0_2 = arith.constant 0 : index
    %1 = vector.load %arg2[%c0_1, %c0_2] : memref<1x32xf32, #tpu.memory_space<vmem>>, vector<1x32xf32>
    %c0_3 = arith.constant 0 : index
    %c0_4 = arith.constant 0 : index
    %2 = vector.load %arg3[%c0_3, %c0_4] : memref<1x32xf32, #tpu.memory_space<vmem>>, vector<1x32xf32>
    %cst = arith.constant dense<0.000000e+00> : vector<16xf32>
    %3 = vector.multi_reduction <add>, %0, %cst [1] : vector<16x32xf32> to vector<16xf32>
    %4 = vector.shape_cast %3 : vector<16xf32> to vector<16x1xf32>
    %cst_5 = arith.constant 3.200000e+01 : f32
    %5 = vector.broadcast %cst_5 : f32 to vector<16x1xf32>
    %6 = arith.divf %4, %5 : vector<16x1xf32>
    %7 = vector.broadcast %6 : vector<16x1xf32> to vector<16x32xf32>
    %8 = arith.subf %0, %7 : vector<16x32xf32>
    %9 = arith.mulf %8, %8 : vector<16x32xf32>
    %cst_6 = arith.constant dense<0.000000e+00> : vector<16xf32>
    %10 = vector.multi_reduction <add>, %9, %cst_6 [1] : vector<16x32xf32> to vector<16xf32>
    %11 = vector.shape_cast %10 : vector<16xf32> to vector<16x1xf32>
    %cst_7 = arith.constant 3.100000e+01 : f32
    %12 = vector.broadcast %cst_7 : f32 to vector<16x1xf32>
    %13 = arith.divf %11, %12 : vector<16x1xf32>
    %14 = math.sqrt %13 : vector<16x1xf32>
    %cst_8 = arith.constant 9.99999997E-7 : f32
    %15 = vector.broadcast %cst_8 : f32 to vector<16x1xf32>
    %16 = arith.addf %14, %15 : vector<16x1xf32>
    %17 = tpu.reciprocal %16 {approx = true} : vector<16x1xf32> -> vector<16x1xf32>
    %18 = vector.broadcast %1 : vector<1x32xf32> to vector<16x32xf32>
    %19 = arith.mulf %18, %8 : vector<16x32xf32>
    %20 = vector.broadcast %17 : vector<16x1xf32> to vector<16x32xf32>
    %21 = arith.mulf %19, %20 : vector<16x32xf32>
    %22 = vector.broadcast %2 : vector<1x32xf32> to vector<16x32xf32>
    %23 = arith.addf %21, %22 : vector<16x32xf32>
    %c0_9 = arith.constant 0 : index
    %c0_10 = arith.constant 0 : index
    %24 = vector.load %arg4[%c0_9, %c0_10] : memref<32x32xf32, #tpu.memory_space<vmem>>, vector<32x32xf32>
    %cst_11 = arith.constant dense<0.000000e+00> : vector<16x32xf32>
    %25 = tpu.matmul %23, %24, %cst_11 {dimension_numbers = #tpu.dot_dimension_numbers<[1], [0], [0], [1], [0, 0, 1, 1], [], []>} : vector<16x32xf32>, vector<32x32xf32>, vector<16x32xf32> -> vector<16x32xf32>
    %c0_12 = arith.constant 0 : index
    %c0_13 = arith.constant 0 : index
    %26 = vector.load %arg5[%c0_12, %c0_13] : memref<1x32xf32, #tpu.memory_space<vmem>>, vector<1x32xf32>
    %27 = vector.broadcast %26 : vector<1x32xf32> to vector<16x32xf32>
    %28 = arith.addf %25, %27 : vector<16x32xf32>
    %c0_14 = arith.constant 0 : index
    %c0_15 = arith.constant 0 : index
    %29 = vector.load %arg6[%c0_14, %c0_15] : memref<16x32xf32, #tpu.memory_space<vmem>>, vector<16x32xf32>
    tpu.vector_store %arg6[%c0_14, %c0_15], %28 {strides = array<i32>} : memref<16x32xf32, #tpu.memory_space<vmem>>, vector<16x32xf32>,
    return
  }
  func.func @transform_0(%arg0: i32) -> (i32, i32) {
    %c0_i32 = arith.constant 0 : i32
    %c0_i32_0 = arith.constant 0 : i32
    return %arg0, %c0_i32 : i32, i32
  }
  func.func @transform_1(%arg0: i32) -> (i32, i32) {
    %c0_i32 = arith.constant 0 : i32
    %c0_i32_0 = arith.constant 0 : i32
    %c0_i32_1 = arith.constant 0 : i32
    return %c0_i32, %c0_i32_0 : i32, i32
  }
  func.func @transform_2(%arg0: i32) -> (i32, i32) {
    %c0_i32 = arith.constant 0 : i32
    %c0_i32_0 = arith.constant 0 : i32
    %c0_i32_1 = arith.constant 0 : i32
    return %c0_i32, %c0_i32_0 : i32, i32
  }
  func.func @transform_3(%arg0: i32) -> (i32, i32) {
    %c0_i32 = arith.constant 0 : i32
    %c0_i32_0 = arith.constant 0 : i32
    %c0_i32_1 = arith.constant 0 : i32
    return %c0_i32, %c0_i32_0 : i32, i32
  }
  func.func @transform_4(%arg0: i32) -> (i32, i32) {
    %c0_i32 = arith.constant 0 : i32
    %c0_i32_0 = arith.constant 0 : i32
    %c0_i32_1 = arith.constant 0 : i32
    return %c0_i32, %c0_i32_0 : i32, i32
  }
  func.func @transform_5(%arg0: i32) -> (i32, i32) {
    %c0_i32 = arith.constant 0 : i32
    %c0_i32_0 = arith.constant 0 : i32
    return %arg0, %c0_i32 : i32, i32
  }
}

module attributes {stable_mosaic.version = 11 : i64} {
  func.func @_attn_kernel(%arg0: i32, %arg1: memref<1x8x32xf32, #tpu.memory_space<vmem>>, %arg2: memref<1x8x32xf32, #tpu.memory_space<vmem>>, %arg3: memref<1x8x32xf32, #tpu.memory_space<vmem>>, %arg4: memref<1x1x8x8xf32, #tpu.memory_space<vmem>>, %arg5: memref<1x8x32xf32, #tpu.memory_space<vmem>>) attributes {dimension_semantics = [#tpu.dimension_semantics<parallel>], iteration_bounds = array<i64: 2>, scalar_prefetch = 0 : i64, scratch_operands = 0 : i64, tpu.core_type = #tpu.core_type<tc>, window_params = [{transform_indices = @transform_0, window_bounds = array<i64: 1, 8, 32>}, {transform_indices = @transform_1, window_bounds = array<i64: 1, 8, 32>}, {transform_indices = @transform_2, window_bounds = array<i64: 1, 8, 32>}, {transform_indices = @transform_3, window_bounds = array<i64: 1, 1, 8, 8>}, {transform_indices = @transform_4, window_bounds = array<i64: 1, 8, 32>}]} {
    %c0 = arith.constant 0 : index
    %c0_0 = arith.constant 0 : index
    %c0_1 = arith.constant 0 : index
    %0 = vector.load %arg1[%c0, %c0_0, %c0_1] : memref<1x8x32xf32, #tpu.memory_space<vmem>>, vector<1x8x32xf32>
    %1 = vector.shape_cast %0 : vector<1x8x32xf32> to vector<8x32xf32>
    %c0_2 = arith.constant 0 : index
    %c0_3 = arith.constant 0 : index
    %c0_4 = arith.constant 0 : index
    %2 = vector.load %arg2[%c0_2, %c0_3, %c0_4] : memref<1x8x32xf32, #tpu.memory_space<vmem>>, vector<1x8x32xf32>
    %3 = vector.shape_cast %2 : vector<1x8x32xf32> to vector<8x32xf32>
    %c0_5 = arith.constant 0 : index
    %c0_6 = arith.constant 0 : index
    %c0_7 = arith.constant 0 : index
    %4 = vector.load %arg3[%c0_5, %c0_6, %c0_7] : memref<1x8x32xf32, #tpu.memory_space<vmem>>, vector<1x8x32xf32>
    %5 = vector.shape_cast %4 : vector<1x8x32xf32> to vector<8x32xf32>
    %c0_8 = arith.constant 0 : index
    %c0_9 = arith.constant 0 : index
    %c0_10 = arith.constant 0 : index
    %c0_11 = arith.constant 0 : index
    %6 = vector.load %arg4[%c0_8, %c0_9, %c0_10, %c0_11] : memref<1x1x8x8xf32, #tpu.memory_space<vmem>>, vector<1x1x8x8xf32>
    %7 = vector.shape_cast %6 : vector<1x1x8x8xf32> to vector<8x8xf32>
    %cst = arith.constant 0.000000e+00 : f32
    %8 = vector.broadcast %cst : f32 to vector<8x8xf32>
    %9 = arith.cmpf one, %7, %8 : vector<8x8xf32>
    %10 = vector.extract_strided_slice %1 {offsets = [0, 0], sizes = [8, 8], strides = [1, 1]} : vector<8x32xf32> to vector<8x8xf32>
    %cst_12 = arith.constant 0.353553385 : f32
    %11 = vector.broadcast %cst_12 : f32 to vector<8x8xf32>
    %12 = arith.mulf %10, %11 : vector<8x8xf32>
    %13 = vector.extract_strided_slice %3 {offsets = [0, 0], sizes = [8, 8], strides = [1, 1]} : vector<8x32xf32> to vector<8x8xf32>
    %14 = vector.extract_strided_slice %5 {offsets = [0, 0], sizes = [8, 8], strides = [1, 1]} : vector<8x32xf32> to vector<8x8xf32>
    %15 = tpu.transpose %13, [1, 0] : vector<8x8xf32> -> vector<8x8xf32>
    %cst_13 = arith.constant dense<0.000000e+00> : vector<8x8xf32>
    %16 = tpu.matmul %12, %15, %cst_13 {dimension_numbers = #tpu.dot_dimension_numbers<[1], [0], [0], [1], [0, 0, 1, 1], [], []>} : vector<8x8xf32>, vector<8x8xf32>, vector<8x8xf32> -> vector<8x8xf32>
    %cst_14 = arith.constant -1.000000e+09 : f32
    %17 = vector.broadcast %cst_14 : f32 to vector<8x8xf32>
    %18 = arith.select %9, %16, %17 : vector<8x8xi1>, vector<8x8xf32>
    %cst_15 = arith.constant dense<0xFF800000> : vector<8xf32>
    %19 = vector.multi_reduction <maximumf>, %18, %cst_15 [1] : vector<8x8xf32> to vector<8xf32>
    %20 = vector.shape_cast %19 : vector<8xf32> to vector<8x1xf32>
    %21 = vector.broadcast %20 : vector<8x1xf32> to vector<8x8xf32>
    %22 = arith.subf %18, %21 : vector<8x8xf32>
    %23 = math.exp %22 : vector<8x8xf32>
    %cst_16 = arith.constant dense<0.000000e+00> : vector<8xf32>
    %24 = vector.multi_reduction <add>, %23, %cst_16 [1] : vector<8x8xf32> to vector<8xf32>
    %25 = vector.shape_cast %24 : vector<8xf32> to vector<8x1xf32>
    %26 = tpu.reciprocal %25 {approx = true} : vector<8x1xf32> -> vector<8x1xf32>
    %27 = vector.broadcast %26 : vector<8x1xf32> to vector<8x8xf32>
    %28 = arith.mulf %23, %27 : vector<8x8xf32>
    %cst_17 = arith.constant dense<0.000000e+00> : vector<8x8xf32>
    %29 = tpu.matmul %28, %14, %cst_17 {dimension_numbers = #tpu.dot_dimension_numbers<[1], [0], [0], [1], [0, 0, 1, 1], [], []>} : vector<8x8xf32>, vector<8x8xf32>, vector<8x8xf32> -> vector<8x8xf32>
    %c0_18 = arith.constant 0 : index
    %c0_19 = arith.constant 0 : index
    %c0_20 = arith.constant 0 : index
    %30 = vector.load %arg5[%c0_18, %c0_19, %c0_20] : memref<1x8x32xf32, #tpu.memory_space<vmem>>, vector<1x8x8xf32>
    %31 = vector.shape_cast %30 : vector<1x8x8xf32> to vector<8x8xf32>
    %32 = vector.shape_cast %29 : vector<8x8xf32> to vector<1x8x8xf32>
    tpu.vector_store %arg5[%c0_18, %c0_19, %c0_20], %32 {strides = array<i32>} : memref<1x8x32xf32, #tpu.memory_space<vmem>>, vector<1x8x8xf32>,
    %33 = vector.extract_strided_slice %1 {offsets = [0, 8], sizes = [8, 8], strides = [1, 1]} : vector<8x32xf32> to vector<8x8xf32>
    %cst_21 = arith.constant 0.353553385 : f32
    %34 = vector.broadcast %cst_21 : f32 to vector<8x8xf32>
    %35 = arith.mulf %33, %34 : vector<8x8xf32>
    %36 = vector.extract_strided_slice %3 {offsets = [0, 8], sizes = [8, 8], strides = [1, 1]} : vector<8x32xf32> to vector<8x8xf32>
    %37 = vector.extract_strided_slice %5 {offsets = [0, 8], sizes = [8, 8], strides = [1, 1]} : vector<8x32xf32> to vector<8x8xf32>
    %38 = tpu.transpose %36, [1, 0] : vector<8x8xf32> -> vector<8x8xf32>
    %cst_22 = arith.constant dense<0.000000e+00> : vector<8x8xf32>
    %39 = tpu.matmul %35, %38, %cst_22 {dimension_numbers = #tpu.dot_dimension_numbers<[1], [0], [0], [1], [0, 0, 1, 1], [], []>} : vector<8x8xf32>, vector<8x8xf32>, vector<8x8xf32> -> vector<8x8xf32>
    %cst_23 = arith.constant -1.000000e+09 : f32
    %40 = vector.broadcast %cst_23 : f32 to vector<8x8xf32>
    %41 = arith.select %9, %39, %40 : vector<8x8xi1>, vector<8x8xf32>
    %cst_24 = arith.constant dense<0xFF800000> : vector<8xf32>
    %42 = vector.multi_reduction <maximumf>, %41, %cst_24 [1] : vector<8x8xf32> to vector<8xf32>
    %43 = vector.shape_cast %42 : vector<8xf32> to vector<8x1xf32>
    %44 = vector.broadcast %43 : vector<8x1xf32> to vector<8x8xf32>
    %45 = arith.subf %41, %44 : vector<8x8xf32>
    %46 = math.exp %45 : vector<8x8xf32>
    %cst_25 = arith.constant dense<0.000000e+00> : vector<8xf32>
    %47 = vector.multi_reduction <add>, %46, %cst_25 [1] : vector<8x8xf32> to vector<8xf32>
    %48 = vector.shape_cast %47 : vector<8xf32> to vector<8x1xf32>
    %49 = tpu.reciprocal %48 {approx = true} : vector<8x1xf32> -> vector<8x1xf32>
    %50 = vector.broadcast %49 : vector<8x1xf32> to vector<8x8xf32>
    %51 = arith.mulf %46, %50 : vector<8x8xf32>
    %cst_26 = arith.constant dense<0.000000e+00> : vector<8x8xf32>
    %52 = tpu.matmul %51, %37, %cst_26 {dimension_numbers = #tpu.dot_dimension_numbers<[1], [0], [0], [1], [0, 0, 1, 1], [], []>} : vector<8x8xf32>, vector<8x8xf32>, vector<8x8xf32> -> vector<8x8xf32>
    %c0_27 = arith.constant 0 : index
    %c0_28 = arith.constant 0 : index
    %c8 = arith.constant 8 : index
    %53 = vector.load %arg5[%c0_27, %c0_28, %c8] : memref<1x8x32xf32, #tpu.memory_space<vmem>>, vector<1x8x8xf32>
    %54 = vector.shape_cast %53 : vector<1x8x8xf32> to vector<8x8xf32>
    %55 = vector.shape_cast %52 : vector<8x8xf32> to vector<1x8x8xf32>
    tpu.vector_store %arg5[%c0_27, %c0_28, %c8], %55 {strides = array<i32>} : memref<1x8x32xf32, #tpu.memory_space<vmem>>, vector<1x8x8xf32>,
    %56 = vector.extract_strided_slice %1 {offsets = [0, 16], sizes = [8, 8], strides = [1, 1]} : vector<8x32xf32> to vector<8x8xf32>
    %cst_29 = arith.constant 0.353553385 : f32
    %57 = vector.broadcast %cst_29 : f32 to vector<8x8xf32>
    %58 = arith.mulf %56, %57 : vector<8x8xf32>
    %59 = vector.extract_strided_slice %3 {offsets = [0, 16], sizes = [8, 8], strides = [1, 1]} : vector<8x32xf32> to vector<8x8xf32>
    %60 = vector.extract_strided_slice %5 {offsets = [0, 16], sizes = [8, 8], strides = [1, 1]} : vector<8x32xf32> to vector<8x8xf32>
    %61 = tpu.transpose %59, [1, 0] : vector<8x8xf32> -> vector<8x8xf32>
    %cst_30 = arith.constant dense<0.000000e+00> : vector<8x8xf32>
    %62 = tpu.matmul %58, %61, %cst_30 {dimension_numbers = #tpu.dot_dimension_numbers<[1], [0], [0], [1], [0, 0, 1, 1], [], []>} : vector<8x8xf32>, vector<8x8xf32>, vector<8x8xf32> -> vector<8x8xf32>
    %cst_31 = arith.constant -1.000000e+09 : f32
    %63 = vector.broadcast %cst_31 : f32 to vector<8x8xf32>
    %64 = arith.select %9, %62, %63 : vector<8x8xi1>, vector<8x8xf32>
    %cst_32 = arith.constant dense<0xFF800000> : vector<8xf32>
    %65 = vector.multi_reduction <maximumf>, %64, %cst_32 [1] : vector<8x8xf32> to vector<8xf32>
    %66 = vector.shape_cast %65 : vector<8xf32> to vector<8x1xf32>
    %67 = vector.broadcast %66 : vector<8x1xf32> to vector<8x8xf32>
    %68 = arith.subf %64, %67 : vector<8x8xf32>
    %69 = math.exp %68 : vector<8x8xf32>
    %cst_33 = arith.constant dense<0.000000e+00> : vector<8xf32>
    %70 = vector.multi_reduction <add>, %69, %cst_33 [1] : vector<8x8xf32> to vector<8xf32>
    %71 = vector.shape_cast %70 : vector<8xf32> to vector<8x1xf32>
    %72 = tpu.reciprocal %71 {approx = true} : vector<8x1xf32> -> vector<8x1xf32>
    %73 = vector.broadcast %72 : vector<8x1xf32> to vector<8x8xf32>
    %74 = arith.mulf %69, %73 : vector<8x8xf32>
    %cst_34 = arith.constant dense<0.000000e+00> : vector<8x8xf32>
    %75 = tpu.matmul %74, %60, %cst_34 {dimension_numbers = #tpu.dot_dimension_numbers<[1], [0], [0], [1], [0, 0, 1, 1], [], []>} : vector<8x8xf32>, vector<8x8xf32>, vector<8x8xf32> -> vector<8x8xf32>
    %c0_35 = arith.constant 0 : index
    %c0_36 = arith.constant 0 : index
    %c16 = arith.constant 16 : index
    %76 = vector.load %arg5[%c0_35, %c0_36, %c16] : memref<1x8x32xf32, #tpu.memory_space<vmem>>, vector<1x8x8xf32>
    %77 = vector.shape_cast %76 : vector<1x8x8xf32> to vector<8x8xf32>
    %78 = vector.shape_cast %75 : vector<8x8xf32> to vector<1x8x8xf32>
    tpu.vector_store %arg5[%c0_35, %c0_36, %c16], %78 {strides = array<i32>} : memref<1x8x32xf32, #tpu.memory_space<vmem>>, vector<1x8x8xf32>,
    %79 = vector.extract_strided_slice %1 {offsets = [0, 24], sizes = [8, 8], strides = [1, 1]} : vector<8x32xf32> to vector<8x8xf32>
    %cst_37 = arith.constant 0.353553385 : f32
    %80 = vector.broadcast %cst_37 : f32 to vector<8x8xf32>
    %81 = arith.mulf %79, %80 : vector<8x8xf32>
    %82 = vector.extract_strided_slice %3 {offsets = [0, 24], sizes = [8, 8], strides = [1, 1]} : vector<8x32xf32> to vector<8x8xf32>
    %83 = vector.extract_strided_slice %5 {offsets = [0, 24], sizes = [8, 8], strides = [1, 1]} : vector<8x32xf32> to vector<8x8xf32>
    %84 = tpu.transpose %82, [1, 0] : vector<8x8xf32> -> vector<8x8xf32>
    %cst_38 = arith.constant dense<0.000000e+00> : vector<8x8xf32>
    %85 = tpu.matmul %81, %84, %cst_38 {dimension_numbers = #tpu.dot_dimension_numbers<[1], [0], [0], [1], [0, 0, 1, 1], [], []>} : vector<8x8xf32>, vector<8x8xf32>, vector<8x8xf32> -> vector<8x8xf32>
    %cst_39 = arith.constant -1.000000e+09 : f32
    %86 = vector.broadcast %cst_39 : f32 to vector<8x8xf32>
    %87 = arith.select %9, %85, %86 : vector<8x8xi1>, vector<8x8xf32>
    %cst_40 = arith.constant dense<0xFF800000> : vector<8xf32>
    %88 = vector.multi_reduction <maximumf>, %87, %cst_40 [1] : vector<8x8xf32> to vector<8xf32>
    %89 = vector.shape_cast %88 : vector<8xf32> to vector<8x1xf32>
    %90 = vector.broadcast %89 : vector<8x1xf32> to vector<8x8xf32>
    %91 = arith.subf %87, %90 : vector<8x8xf32>
    %92 = math.exp %91 : vector<8x8xf32>
    %cst_41 = arith.constant dense<0.000000e+00> : vector<8xf32>
    %93 = vector.multi_reduction <add>, %92, %cst_41 [1] : vector<8x8xf32> to vector<8xf32>
    %94 = vector.shape_cast %93 : vector<8xf32> to vector<8x1xf32>
    %95 = tpu.reciprocal %94 {approx = true} : vector<8x1xf32> -> vector<8x1xf32>
    %96 = vector.broadcast %95 : vector<8x1xf32> to vector<8x8xf32>
    %97 = arith.mulf %92, %96 : vector<8x8xf32>
    %cst_42 = arith.constant dense<0.000000e+00> : vector<8x8xf32>
    %98 = tpu.matmul %97, %83, %cst_42 {dimension_numbers = #tpu.dot_dimension_numbers<[1], [0], [0], [1], [0, 0, 1, 1], [], []>} : vector<8x8xf32>, vector<8x8xf32>, vector<8x8xf32> -> vector<8x8xf32>
    %c0_43 = arith.constant 0 : index
    %c0_44 = arith.constant 0 : index
    %c24 = arith.constant 24 : index
    %99 = vector.load %arg5[%c0_43, %c0_44, %c24] : memref<1x8x32xf32, #tpu.memory_space<vmem>>, vector<1x8x8xf32>
    %100 = vector.shape_cast %99 : vector<1x8x8xf32> to vector<8x8xf32>
    %101 = vector.shape_cast %98 : vector<8x8xf32> to vector<1x8x8xf32>
    tpu.vector_store %arg5[%c0_43, %c0_44, %c24], %101 {strides = array<i32>} : memref<1x8x32xf32, #tpu.memory_space<vmem>>, vector<1x8x8xf32>,
    return
  }
  func.func @transform_0(%arg0: i32) -> (i32, i32, i32) {
    %c0_i32 = arith.constant 0 : i32
    %c0_i32_0 = arith.constant 0 : i32
    %c0_i32_1 = arith.constant 0 : i32
    return %arg0, %c0_i32, %c0_i32_0 : i32, i32, i32
  }
  func.func @transform_1(%arg0: i32) -> (i32, i32, i32) {
    %c0_i32 = arith.constant 0 : i32
    %c0_i32_0 = arith.constant 0 : i32
    %c0_i32_1 = arith.constant 0 : i32
    return %arg0, %c0_i32, %c0_i32_0 : i32, i32, i32
  }
  func.func @transform_2(%arg0: i32) -> (i32, i32, i32) {
    %c0_i32 = arith.constant 0 : i32
    %c0_i32_0 = arith.constant 0 : i32
    %c0_i32_1 = arith.constant 0 : i32
    return %arg0, %c0_i32, %c0_i32_0 : i32, i32, i32
  }
  func.func @transform_3(%arg0: i32) -> (i32, i32, i32, i32) {
    %c0_i32 = arith.constant 0 : i32
    %c0_i32_0 = arith.constant 0 : i32
    %c0_i32_1 = arith.constant 0 : i32
    %c0_i32_2 = arith.constant 0 : i32
    return %arg0, %c0_i32, %c0_i32_0, %c0_i32_1 : i32, i32, i32, i32
  }
  func.func @transform_4(%arg0: i32) -> (i32, i32, i32) {
    %c0_i32 = arith.constant 0 : i32
    %c0_i32_0 = arith.constant 0 : i32
    %c0_i32_1 = arith.constant 0 : i32
    return %arg0, %c0_i32, %c0_i32_0 : i32, i32, i32
  }
}

module attributes {stable_mosaic.version = 11 : i64} {
  func.func @_ffn_kernel(%arg0: i32, %arg1: i32, %arg2: memref<16x32xf32, #tpu.memory_space<vmem>>, %arg3: memref<1x32xf32, #tpu.memory_space<vmem>>, %arg4: memref<1x32xf32, #tpu.memory_space<vmem>>, %arg5: memref<32x64xf32, #tpu.memory_space<vmem>>, %arg6: memref<1x64xf32, #tpu.memory_space<vmem>>, %arg7: memref<64x32xf32, #tpu.memory_space<vmem>>, %arg8: memref<1x32xf32, #tpu.memory_space<vmem>>, %arg9: memref<16x32xf32, #tpu.memory_space<vmem>>, %arg10: memref<16x32xf32, #tpu.memory_space<vmem>>, %arg11: memref<16x32xf32, #tpu.memory_space<vmem>>) attributes {dimension_semantics = [#tpu.dimension_semantics<parallel>, #tpu.dimension_semantics<arbitrary>], iteration_bounds = array<i64: 1, 1>, scalar_prefetch = 0 : i64, scratch_operands = 2 : i64, tpu.core_type = #tpu.core_type<tc>, window_params = [{transform_indices = @transform_0, window_bounds = array<i64: 16, 32>}, {pipeline_mode = #tpu.pipeline_mode<synchronous>, transform_indices = @transform_1, window_bounds = array<i64: 1, 32>}, {pipeline_mode = #tpu.pipeline_mode<synchronous>, transform_indices = @transform_2, window_bounds = array<i64: 1, 32>}, {transform_indices = @transform_3, window_bounds = array<i64: 32, 64>}, {transform_indices = @transform_4, window_bounds = array<i64: 1, 64>}, {transform_indices = @transform_5, window_bounds = array<i64: 64, 32>}, {pipeline_mode = #tpu.pipeline_mode<synchronous>, transform_indices = @transform_6, window_bounds = array<i64: 1, 32>}, {transform_indices = @transform_7, window_bounds = array<i64: 16, 32>}]} {
    %c0_i32 = arith.constant 0 : i32
    %0 = arith.cmpi eq, %arg1, %c0_i32 : i32
    %1 = arith.extui %0 : i1 to i32
    %c0_i32_0 = arith.constant 0 : i32
    %2 = arith.cmpi ne, %1, %c0_i32_0 : i32
    scf.if %2 {
      %c0_16 = arith.constant 0 : index
      %c0_17 = arith.constant 0 : index
      %19 = vector.load %arg2[%c0_16, %c0_17] : memref<16x32xf32, #tpu.memory_space<vmem>>, vector<16x32xf32>
      %c0_18 = arith.constant 0 : index
      %c0_19 = arith.constant 0 : index
      %20 = vector.load %arg3[%c0_18, %c0_19] : memref<1x32xf32, #tpu.memory_space<vmem>>, vector<1x32xf32>
      %c0_20 = arith.constant 0 : index
      %c0_21 = arith.constant 0 : index
      %21 = vector.load %arg4[%c0_20, %c0_21] : memref<1x32xf32, #tpu.memory_space<vmem>>, vector<1x32xf32>
      %cst_22 = arith.constant dense<0.000000e+00> : vector<16xf32>
      %22 = vector.multi_reduction <add>, %19, %cst_22 [1] : vector<16x32xf32> to vector<16xf32>
      %23 = vector.shape_cast %22 : vector<16xf32> to vector<16x1xf32>
      %cst_23 = arith.constant 3.200000e+01 : f32
      %24 = vector.broadcast %cst_23 : f32 to vector<16x1xf32>
      %25 = arith.divf %23, %24 : vector<16x1xf32>
      %26 = vector.broadcast %25 : vector<16x1xf32> to vector<16x32xf32>
      %27 = arith.subf %19, %26 : vector<16x32xf32>
      %28 = arith.mulf %27, %27 : vector<16x32xf32>
      %cst_24 = arith.constant dense<0.000000e+00> : vector<16xf32>
      %29 = vector.multi_reduction <add>, %28, %cst_24 [1] : vector<16x32xf32> to vector<16xf32>
      %30 = vector.shape_cast %29 : vector<16xf32> to vector<16x1xf32>
      %cst_25 = arith.constant 3.100000e+01 : f32
      %31 = vector.broadcast %cst_25 : f32 to vector<16x1xf32>
      %32 = arith.divf %30, %31 : vector<16x1xf32>
      %33 = math.sqrt %32 : vector<16x1xf32>
      %cst_26 = arith.constant 9.99999997E-7 : f32
      %34 = vector.broadcast %cst_26 : f32 to vector<16x1xf32>
      %35 = arith.addf %33, %34 : vector<16x1xf32>
      %36 = tpu.reciprocal %35 {approx = true} : vector<16x1xf32> -> vector<16x1xf32>
      %37 = vector.broadcast %20 : vector<1x32xf32> to vector<16x32xf32>
      %38 = arith.mulf %37, %27 : vector<16x32xf32>
      %39 = vector.broadcast %36 : vector<16x1xf32> to vector<16x32xf32>
      %40 = arith.mulf %38, %39 : vector<16x32xf32>
      %41 = vector.broadcast %21 : vector<1x32xf32> to vector<16x32xf32>
      %42 = arith.addf %40, %41 : vector<16x32xf32>
      %c0_27 = arith.constant 0 : index
      %c0_28 = arith.constant 0 : index
      %43 = vector.load %arg10[%c0_27, %c0_28] : memref<16x32xf32, #tpu.memory_space<vmem>>, vector<16x32xf32>
      tpu.vector_store %arg10[%c0_27, %c0_28], %42 {strides = array<i32>} : memref<16x32xf32, #tpu.memory_space<vmem>>, vector<16x32xf32>,
      %cst_29 = arith.constant 0.000000e+00 : f32
      %44 = vector.broadcast %cst_29 : f32 to vector<16x32xf32>
      %c0_30 = arith.constant 0 : index
      %c0_31 = arith.constant 0 : index
      %45 = vector.load %arg11[%c0_30, %c0_31] : memref<16x32xf32, #tpu.memory_space<vmem>>, vector<16x32xf32>
      tpu.vector_store %arg11[%c0_30, %c0_31], %44 {strides = array<i32>} : memref<16x32xf32, #tpu.memory_space<vmem>>, vector<16x32xf32>,
    } else {
    }
    %c0 = arith.constant 0 : index
    %c0_1 = arith.constant 0 : index
    %3 = vector.load %arg10[%c0, %c0_1] : memref<16x32xf32, #tpu.memory_space<vmem>>, vector<16x32xf32>
    %c0_2 = arith.constant 0 : index
    %c0_3 = arith.constant 0 : index
    %4 = vector.load %arg5[%c0_2, %c0_3] : memref<32x64xf32, #tpu.memory_space<vmem>>, vector<32x64xf32>
    %cst = arith.constant dense<0.000000e+00> : vector<16x64xf32>
    %5 = tpu.matmul %3, %4, %cst {dimension_numbers = #tpu.dot_dimension_numbers<[1], [0], [0], [1], [0, 0, 1, 1], [], []>} : vector<16x32xf32>, vector<32x64xf32>, vector<16x64xf32> -> vector<16x64xf32>
    %c0_4 = arith.constant 0 : index
    %c0_5 = arith.constant 0 : index
    %6 = vector.load %arg6[%c0_4, %c0_5] : memref<1x64xf32, #tpu.memory_space<vmem>>, vector<1x64xf32>
    %7 = vector.broadcast %6 : vector<1x64xf32> to vector<16x64xf32>
    %8 = arith.addf %5, %7 : vector<16x64xf32>
    %cst_6 = arith.constant 0.000000e+00 : f32
    %9 = vector.broadcast %cst_6 : f32 to vector<16x64xf32>
    %10 = arith.maximumf %8, %9 : vector<16x64xf32>
    %c0_7 = arith.constant 0 : index
    %c0_8 = arith.constant 0 : index
    %11 = vector.load %arg11[%c0_7, %c0_8] : memref<16x32xf32, #tpu.memory_space<vmem>>, vector<16x32xf32>
    %c0_9 = arith.constant 0 : index
    %c0_10 = arith.constant 0 : index
    %12 = vector.load %arg7[%c0_9, %c0_10] : memref<64x32xf32, #tpu.memory_space<vmem>>, vector<64x32xf32>
    %cst_11 = arith.constant dense<0.000000e+00> : vector<16x32xf32>
    %13 = tpu.matmul %10, %12, %cst_11 {dimension_numbers = #tpu.dot_dimension_numbers<[1], [0], [0], [1], [0, 0, 1, 1], [], []>} : vector<16x64xf32>, vector<64x32xf32>, vector<16x32xf32> -> vector<16x32xf32>
    %14 = arith.addf %11, %13 : vector<16x32xf32>
    %c0_12 = arith.constant 0 : index
    %c0_13 = arith.constant 0 : index
    %15 = vector.load %arg11[%c0_12, %c0_13] : memref<16x32xf32, #tpu.memory_space<vmem>>, vector<16x32xf32>
    tpu.vector_store %arg11[%c0_12, %c0_13], %14 {strides = array<i32>} : memref<16x32xf32, #tpu.memory_space<vmem>>, vector<16x32xf32>,
    %c0_i32_14 = arith.constant 0 : i32
    %16 = arith.cmpi eq, %arg1, %c0_i32_14 : i32
    %17 = arith.extui %16 : i1 to i32
    %c0_i32_15 = arith.constant 0 : i32
    %18 = arith.cmpi ne, %17, %c0_i32_15 : i32
    scf.if %18 {
      %c0_16 = arith.constant 0 : index
      %c0_17 = arith.constant 0 : index
      %19 = vector.load %arg11[%c0_16, %c0_17] : memref<16x32xf32, #tpu.memory_space<vmem>>, vector<16x32xf32>
      %c0_18 = arith.constant 0 : index
      %c0_19 = arith.constant 0 : index
      %20 = vector.load %arg8[%c0_18, %c0_19] : memref<1x32xf32, #tpu.memory_space<vmem>>, vector<1x32xf32>
      %21 = vector.broadcast %20 : vector<1x32xf32> to vector<16x32xf32>
      %22 = arith.addf %19, %21 : vector<16x32xf32>
      %c0_20 = arith.constant 0 : index
      %c0_21 = arith.constant 0 : index
      %23 = vector.load %arg2[%c0_20, %c0_21] : memref<16x32xf32, #tpu.memory_space<vmem>>, vector<16x32xf32>
      %24 = arith.addf %22, %23 : vector<16x32xf32>
      %c0_22 = arith.constant 0 : index
      %c0_23 = arith.constant 0 : index
      %25 = vector.load %arg9[%c0_22, %c0_23] : memref<16x32xf32, #tpu.memory_space<vmem>>, vector<16x32xf32>
      tpu.vector_store %arg9[%c0_22, %c0_23], %24 {strides = array<i32>} : memref<16x32xf32, #tpu.memory_space<vmem>>, vector<16x32xf32>,
    } else {
    }
    return
  }
  func.func @transform_0(%arg0: i32, %arg1: i32) -> (i32, i32) {
    %c0_i32 = arith.constant 0 : i32
    %c0_i32_0 = arith.constant 0 : i32
    return %arg0, %c0_i32 : i32, i32
  }
  func.func @transform_1(%arg0: i32, %arg1: i32) -> (i32, i32) {
    %c0_i32 = arith.constant 0 : i32
    %c0_i32_0 = arith.constant 0 : i32
    %c0_i32_1 = arith.constant 0 : i32
    return %c0_i32, %c0_i32_0 : i32, i32
  }
  func.func @transform_2(%arg0: i32, %arg1: i32) -> (i32, i32) {
    %c0_i32 = arith.constant 0 : i32
    %c0_i32_0 = arith.constant 0 : i32
    %c0_i32_1 = arith.constant 0 : i32
    return %c0_i32, %c0_i32_0 : i32, i32
  }
  func.func @transform_3(%arg0: i32, %arg1: i32) -> (i32, i32) {
    %c0_i32 = arith.constant 0 : i32
    %c0_i32_0 = arith.constant 0 : i32
    return %c0_i32, %arg1 : i32, i32
  }
  func.func @transform_4(%arg0: i32, %arg1: i32) -> (i32, i32) {
    %c0_i32 = arith.constant 0 : i32
    %c0_i32_0 = arith.constant 0 : i32
    return %c0_i32, %arg1 : i32, i32
  }
  func.func @transform_5(%arg0: i32, %arg1: i32) -> (i32, i32) {
    %c0_i32 = arith.constant 0 : i32
    %c0_i32_0 = arith.constant 0 : i32
    return %arg1, %c0_i32 : i32, i32
  }
  func.func @transform_6(%arg0: i32, %arg1: i32) -> (i32, i32) {
    %c0_i32 = arith.constant 0 : i32
    %c0_i32_0 = arith.constant 0 : i32
    %c0_i32_1 = arith.constant 0 : i32
    return %c0_i32, %c0_i32_0 : i32, i32
  }
  func.func @transform_7(%arg0: i32, %arg1: i32) -> (i32, i32) {
    %c0_i32 = arith.constant 0 : i32
    %c0_i32_0 = arith.constant 0 : i32
    return %arg0, %c0_i32 : i32, i32
  }
}

module attributes {stable_mosaic.version = 11 : i64} {
  func.func @_kv_proj_kernel(%arg0: i32, %arg1: memref<16x32xf32, #tpu.memory_space<vmem>>, %arg2: memref<32x32xf32, #tpu.memory_space<vmem>>, %arg3: memref<1x32xf32, #tpu.memory_space<vmem>>, %arg4: memref<32x32xf32, #tpu.memory_space<vmem>>, %arg5: memref<1x32xf32, #tpu.memory_space<vmem>>, %arg6: memref<16x32xf32, #tpu.memory_space<vmem>>, %arg7: memref<16x32xf32, #tpu.memory_space<vmem>>) attributes {dimension_semantics = [#tpu.dimension_semantics<parallel>], iteration_bounds = array<i64: 1>, scalar_prefetch = 0 : i64, scratch_operands = 0 : i64, tpu.core_type = #tpu.core_type<tc>, window_params = [{transform_indices = @transform_0, window_bounds = array<i64: 16, 32>}, {pipeline_mode = #tpu.pipeline_mode<synchronous>, transform_indices = @transform_1, window_bounds = array<i64: 32, 32>}, {pipeline_mode = #tpu.pipeline_mode<synchronous>, transform_indices = @transform_2, window_bounds = array<i64: 1, 32>}, {pipeline_mode = #tpu.pipeline_mode<synchronous>, transform_indices = @transform_3, window_bounds = array<i64: 32, 32>}, {pipeline_mode = #tpu.pipeline_mode<synchronous>, transform_indices = @transform_4, window_bounds = array<i64: 1, 32>}, {transform_indices = @transform_5, window_bounds = array<i64: 16, 32>}, {transform_indices = @transform_6, window_bounds = array<i64: 16, 32>}]} {
    %c0 = arith.constant 0 : index
    %c0_0 = arith.constant 0 : index
    %0 = vector.load %arg1[%c0, %c0_0] : memref<16x32xf32, #tpu.memory_space<vmem>>, vector<16x32xf32>
    %c0_1 = arith.constant 0 : index
    %c0_2 = arith.constant 0 : index
    %1 = vector.load %arg2[%c0_1, %c0_2] : memref<32x32xf32, #tpu.memory_space<vmem>>, vector<32x32xf32>
    %cst = arith.constant dense<0.000000e+00> : vector<16x32xf32>
    %2 = tpu.matmul %0, %1, %cst {dimension_numbers = #tpu.dot_dimension_numbers<[1], [0], [0], [1], [0, 0, 1, 1], [], []>} : vector<16x32xf32>, vector<32x32xf32>, vector<16x32xf32> -> vector<16x32xf32>
    %c0_3 = arith.constant 0 : index
    %c0_4 = arith.constant 0 : index
    %3 = vector.load %arg3[%c0_3, %c0_4] : memref<1x32xf32, #tpu.memory_space<vmem>>, vector<1x32xf32>
    %4 = vector.broadcast %3 : vector<1x32xf32> to vector<16x32xf32>
    %5 = arith.addf %2, %4 : vector<16x32xf32>
    %c0_5 = arith.constant 0 : index
    %c0_6 = arith.constant 0 : index
    %6 = vector.load %arg6[%c0_5, %c0_6] : memref<16x32xf32, #tpu.memory_space<vmem>>, vector<16x32xf32>
    tpu.vector_store %arg6[%c0_5, %c0_6], %5 {strides = array<i32>} : memref<16x32xf32, #tpu.memory_space<vmem>>, vector<16x32xf32>,
    %c0_7 = arith.constant 0 : index
    %c0_8 = arith.constant 0 : index
    %7 = vector.load %arg4[%c0_7, %c0_8] : memref<32x32xf32, #tpu.memory_space<vmem>>, vector<32x32xf32>
    %cst_9 = arith.constant dense<0.000000e+00> : vector<16x32xf32>
    %8 = tpu.matmul %0, %7, %cst_9 {dimension_numbers = #tpu.dot_dimension_numbers<[1], [0], [0], [1], [0, 0, 1, 1], [], []>} : vector<16x32xf32>, vector<32x32xf32>, vector<16x32xf32> -> vector<16x32xf32>
    %c0_10 = arith.constant 0 : index
    %c0_11 = arith.constant 0 : index
    %9 = vector.load %arg5[%c0_10, %c0_11] : memref<1x32xf32, #tpu.memory_space<vmem>>, vector<1x32xf32>
    %10 = vector.broadcast %9 : vector<1x32xf32> to vector<16x32xf32>
    %11 = arith.addf %8, %10 : vector<16x32xf32>
    %c0_12 = arith.constant 0 : index
    %c0_13 = arith.constant 0 : index
    %12 = vector.load %arg7[%c0_12, %c0_13] : memref<16x32xf32, #tpu.memory_space<vmem>>, vector<16x32xf32>
    tpu.vector_store %arg7[%c0_12, %c0_13], %11 {strides = array<i32>} : memref<16x32xf32, #tpu.memory_space<vmem>>, vector<16x32xf32>,
    return
  }
  func.func @transform_0(%arg0: i32) -> (i32, i32) {
    %c0_i32 = arith.constant 0 : i32
    %c0_i32_0 = arith.constant 0 : i32
    return %arg0, %c0_i32 : i32, i32
  }
  func.func @transform_1(%arg0: i32) -> (i32, i32) {
    %c0_i32 = arith.constant 0 : i32
    %c0_i32_0 = arith.constant 0 : i32
    %c0_i32_1 = arith.constant 0 : i32
    return %c0_i32, %c0_i32_0 : i32, i32
  }
  func.func @transform_2(%arg0: i32) -> (i32, i32) {
    %c0_i32 = arith.constant 0 : i32
    %c0_i32_0 = arith.constant 0 : i32
    %c0_i32_1 = arith.constant 0 : i32
    return %c0_i32, %c0_i32_0 : i32, i32
  }
  func.func @transform_3(%arg0: i32) -> (i32, i32) {
    %c0_i32 = arith.constant 0 : i32
    %c0_i32_0 = arith.constant 0 : i32
    %c0_i32_1 = arith.constant 0 : i32
    return %c0_i32, %c0_i32_0 : i32, i32
  }
  func.func @transform_4(%arg0: i32) -> (i32, i32) {
    %c0_i32 = arith.constant 0 : i32
    %c0_i32_0 = arith.constant 0 : i32
    %c0_i32_1 = arith.constant 0 : i32
    return %c0_i32, %c0_i32_0 : i32, i32
  }
  func.func @transform_5(%arg0: i32) -> (i32, i32) {
    %c0_i32 = arith.constant 0 : i32
    %c0_i32_0 = arith.constant 0 : i32
    return %arg0, %c0_i32 : i32, i32
  }
  func.func @transform_6(%arg0: i32) -> (i32, i32) {
    %c0_i32 = arith.constant 0 : i32
    %c0_i32_0 = arith.constant 0 : i32
    return %arg0, %c0_i32 : i32, i32
  }
}

module attributes {stable_mosaic.version = 11 : i64} {
  func.func @_layernorm_kernel(%arg0: i32, %arg1: memref<16x32xf32, #tpu.memory_space<vmem>>, %arg2: memref<1x32xf32, #tpu.memory_space<vmem>>, %arg3: memref<1x32xf32, #tpu.memory_space<vmem>>, %arg4: memref<16x32xf32, #tpu.memory_space<vmem>>) attributes {dimension_semantics = [#tpu.dimension_semantics<parallel>], iteration_bounds = array<i64: 1>, scalar_prefetch = 0 : i64, scratch_operands = 0 : i64, tpu.core_type = #tpu.core_type<tc>, window_params = [{transform_indices = @transform_0, window_bounds = array<i64: 16, 32>}, {pipeline_mode = #tpu.pipeline_mode<synchronous>, transform_indices = @transform_1, window_bounds = array<i64: 1, 32>}, {pipeline_mode = #tpu.pipeline_mode<synchronous>, transform_indices = @transform_2, window_bounds = array<i64: 1, 32>}, {transform_indices = @transform_3, window_bounds = array<i64: 16, 32>}]} {
    %c0 = arith.constant 0 : index
    %c0_0 = arith.constant 0 : index
    %0 = vector.load %arg1[%c0, %c0_0] : memref<16x32xf32, #tpu.memory_space<vmem>>, vector<16x32xf32>
    %c0_1 = arith.constant 0 : index
    %c0_2 = arith.constant 0 : index
    %1 = vector.load %arg2[%c0_1, %c0_2] : memref<1x32xf32, #tpu.memory_space<vmem>>, vector<1x32xf32>
    %c0_3 = arith.constant 0 : index
    %c0_4 = arith.constant 0 : index
    %2 = vector.load %arg3[%c0_3, %c0_4] : memref<1x32xf32, #tpu.memory_space<vmem>>, vector<1x32xf32>
    %cst = arith.constant dense<0.000000e+00> : vector<16xf32>
    %3 = vector.multi_reduction <add>, %0, %cst [1] : vector<16x32xf32> to vector<16xf32>
    %4 = vector.shape_cast %3 : vector<16xf32> to vector<16x1xf32>
    %cst_5 = arith.constant 3.200000e+01 : f32
    %5 = vector.broadcast %cst_5 : f32 to vector<16x1xf32>
    %6 = arith.divf %4, %5 : vector<16x1xf32>
    %7 = vector.broadcast %6 : vector<16x1xf32> to vector<16x32xf32>
    %8 = arith.subf %0, %7 : vector<16x32xf32>
    %9 = arith.mulf %8, %8 : vector<16x32xf32>
    %cst_6 = arith.constant dense<0.000000e+00> : vector<16xf32>
    %10 = vector.multi_reduction <add>, %9, %cst_6 [1] : vector<16x32xf32> to vector<16xf32>
    %11 = vector.shape_cast %10 : vector<16xf32> to vector<16x1xf32>
    %cst_7 = arith.constant 3.100000e+01 : f32
    %12 = vector.broadcast %cst_7 : f32 to vector<16x1xf32>
    %13 = arith.divf %11, %12 : vector<16x1xf32>
    %14 = math.sqrt %13 : vector<16x1xf32>
    %cst_8 = arith.constant 9.99999997E-7 : f32
    %15 = vector.broadcast %cst_8 : f32 to vector<16x1xf32>
    %16 = arith.addf %14, %15 : vector<16x1xf32>
    %17 = tpu.reciprocal %16 {approx = true} : vector<16x1xf32> -> vector<16x1xf32>
    %18 = vector.broadcast %1 : vector<1x32xf32> to vector<16x32xf32>
    %19 = arith.mulf %18, %8 : vector<16x32xf32>
    %20 = vector.broadcast %17 : vector<16x1xf32> to vector<16x32xf32>
    %21 = arith.mulf %19, %20 : vector<16x32xf32>
    %22 = vector.broadcast %2 : vector<1x32xf32> to vector<16x32xf32>
    %23 = arith.addf %21, %22 : vector<16x32xf32>
    %c0_9 = arith.constant 0 : index
    %c0_10 = arith.constant 0 : index
    %24 = vector.load %arg4[%c0_9, %c0_10] : memref<16x32xf32, #tpu.memory_space<vmem>>, vector<16x32xf32>
    tpu.vector_store %arg4[%c0_9, %c0_10], %23 {strides = array<i32>} : memref<16x32xf32, #tpu.memory_space<vmem>>, vector<16x32xf32>,
    return
  }
  func.func @transform_0(%arg0: i32) -> (i32, i32) {
    %c0_i32 = arith.constant 0 : i32
    %c0_i32_0 = arith.constant 0 : i32
    return %arg0, %c0_i32 : i32, i32
  }
  func.func @transform_1(%arg0: i32) -> (i32, i32) {
    %c0_i32 = arith.constant 0 : i32
    %c0_i32_0 = arith.constant 0 : i32
    %c0_i32_1 = arith.constant 0 : i32
    return %c0_i32, %c0_i32_0 : i32, i32
  }
  func.func @transform_2(%arg0: i32) -> (i32, i32) {
    %c0_i32 = arith.constant 0 : i32
    %c0_i32_0 = arith.constant 0 : i32
    %c0_i32_1 = arith.constant 0 : i32
    return %c0_i32, %c0_i32_0 : i32, i32
  }
  func.func @transform_3(%arg0: i32) -> (i32, i32) {
    %c0_i32 = arith.constant 0 : i32
    %c0_i32_0 = arith.constant 0 : i32
    return %arg0, %c0_i32 : i32, i32
  }
}

module attributes {stable_mosaic.version = 11 : i64} {
  func.func @_attn_kernel(%arg0: i32, %arg1: memref<1x8x32xf32, #tpu.memory_space<vmem>>, %arg2: memref<1x8x32xf32, #tpu.memory_space<vmem>>, %arg3: memref<1x8x32xf32, #tpu.memory_space<vmem>>, %arg4: memref<1x1x1x8xf32, #tpu.memory_space<vmem>>, %arg5: memref<1x8x32xf32, #tpu.memory_space<vmem>>) attributes {dimension_semantics = [#tpu.dimension_semantics<parallel>], iteration_bounds = array<i64: 2>, scalar_prefetch = 0 : i64, scratch_operands = 0 : i64, tpu.core_type = #tpu.core_type<tc>, window_params = [{transform_indices = @transform_0, window_bounds = array<i64: 1, 8, 32>}, {transform_indices = @transform_1, window_bounds = array<i64: 1, 8, 32>}, {transform_indices = @transform_2, window_bounds = array<i64: 1, 8, 32>}, {transform_indices = @transform_3, window_bounds = array<i64: 1, 1, 1, 8>}, {transform_indices = @transform_4, window_bounds = array<i64: 1, 8, 32>}]} {
    %c0 = arith.constant 0 : index
    %c0_0 = arith.constant 0 : index
    %c0_1 = arith.constant 0 : index
    %0 = vector.load %arg1[%c0, %c0_0, %c0_1] : memref<1x8x32xf32, #tpu.memory_space<vmem>>, vector<1x8x32xf32>
    %1 = vector.shape_cast %0 : vector<1x8x32xf32> to vector<8x32xf32>
    %c0_2 = arith.constant 0 : index
    %c0_3 = arith.constant 0 : index
    %c0_4 = arith.constant 0 : index
    %2 = vector.load %arg2[%c0_2, %c0_3, %c0_4] : memref<1x8x32xf32, #tpu.memory_space<vmem>>, vector<1x8x32xf32>
    %3 = vector.shape_cast %2 : vector<1x8x32xf32> to vector<8x32xf32>
    %c0_5 = arith.constant 0 : index
    %c0_6 = arith.constant 0 : index
    %c0_7 = arith.constant 0 : index
    %4 = vector.load %arg3[%c0_5, %c0_6, %c0_7] : memref<1x8x32xf32, #tpu.memory_space<vmem>>, vector<1x8x32xf32>
    %5 = vector.shape_cast %4 : vector<1x8x32xf32> to vector<8x32xf32>
    %c0_8 = arith.constant 0 : index
    %c0_9 = arith.constant 0 : index
    %c0_10 = arith.constant 0 : index
    %c0_11 = arith.constant 0 : index
    %6 = vector.load %arg4[%c0_8, %c0_9, %c0_10, %c0_11] : memref<1x1x1x8xf32, #tpu.memory_space<vmem>>, vector<1x1x1x8xf32>
    %7 = vector.shape_cast %6 : vector<1x1x1x8xf32> to vector<1x8xf32>
    %cst = arith.constant 0.000000e+00 : f32
    %8 = vector.broadcast %cst : f32 to vector<1x8xf32>
    %9 = arith.cmpf one, %7, %8 : vector<1x8xf32>
    %10 = vector.shape_cast %9 : vector<1x8xi1> to vector<1x8xi1>
    %11 = vector.broadcast %10 : vector<1x8xi1> to vector<8x8xi1>
    %12 = vector.extract_strided_slice %1 {offsets = [0, 0], sizes = [8, 8], strides = [1, 1]} : vector<8x32xf32> to vector<8x8xf32>
    %cst_12 = arith.constant 0.353553385 : f32
    %13 = vector.broadcast %cst_12 : f32 to vector<8x8xf32>
    %14 = arith.mulf %12, %13 : vector<8x8xf32>
    %15 = vector.extract_strided_slice %3 {offsets = [0, 0], sizes = [8, 8], strides = [1, 1]} : vector<8x32xf32> to vector<8x8xf32>
    %16 = vector.extract_strided_slice %5 {offsets = [0, 0], sizes = [8, 8], strides = [1, 1]} : vector<8x32xf32> to vector<8x8xf32>
    %17 = tpu.transpose %15, [1, 0] : vector<8x8xf32> -> vector<8x8xf32>
    %cst_13 = arith.constant dense<0.000000e+00> : vector<8x8xf32>
    %18 = tpu.matmul %14, %17, %cst_13 {dimension_numbers = #tpu.dot_dimension_numbers<[1], [0], [0], [1], [0, 0, 1, 1], [], []>} : vector<8x8xf32>, vector<8x8xf32>, vector<8x8xf32> -> vector<8x8xf32>
    %cst_14 = arith.constant -1.000000e+09 : f32
    %19 = vector.broadcast %cst_14 : f32 to vector<8x8xf32>
    %20 = arith.select %11, %18, %19 : vector<8x8xi1>, vector<8x8xf32>
    %cst_15 = arith.constant dense<0xFF800000> : vector<8xf32>
    %21 = vector.multi_reduction <maximumf>, %20, %cst_15 [1] : vector<8x8xf32> to vector<8xf32>
    %22 = vector.shape_cast %21 : vector<8xf32> to vector<8x1xf32>
    %23 = vector.broadcast %22 : vector<8x1xf32> to vector<8x8xf32>
    %24 = arith.subf %20, %23 : vector<8x8xf32>
    %25 = math.exp %24 : vector<8x8xf32>
    %cst_16 = arith.constant dense<0.000000e+00> : vector<8xf32>
    %26 = vector.multi_reduction <add>, %25, %cst_16 [1] : vector<8x8xf32> to vector<8xf32>
    %27 = vector.shape_cast %26 : vector<8xf32> to vector<8x1xf32>
    %28 = tpu.reciprocal %27 {approx = true} : vector<8x1xf32> -> vector<8x1xf32>
    %29 = vector.broadcast %28 : vector<8x1xf32> to vector<8x8xf32>
    %30 = arith.mulf %25, %29 : vector<8x8xf32>
    %cst_17 = arith.constant dense<0.000000e+00> : vector<8x8xf32>
    %31 = tpu.matmul %30, %16, %cst_17 {dimension_numbers = #tpu.dot_dimension_numbers<[1], [0], [0], [1], [0, 0, 1, 1], [], []>} : vector<8x8xf32>, vector<8x8xf32>, vector<8x8xf32> -> vector<8x8xf32>
    %c0_18 = arith.constant 0 : index
    %c0_19 = arith.constant 0 : index
    %c0_20 = arith.constant 0 : index
    %32 = vector.load %arg5[%c0_18, %c0_19, %c0_20] : memref<1x8x32xf32, #tpu.memory_space<vmem>>, vector<1x8x8xf32>
    %33 = vector.shape_cast %32 : vector<1x8x8xf32> to vector<8x8xf32>
    %34 = vector.shape_cast %31 : vector<8x8xf32> to vector<1x8x8xf32>
    tpu.vector_store %arg5[%c0_18, %c0_19, %c0_20], %34 {strides = array<i32>} : memref<1x8x32xf32, #tpu.memory_space<vmem>>, vector<1x8x8xf32>,
    %35 = vector.extract_strided_slice %1 {offsets = [0, 8], sizes = [8, 8], strides = [1, 1]} : vector<8x32xf32> to vector<8x8xf32>
    %cst_21 = arith.constant 0.353553385 : f32
    %36 = vector.broadcast %cst_21 : f32 to vector<8x8xf32>
    %37 = arith.mulf %35, %36 : vector<8x8xf32>
    %38 = vector.extract_strided_slice %3 {offsets = [0, 8], sizes = [8, 8], strides = [1, 1]} : vector<8x32xf32> to vector<8x8xf32>
    %39 = vector.extract_strided_slice %5 {offsets = [0, 8], sizes = [8, 8], strides = [1, 1]} : vector<8x32xf32> to vector<8x8xf32>
    %40 = tpu.transpose %38, [1, 0] : vector<8x8xf32> -> vector<8x8xf32>
    %cst_22 = arith.constant dense<0.000000e+00> : vector<8x8xf32>
    %41 = tpu.matmul %37, %40, %cst_22 {dimension_numbers = #tpu.dot_dimension_numbers<[1], [0], [0], [1], [0, 0, 1, 1], [], []>} : vector<8x8xf32>, vector<8x8xf32>, vector<8x8xf32> -> vector<8x8xf32>
    %cst_23 = arith.constant -1.000000e+09 : f32
    %42 = vector.broadcast %cst_23 : f32 to vector<8x8xf32>
    %43 = arith.select %11, %41, %42 : vector<8x8xi1>, vector<8x8xf32>
    %cst_24 = arith.constant dense<0xFF800000> : vector<8xf32>
    %44 = vector.multi_reduction <maximumf>, %43, %cst_24 [1] : vector<8x8xf32> to vector<8xf32>
    %45 = vector.shape_cast %44 : vector<8xf32> to vector<8x1xf32>
    %46 = vector.broadcast %45 : vector<8x1xf32> to vector<8x8xf32>
    %47 = arith.subf %43, %46 : vector<8x8xf32>
    %48 = math.exp %47 : vector<8x8xf32>
    %cst_25 = arith.constant dense<0.000000e+00> : vector<8xf32>
    %49 = vector.multi_reduction <add>, %48, %cst_25 [1] : vector<8x8xf32> to vector<8xf32>
    %50 = vector.shape_cast %49 : vector<8xf32> to vector<8x1xf32>
    %51 = tpu.reciprocal %50 {approx = true} : vector<8x1xf32> -> vector<8x1xf32>
    %52 = vector.broadcast %51 : vector<8x1xf32> to vector<8x8xf32>
    %53 = arith.mulf %48, %52 : vector<8x8xf32>
    %cst_26 = arith.constant dense<0.000000e+00> : vector<8x8xf32>
    %54 = tpu.matmul %53, %39, %cst_26 {dimension_numbers = #tpu.dot_dimension_numbers<[1], [0], [0], [1], [0, 0, 1, 1], [], []>} : vector<8x8xf32>, vector<8x8xf32>, vector<8x8xf32> -> vector<8x8xf32>
    %c0_27 = arith.constant 0 : index
    %c0_28 = arith.constant 0 : index
    %c8 = arith.constant 8 : index
    %55 = vector.load %arg5[%c0_27, %c0_28, %c8] : memref<1x8x32xf32, #tpu.memory_space<vmem>>, vector<1x8x8xf32>
    %56 = vector.shape_cast %55 : vector<1x8x8xf32> to vector<8x8xf32>
    %57 = vector.shape_cast %54 : vector<8x8xf32> to vector<1x8x8xf32>
    tpu.vector_store %arg5[%c0_27, %c0_28, %c8], %57 {strides = array<i32>} : memref<1x8x32xf32, #tpu.memory_space<vmem>>, vector<1x8x8xf32>,
    %58 = vector.extract_strided_slice %1 {offsets = [0, 16], sizes = [8, 8], strides = [1, 1]} : vector<8x32xf32> to vector<8x8xf32>
    %cst_29 = arith.constant 0.353553385 : f32
    %59 = vector.broadcast %cst_29 : f32 to vector<8x8xf32>
    %60 = arith.mulf %58, %59 : vector<8x8xf32>
    %61 = vector.extract_strided_slice %3 {offsets = [0, 16], sizes = [8, 8], strides = [1, 1]} : vector<8x32xf32> to vector<8x8xf32>
    %62 = vector.extract_strided_slice %5 {offsets = [0, 16], sizes = [8, 8], strides = [1, 1]} : vector<8x32xf32> to vector<8x8xf32>
    %63 = tpu.transpose %61, [1, 0] : vector<8x8xf32> -> vector<8x8xf32>
    %cst_30 = arith.constant dense<0.000000e+00> : vector<8x8xf32>
    %64 = tpu.matmul %60, %63, %cst_30 {dimension_numbers = #tpu.dot_dimension_numbers<[1], [0], [0], [1], [0, 0, 1, 1], [], []>} : vector<8x8xf32>, vector<8x8xf32>, vector<8x8xf32> -> vector<8x8xf32>
    %cst_31 = arith.constant -1.000000e+09 : f32
    %65 = vector.broadcast %cst_31 : f32 to vector<8x8xf32>
    %66 = arith.select %11, %64, %65 : vector<8x8xi1>, vector<8x8xf32>
    %cst_32 = arith.constant dense<0xFF800000> : vector<8xf32>
    %67 = vector.multi_reduction <maximumf>, %66, %cst_32 [1] : vector<8x8xf32> to vector<8xf32>
    %68 = vector.shape_cast %67 : vector<8xf32> to vector<8x1xf32>
    %69 = vector.broadcast %68 : vector<8x1xf32> to vector<8x8xf32>
    %70 = arith.subf %66, %69 : vector<8x8xf32>
    %71 = math.exp %70 : vector<8x8xf32>
    %cst_33 = arith.constant dense<0.000000e+00> : vector<8xf32>
    %72 = vector.multi_reduction <add>, %71, %cst_33 [1] : vector<8x8xf32> to vector<8xf32>
    %73 = vector.shape_cast %72 : vector<8xf32> to vector<8x1xf32>
    %74 = tpu.reciprocal %73 {approx = true} : vector<8x1xf32> -> vector<8x1xf32>
    %75 = vector.broadcast %74 : vector<8x1xf32> to vector<8x8xf32>
    %76 = arith.mulf %71, %75 : vector<8x8xf32>
    %cst_34 = arith.constant dense<0.000000e+00> : vector<8x8xf32>
    %77 = tpu.matmul %76, %62, %cst_34 {dimension_numbers = #tpu.dot_dimension_numbers<[1], [0], [0], [1], [0, 0, 1, 1], [], []>} : vector<8x8xf32>, vector<8x8xf32>, vector<8x8xf32> -> vector<8x8xf32>
    %c0_35 = arith.constant 0 : index
    %c0_36 = arith.constant 0 : index
    %c16 = arith.constant 16 : index
    %78 = vector.load %arg5[%c0_35, %c0_36, %c16] : memref<1x8x32xf32, #tpu.memory_space<vmem>>, vector<1x8x8xf32>
    %79 = vector.shape_cast %78 : vector<1x8x8xf32> to vector<8x8xf32>
    %80 = vector.shape_cast %77 : vector<8x8xf32> to vector<1x8x8xf32>
    tpu.vector_store %arg5[%c0_35, %c0_36, %c16], %80 {strides = array<i32>} : memref<1x8x32xf32, #tpu.memory_space<vmem>>, vector<1x8x8xf32>,
    %81 = vector.extract_strided_slice %1 {offsets = [0, 24], sizes = [8, 8], strides = [1, 1]} : vector<8x32xf32> to vector<8x8xf32>
    %cst_37 = arith.constant 0.353553385 : f32
    %82 = vector.broadcast %cst_37 : f32 to vector<8x8xf32>
    %83 = arith.mulf %81, %82 : vector<8x8xf32>
    %84 = vector.extract_strided_slice %3 {offsets = [0, 24], sizes = [8, 8], strides = [1, 1]} : vector<8x32xf32> to vector<8x8xf32>
    %85 = vector.extract_strided_slice %5 {offsets = [0, 24], sizes = [8, 8], strides = [1, 1]} : vector<8x32xf32> to vector<8x8xf32>
    %86 = tpu.transpose %84, [1, 0] : vector<8x8xf32> -> vector<8x8xf32>
    %cst_38 = arith.constant dense<0.000000e+00> : vector<8x8xf32>
    %87 = tpu.matmul %83, %86, %cst_38 {dimension_numbers = #tpu.dot_dimension_numbers<[1], [0], [0], [1], [0, 0, 1, 1], [], []>} : vector<8x8xf32>, vector<8x8xf32>, vector<8x8xf32> -> vector<8x8xf32>
    %cst_39 = arith.constant -1.000000e+09 : f32
    %88 = vector.broadcast %cst_39 : f32 to vector<8x8xf32>
    %89 = arith.select %11, %87, %88 : vector<8x8xi1>, vector<8x8xf32>
    %cst_40 = arith.constant dense<0xFF800000> : vector<8xf32>
    %90 = vector.multi_reduction <maximumf>, %89, %cst_40 [1] : vector<8x8xf32> to vector<8xf32>
    %91 = vector.shape_cast %90 : vector<8xf32> to vector<8x1xf32>
    %92 = vector.broadcast %91 : vector<8x1xf32> to vector<8x8xf32>
    %93 = arith.subf %89, %92 : vector<8x8xf32>
    %94 = math.exp %93 : vector<8x8xf32>
    %cst_41 = arith.constant dense<0.000000e+00> : vector<8xf32>
    %95 = vector.multi_reduction <add>, %94, %cst_41 [1] : vector<8x8xf32> to vector<8xf32>
    %96 = vector.shape_cast %95 : vector<8xf32> to vector<8x1xf32>
    %97 = tpu.reciprocal %96 {approx = true} : vector<8x1xf32> -> vector<8x1xf32>
    %98 = vector.broadcast %97 : vector<8x1xf32> to vector<8x8xf32>
    %99 = arith.mulf %94, %98 : vector<8x8xf32>
    %cst_42 = arith.constant dense<0.000000e+00> : vector<8x8xf32>
    %100 = tpu.matmul %99, %85, %cst_42 {dimension_numbers = #tpu.dot_dimension_numbers<[1], [0], [0], [1], [0, 0, 1, 1], [], []>} : vector<8x8xf32>, vector<8x8xf32>, vector<8x8xf32> -> vector<8x8xf32>
    %c0_43 = arith.constant 0 : index
    %c0_44 = arith.constant 0 : index
    %c24 = arith.constant 24 : index
    %101 = vector.load %arg5[%c0_43, %c0_44, %c24] : memref<1x8x32xf32, #tpu.memory_space<vmem>>, vector<1x8x8xf32>
    %102 = vector.shape_cast %101 : vector<1x8x8xf32> to vector<8x8xf32>
    %103 = vector.shape_cast %100 : vector<8x8xf32> to vector<1x8x8xf32>
    tpu.vector_store %arg5[%c0_43, %c0_44, %c24], %103 {strides = array<i32>} : memref<1x8x32xf32, #tpu.memory_space<vmem>>, vector<1x8x8xf32>,
    return
  }
  func.func @transform_0(%arg0: i32) -> (i32, i32, i32) {
    %c0_i32 = arith.constant 0 : i32
    %c0_i32_0 = arith.constant 0 : i32
    %c0_i32_1 = arith.constant 0 : i32
    return %arg0, %c0_i32, %c0_i32_0 : i32, i32, i32
  }
  func.func @transform_1(%arg0: i32) -> (i32, i32, i32) {
    %c0_i32 = arith.constant 0 : i32
    %c0_i32_0 = arith.constant 0 : i32
    %c0_i32_1 = arith.constant 0 : i32
    return %arg0, %c0_i32, %c0_i32_0 : i32, i32, i32
  }
  func.func @transform_2(%arg0: i32) -> (i32, i32, i32) {
    %c0_i32 = arith.constant 0 : i32
    %c0_i32_0 = arith.constant 0 : i32
    %c0_i32_1 = arith.constant 0 : i32
    return %arg0, %c0_i32, %c0_i32_0 : i32, i32, i32
  }
  func.func @transform_3(%arg0: i32) -> (i32, i32, i32, i32) {
    %c0_i32 = arith.constant 0 : i32
    %c0_i32_0 = arith.constant 0 : i32
    %c0_i32_1 = arith.constant 0 : i32
    %c0_i32_2 = arith.constant 0 : i32
    return %arg0, %c0_i32, %c0_i32_0, %c0_i32_1 : i32, i32, i32, i32
  }
  func.func @transform_4(%arg0: i32) -> (i32, i32, i32) {
    %c0_i32 = arith.constant 0 : i32
    %c0_i32_0 = arith.constant 0 : i32
    %c0_i32_1 = arith.constant 0 : i32
    return %arg0, %c0_i32, %c0_i32_0 : i32, i32, i32
  }
}

</mosaic_0001>

<llo_original>
// kernel: decoder_forward.19
$region0: #{decoder_forward.19}
  #allocation0 [shape = 'u32[]', space=smem, size = 0x4, offset = 0x4, fixed_abs, tag = 'smem constant byte address 0x4 - core index']
  #allocation1 [shape = 'u32[144,128]{1,0:T(1,128)}', space=vmem, size = 0x12000, scoped, tag = 'internal scratch']
  %s0 = inlined_call_operand.vmem [shape: f32[16,32], index: 0, kind: input, shape index: {}]
  %s1 = inlined_call_operand.vmem [shape: f32[32,32], index: 1, kind: input, shape index: {}]
  %s2 = inlined_call_operand.vmem [shape: f32[1,32], index: 2, kind: input, shape index: {}]
  %s3 = inlined_call_operand.vmem [shape: f32[16,32], index: 3, kind: input, shape index: {}]
  %s4 = inlined_call_operand.vmem [shape: f32[16,32], index: 4, kind: output, shape index: {}]
  %s5 = sld [smem:[#allocation0]]
  $region26: #{decoder_forward.19} parent=0
    _
  %s7 = ssub.s32 1, %s5
  %s8 = scalar_select 0, %s7, %s5
  // Predicated region
  $region2: #{decoder_forward.19} parent=0 // pred_check
    _
  $region3: #{decoder_forward.19} parent=0 // pred_check_branch
    %10 = sbr.rel (0) target = $region5
  $region4: #{decoder_forward.19} parent=0 // pred_region
    _
  $region5: #{decoder_forward.19} parent=0 // pred_fallthru
    _
  // Predicated region
  $region6: #{decoder_forward.19} parent=0 // pred_check
    _
  $region7: #{decoder_forward.19} parent=0 // pred_check_branch
    %12 = sbr.rel (0) target = $region9
  $region8: #{decoder_forward.19} parent=0 // pred_region
    _
  $region9: #{decoder_forward.19} parent=0 // pred_fallthru
    _
  // Predicated region
  $region10: #{decoder_forward.19} parent=0 // pred_check
    _
  $region11: #{decoder_forward.19} parent=0 // pred_check_branch
    %14 = sbr.rel (0) target = $region13
  $region12: #{decoder_forward.19} parent=0 // pred_region
    _
  $region13: #{decoder_forward.19} parent=0 // pred_fallthru
    _
  // Predicated region
  $region14: #{decoder_forward.19} parent=0 // pred_check
    _
  $region15: #{decoder_forward.19} parent=0 // pred_check_branch
    %16 = sbr.rel (0) target = $region17
  $region16: #{decoder_forward.19} parent=0 // pred_region
    _
  $region17: #{decoder_forward.19} parent=0 // pred_fallthru
    _
  %v17 = vld [vmem:[%s0] sm:$0xff]
  %v18 = vld [vmem:[%s0 + $0x8] sm:$0xff]
  %v19 = vld [vmem:[%s1] sm:$0xff]
  %v20 = vld [vmem:[%s1 + $0x8] sm:$0xff]
  %v21 = vld [vmem:[%s1 + $0x10] sm:$0xff]
  %v22 = vld [vmem:[%s1 + $0x18] sm:$0xff]
  %v23 = vld [vmem:[%s2] sm:$0x1]
  %v25 = vlaneseq
  %v26 = vshrl.u32 %v25, 7
  %v27 = vsub.s32 0, %v26
  %v28 = vrot.slane %v23, %v27
  %vm30 = vcmask 261120
  %v32 = vsel %vm30, %v17, 0
  %v35 = vsel %vm30, %v18, 0
  %37 = vmatprep.subr.mxu0 0.0
  %38 = vmatpush1.msra.mxu0 %v19
  %39 = vmatprep.subr.mxu0 0.0
  %40 = vmatpush1.msra.mxu0 %v20
  %41 = vmatprep.subr.mxu0 0.0
  %42 = vmatpush1.msra.mxu0 %v21
  %43 = vmatprep.subr.mxu0 0.0
  %44 = vmatpush1.msra.mxu0 %v22
  %45 = vmatprep.subr.mxu0 0.0
  %46 = vmatpush1.msra.mxu0 0.0
  %47 = vmatprep.subr.mxu0 0.0
  %48 = vmatpush1.msra.mxu0 0.0
  %49 = vmatprep.subr.mxu0 0.0
  %50 = vmatpush1.msra.mxu0 0.0
  %51 = vmatprep.subr.mxu0 0.0
  %52 = vmatpush1.msra.mxu0 0.0
  %53 = vmatprep.subr.mxu0 0.0
  %54 = vmatpush1.msra.mxu0 0.0
  %55 = vmatprep.subr.mxu0 0.0
  %56 = vmatpush1.msra.mxu0 0.0
  %57 = vmatprep.subr.mxu0 0.0
  %58 = vmatpush1.msra.mxu0 0.0
  %59 = vmatprep.subr.mxu0 0.0
  %60 = vmatpush1.msra.mxu0 0.0
  %61 = vmatprep.subr.mxu0 0.0
  %62 = vmatpush1.msra.mxu0 0.0
  %63 = vmatprep.subr.mxu0 0.0
  %64 = vmatpush1.msra.mxu0 0.0
  %65 = vmatprep.subr.mxu0 0.0
  %66 = vmatpush1.msra.mxu0 0.0
  %67 = vmatprep.subr.mxu0 0.0
  %68 = vmatpush1.msra.mxu0 0.0
  %69 = vmatprep.subr.mxu0 0.0
  %70 = vmatpush1.msra.mxu0 0.0
  %71 = vmatprep.subr.mxu0 0.0
  %72 = vmatpush1.msra.mxu0 0.0
  %73 = vmatprep.subr.mxu0 0.0
  %74 = vmatpush1.msra.mxu0 0.0
  %75 = vmatprep.subr.mxu0 0.0
  %76 = vmatpush1.msra.mxu0 0.0
  %77 = vmatprep.subr.mxu0 0.0
  %78 = vmatpush1.msra.mxu0 0.0
  %79 = vmatprep.subr.mxu0 0.0
  %80 = vmatpush1.msra.mxu0 0.0
  %81 = vmatprep.subr.mxu0 0.0
  %82 = vmatpush1.msra.mxu0 0.0
  %83 = vmatprep.subr.mxu0 0.0
  %84 = vmatpush1.msra.mxu0 0.0
  %85 = vmatprep.subr.mxu0 0.0
  %86 = vmatpush1.msra.mxu0 0.0
  %87 = vmatprep.subr.mxu0 0.0
  %88 = vmatpush1.msra.mxu0 0.0
  %89 = vmatprep.subr.mxu0 0.0
  %90 = vmatpush1.msra.mxu0 0.0
  %91 = vmatprep.subr.mxu0 0.0
  %92 = vmatpush1.msra.mxu0 0.0
  %93 = vmatprep.subr.mxu0 0.0
  %94 = vmatpush1.msra.mxu0 0.0
  %95 = vmatprep.subr.mxu0 0.0
  %96 = vmatpush1.msra.mxu0 0.0
  %97 = vmatprep.subr.mxu0 0.0
  %98 = vmatpush1.msra.mxu0 0.0
  %99 = vmatprep.subr.mxu0 0.0
  %100 = vmatpush1.msra.mxu0 0.0
  %101 = vmatprep.mubr.f32.mxu0 0.0
  %102 = vmatmul.mubr.f32.gmra.mrb[0].mxu0 %v32
  %v103 = vpop.f32.mrb[0].mxu0
  %v104 = vadd.f32 %v28, %v103
  %v105 = vpop.f32.mrb[0].mxu0
  %106 = vmatprep.mubr.f32.mxu0 0.0
  %107 = vmatmul.mubr.f32.gmra.mrb[0].mxu0 %v35
  %v108 = vpop.f32.mrb[0].mxu0
  %v109 = vadd.f32 %v28, %v108
  %v110 = vpop.f32.mrb[0].mxu0
  %111 = vdwg.mxu0
  %v112 = vld [vmem:[%s3] sm:$0xff]
  %v113 = vld [vmem:[%s3 + $0x8] sm:$0xff]
  %v114 = vadd.f32 %v104, %v112
  %v115 = vadd.f32 %v109, %v113
  %116 = vst.msk [vmem:[%s4] sm:$0xff] %vm30, %v114
  %117 = vst.msk [vmem:[%s4 + $0x8] sm:$0xff] %vm30, %v115
  // Predicated region
  $region18: #{decoder_forward.19} parent=0 // pred_check
    _
  $region19: #{decoder_forward.19} parent=0 // pred_check_branch
    %119 = sbr.rel (0) target = $region21
  $region20: #{decoder_forward.19} parent=0 // pred_region
    _
  $region21: #{decoder_forward.19} parent=0 // pred_fallthru
    _
  // Predicated region
  $region22: #{decoder_forward.19} parent=0 // pred_check
    _
  $region23: #{decoder_forward.19} parent=0 // pred_check_branch
    %121 = sbr.rel (0) target = $region25
  $region24: #{decoder_forward.19} parent=0 // pred_region
    _
  $region25: #{decoder_forward.19} parent=0 // pred_fallthru
    _

// kernel: decoder_forward.17
$region0: #{decoder_forward.17}
  #allocation0 [shape = 'u32[]', space=smem, size = 0x4, offset = 0x4, fixed_abs, tag = 'smem constant byte address 0x4 - core index']
  #allocation1 [shape = 'u32[144,128]{1,0:T(1,128)}', space=vmem, size = 0x12000, scoped, tag = 'internal scratch']
  %s0 = inlined_call_operand.vmem [shape: f32[16,32], index: 0, kind: input, shape index: {}]
  %s1 = inlined_call_operand.vmem [shape: f32[1,32], index: 1, kind: input, shape index: {}]
  %s2 = inlined_call_operand.vmem [shape: f32[1,32], index: 2, kind: input, shape index: {}]
  %s3 = inlined_call_operand.vmem [shape: f32[32,32], index: 3, kind: input, shape index: {}]
  %s4 = inlined_call_operand.vmem [shape: f32[1,32], index: 4, kind: input, shape index: {}]
  %s5 = inlined_call_operand.vmem [shape: f32[32,32], index: 5, kind: input, shape index: {}]
  %s6 = inlined_call_operand.vmem [shape: f32[1,32], index: 6, kind: input, shape index: {}]
  %s7 = inlined_call_operand.vmem [shape: f32[32,32], index: 7, kind: input, shape index: {}]
  %s8 = inlined_call_operand.vmem [shape: f32[1,32], index: 8, kind: input, shape index: {}]
  %s9 = inlined_call_operand.vmem [shape: f32[16,32], index: 9, kind: output, shape index: {0}]
  %s10 = inlined_call_operand.vmem [shape: f32[16,32], index: 10, kind: output, shape index: {1}]
  %s11 = inlined_call_operand.vmem [shape: f32[16,32], index: 11, kind: output, shape index: {2}]
  %12 = xla_tuple %s9, %s10, %s11
  %s13 = sld [smem:[#allocation0]]
  $region62: #{decoder_forward.17} parent=0
    _
  %s15 = ssub.s32 1, %s13
  %s16 = scalar_select 0, %s15, %s13
  // Predicated region
  $region2: #{decoder_forward.17} parent=0 // pred_check
    _
  $region3: #{decoder_forward.17} parent=0 // pred_check_branch
    %18 = sbr.rel (0) target = $region5
  $region4: #{decoder_forward.17} parent=0 // pred_region
    _
  $region5: #{decoder_forward.17} parent=0 // pred_fallthru
    _
  // Predicated region
  $region6: #{decoder_forward.17} parent=0 // pred_check
    _
  $region7: #{decoder_forward.17} parent=0 // pred_check_branch
    %20 = sbr.rel (0) target = $region9
  $region8: #{decoder_forward.17} parent=0 // pred_region
    _
  $region9: #{decoder_forward.17} parent=0 // pred_fallthru
    _
  // Predicated region
  $region10: #{decoder_forward.17} parent=0 // pred_check
    _
  $region11: #{decoder_forward.17} parent=0 // pred_check_branch
    %22 = sbr.rel (0) target = $region13
  $region12: #{decoder_forward.17} parent=0 // pred_region
    _
  $region13: #{decoder_forward.17} parent=0 // pred_fallthru
    _
  // Predicated region
  $region14: #{decoder_forward.17} parent=0 // pred_check
    _
  $region15: #{decoder_forward.17} parent=0 // pred_check_branch
    %24 = sbr.rel (0) target = $region17
  $region16: #{decoder_forward.17} parent=0 // pred_region
    _
  $region17: #{decoder_forward.17} parent=0 // pred_fallthru
    _
  // Predicated region
  $region18: #{decoder_forward.17} parent=0 // pred_check
    _
  $region19: #{decoder_forward.17} parent=0 // pred_check_branch
    %26 = sbr.rel (0) target = $region21
  $region20: #{decoder_forward.17} parent=0 // pred_region
    _
  $region21: #{decoder_forward.17} parent=0 // pred_fallthru
    _
  // Predicated region
  $region22: #{decoder_forward.17} parent=0 // pred_check
    _
  $region23: #{decoder_forward.17} parent=0 // pred_check_branch
    %28 = sbr.rel (0) target = $region25
  $region24: #{decoder_forward.17} parent=0 // pred_region
    _
  $region25: #{decoder_forward.17} parent=0 // pred_fallthru
    _
  // Predicated region
  $region26: #{decoder_forward.17} parent=0 // pred_check
    _
  $region27: #{decoder_forward.17} parent=0 // pred_check_branch
    %30 = sbr.rel (0) target = $region29
  $region28: #{decoder_forward.17} parent=0 // pred_region
    _
  $region29: #{decoder_forward.17} parent=0 // pred_fallthru
    _
  // Predicated region
  $region30: #{decoder_forward.17} parent=0 // pred_check
    _
  $region31: #{decoder_forward.17} parent=0 // pred_check_branch
    %32 = sbr.rel (0) target = $region33
  $region32: #{decoder_forward.17} parent=0 // pred_region
    _
  $region33: #{decoder_forward.17} parent=0 // pred_fallthru
    _
  // Predicated region
  $region34: #{decoder_forward.17} parent=0 // pred_check
    _
  $region35: #{decoder_forward.17} parent=0 // pred_check_branch
    %34 = sbr.rel (0) target = $region37
  $region36: #{decoder_forward.17} parent=0 // pred_region
    _
  $region37: #{decoder_forward.17} parent=0 // pred_fallthru
    _
  %v35 = vld [vmem:[%s0] sm:$0xff]
  %v36 = vld [vmem:[%s0 + $0x8] sm:$0xff]
  %v37 = vld [vmem:[%s1] sm:$0x1]
  %v38 = vld [vmem:[%s2] sm:$0x1]
  %vm39 = vcmask 261120
  %v40 = vsel %vm39, %v35, 0.0
  %41 = vadd.xlane.f32.xlu0 %v40
  %v42 = vpop.xlane.xlu0 %41
  %v43 = vsel %vm39, %v36, 0.0
  %44 = vadd.xlane.f32.xlu0 %v43
  %v45 = vpop.xlane.xlu0 %44
  %v46 = vrcp.pop 32.0
  %v47 = vmul.f32 %v42, %v46
  %v48 = vmul.f32 %v45, %v46
  %v49 = vsub.f32 %v35, %v47
  %v50 = vsub.f32 %v36, %v48
  %v51 = vmul.f32 %v49, %v49
  %v52 = vmul.f32 %v50, %v50
  %v53 = vsel %vm39, %v51, 0.0
  %54 = vadd.xlane.f32.xlu0 %v53
  %v55 = vpop.xlane.xlu0 %54
  %v56 = vsel %vm39, %v52, 0.0
  %57 = vadd.xlane.f32.xlu0 %v56
  %v58 = vpop.xlane.xlu0 %57
  %v59 = vrcp.pop 31.0
  %v60 = vmul.f32 %v55, %v59
  %v61 = vmul.f32 %v58, %v59
  %v62 = vrsqrt.pop %v60
  %v63 = vmul.f32 %v60, %v62
  %vm64 = vcmp.eq.f32.partialorder %v60, inf
  %v65 = vsel %vm64, %v60, %v63
  %vm66 = vcmp.eq.f32.partialorder %v60, 0.0
  %v67 = vand.u32 %v60, 2147483648
  %v68 = vsel %vm66, %v67, %v65
  %v69 = vrsqrt.pop %v61
  %v70 = vmul.f32 %v61, %v69
  %vm71 = vcmp.eq.f32.partialorder %v61, inf
  %v72 = vsel %vm71, %v61, %v70
  %vm73 = vcmp.eq.f32.partialorder %v61, 0.0
  %v74 = vand.u32 %v61, 2147483648
  %v75 = vsel %vm73, %v74, %v72
  %v76 = vadd.f32 %v68, 1e-06
  %v77 = vadd.f32 %v75, 1e-06
  %v78 = vrcp.pop %v76
  %v79 = vrcp.pop %v77
  %v81 = vlaneseq
  %v82 = vshrl.u32 %v81, 7
  %v83 = vsub.s32 0, %v82
  %v84 = vrot.slane %v37, %v83
  %v86 = vmul.f32 %v84, %v49
  %v87 = vmul.f32 %v84, %v50
  %v88 = vmul.f32 %v86, %v78
  %v89 = vmul.f32 %v87, %v79
  %v91 = vlaneseq
  %v92 = vshrl.u32 %v91, 7
  %v93 = vsub.s32 0, %v92
  %v94 = vrot.slane %v38, %v93
  %v96 = vadd.f32 %v88, %v94
  %v97 = vadd.f32 %v89, %v94
  %v98 = vld [vmem:[%s3] sm:$0xff]
  %v99 = vld [vmem:[%s3 + $0x8] sm:$0xff]
  %v100 = vld [vmem:[%s3 + $0x10] sm:$0xff]
  %v101 = vld [vmem:[%s3 + $0x18] sm:$0xff]
  %v102 = vld [vmem:[%s4] sm:$0x1]
  %v104 = vlaneseq
  %v105 = vshrl.u32 %v104, 7
  %v106 = vsub.s32 0, %v105
  %v107 = vrot.slane %v102, %v106
  %v110 = vsel %vm39, %v96, 0
  %v113 = vsel %vm39, %v97, 0
  %115 = vmatprep.subr.mxu0 0.0
  %116 = vmatpush1.msra.mxu0 %v98
  %117 = vmatprep.subr.mxu0 0.0
  %118 = vmatpush1.msra.mxu0 %v99
  %119 = vmatprep.subr.mxu0 0.0
  %120 = vmatpush1.msra.mxu0 %v100
  %121 = vmatprep.subr.mxu0 0.0
  %122 = vmatpush1.msra.mxu0 %v101
  %123 = vmatprep.subr.mxu0 0.0
  %124 = vmatpush1.msra.mxu0 0.0
  %125 = vmatprep.subr.mxu0 0.0
  %126 = vmatpush1.msra.mxu0 0.0
  %127 = vmatprep.subr.mxu0 0.0
  %128 = vmatpush1.msra.mxu0 0.0
  %129 = vmatprep.subr.mxu0 0.0
  %130 = vmatpush1.msra.mxu0 0.0
  %131 = vmatprep.subr.mxu0 0.0
  %132 = vmatpush1.msra.mxu0 0.0
  %133 = vmatprep.subr.mxu0 0.0
  %134 = vmatpush1.msra.mxu0 0.0
  %135 = vmatprep.subr.mxu0 0.0
  %136 = vmatpush1.msra.mxu0 0.0
  %137 = vmatprep.subr.mxu0 0.0
  %138 = vmatpush1.msra.mxu0 0.0
  %139 = vmatprep.subr.mxu0 0.0
  %140 = vmatpush1.msra.mxu0 0.0
  %141 = vmatprep.subr.mxu0 0.0
  %142 = vmatpush1.msra.mxu0 0.0
  %143 = vmatprep.subr.mxu0 0.0
  %144 = vmatpush1.msra.mxu0 0.0
  %145 = vmatprep.subr.mxu0 0.0
  %146 = vmatpush1.msra.mxu0 0.0
  %147 = vmatprep.subr.mxu0 0.0
  %148 = vmatpush1.msra.mxu0 0.0
  %149 = vmatprep.subr.mxu0 0.0
  %150 = vmatpush1.msra.mxu0 0.0
  %151 = vmatprep.subr.mxu0 0.0
  %152 = vmatpush1.msra.mxu0 0.0
  %153 = vmatprep.subr.mxu0 0.0
  %154 = vmatpush1.msra.mxu0 0.0
  %155 = vmatprep.subr.mxu0 0.0
  %156 = vmatpush1.msra.mxu0 0.0
  %157 = vmatprep.subr.mxu0 0.0
  %158 = vmatpush1.msra.mxu0 0.0
  %159 = vmatprep.subr.mxu0 0.0
  %160 = vmatpush1.msra.mxu0 0.0
  %161 = vmatprep.subr.mxu0 0.0
  %162 = vmatpush1.msra.mxu0 0.0
  %163 = vmatprep.subr.mxu0 0.0
  %164 = vmatpush1.msra.mxu0 0.0
  %165 = vmatprep.subr.mxu0 0.0
  %166 = vmatpush1.msra.mxu0 0.0
  %167 = vmatprep.subr.mxu0 0.0
  %168 = vmatpush1.msra.mxu0 0.0
  %169 = vmatprep.subr.mxu0 0.0
  %170 = vmatpush1.msra.mxu0 0.0
  %171 = vmatprep.subr.mxu0 0.0
  %172 = vmatpush1.msra.mxu0 0.0
  %173 = vmatprep.subr.mxu0 0.0
  %174 = vmatpush1.msra.mxu0 0.0
  %175 = vmatprep.subr.mxu0 0.0
  %176 = vmatpush1.msra.mxu0 0.0
  %177 = vmatprep.subr.mxu0 0.0
  %178 = vmatpush1.msra.mxu0 0.0
  %179 = vmatprep.mubr.f32.mxu0 0.0
  %180 = vmatmul.mubr.f32.gmra.mrb[0].mxu0 %v110
  %v181 = vpop.f32.mrb[0].mxu0
  %v182 = vadd.f32 %v107, %v181
  %v183 = vpop.f32.mrb[0].mxu0
  %184 = vmatprep.mubr.f32.mxu0 0.0
  %185 = vmatmul.mubr.f32.gmra.mrb[0].mxu0 %v113
  %v186 = vpop.f32.mrb[0].mxu0
  %v187 = vadd.f32 %v107, %v186
  %v188 = vpop.f32.mrb[0].mxu0
  %189 = vdwg.mxu0
  %190 = vst.msk [vmem:[%s9] sm:$0xff] %vm39, %v182
  %191 = vst.msk [vmem:[%s9 + $0x8] sm:$0xff] %vm39, %v187
  %v192 = vld [vmem:[%s5] sm:$0xff]
  %v193 = vld [vmem:[%s5 + $0x8] sm:$0xff]
  %v194 = vld [vmem:[%s5 + $0x10] sm:$0xff]
  %v195 = vld [vmem:[%s5 + $0x18] sm:$0xff]
  %v196 = vld [vmem:[%s6] sm:$0x1]
  %v198 = vlaneseq
  %v199 = vshrl.u32 %v198, 7
  %v200 = vsub.s32 0, %v199
  %v201 = vrot.slane %v196, %v200
  %203 = vmatprep.subr.mxu0 0.0
  %204 = vmatpush1.msra.mxu0 %v192
  %205 = vmatprep.subr.mxu0 0.0
  %206 = vmatpush1.msra.mxu0 %v193
  %207 = vmatprep.subr.mxu0 0.0
  %208 = vmatpush1.msra.mxu0 %v194
  %209 = vmatprep.subr.mxu0 0.0
  %210 = vmatpush1.msra.mxu0 %v195
  %211 = vmatprep.subr.mxu0 0.0
  %212 = vmatpush1.msra.mxu0 0.0
  %213 = vmatprep.subr.mxu0 0.0
  %214 = vmatpush1.msra.mxu0 0.0
  %215 = vmatprep.subr.mxu0 0.0
  %216 = vmatpush1.msra.mxu0 0.0
  %217 = vmatprep.subr.mxu0 0.0
  %218 = vmatpush1.msra.mxu0 0.0
  %219 = vmatprep.subr.mxu0 0.0
  %220 = vmatpush1.msra.mxu0 0.0
  %221 = vmatprep.subr.mxu0 0.0
  %222 = vmatpush1.msra.mxu0 0.0
  %223 = vmatprep.subr.mxu0 0.0
  %224 = vmatpush1.msra.mxu0 0.0
  %225 = vmatprep.subr.mxu0 0.0
  %226 = vmatpush1.msra.mxu0 0.0
  %227 = vmatprep.subr.mxu0 0.0
  %228 = vmatpush1.msra.mxu0 0.0
  %229 = vmatprep.subr.mxu0 0.0
  %230 = vmatpush1.msra.mxu0 0.0
  %231 = vmatprep.subr.mxu0 0.0
  %232 = vmatpush1.msra.mxu0 0.0
  %233 = vmatprep.subr.mxu0 0.0
  %234 = vmatpush1.msra.mxu0 0.0
  %235 = vmatprep.subr.mxu0 0.0
  %236 = vmatpush1.msra.mxu0 0.0
  %237 = vmatprep.subr.mxu0 0.0
  %238 = vmatpush1.msra.mxu0 0.0
  %239 = vmatprep.subr.mxu0 0.0
  %240 = vmatpush1.msra.mxu0 0.0
  %241 = vmatprep.subr.mxu0 0.0
  %242 = vmatpush1.msra.mxu0 0.0
  %243 = vmatprep.subr.mxu0 0.0
  %244 = vmatpush1.msra.mxu0 0.0
  %245 = vmatprep.subr.mxu0 0.0
  %246 = vmatpush1.msra.mxu0 0.0
  %247 = vmatprep.subr.mxu0 0.0
  %248 = vmatpush1.msra.mxu0 0.0
  %249 = vmatprep.subr.mxu0 0.0
  %250 = vmatpush1.msra.mxu0 0.0
  %251 = vmatprep.subr.mxu0 0.0
  %252 = vmatpush1.msra.mxu0 0.0
  %253 = vmatprep.subr.mxu0 0.0
  %254 = vmatpush1.msra.mxu0 0.0
  %255 = vmatprep.subr.mxu0 0.0
  %256 = vmatpush1.msra.mxu0 0.0
  %257 = vmatprep.subr.mxu0 0.0
  %258 = vmatpush1.msra.mxu0 0.0
  %259 = vmatprep.subr.mxu0 0.0
  %260 = vmatpush1.msra.mxu0 0.0
  %261 = vmatprep.subr.mxu0 0.0
  %262 = vmatpush1.msra.mxu0 0.0
  %263 = vmatprep.subr.mxu0 0.0
  %264 = vmatpush1.msra.mxu0 0.0
  %265 = vmatprep.subr.mxu0 0.0
  %266 = vmatpush1.msra.mxu0 0.0
  %267 = vmatprep.mubr.f32.mxu0 0.0
  %268 = vmatmul.mubr.f32.gmra.mrb[0].mxu0 %v110
  %v269 = vpop.f32.mrb[0].mxu0
  %v270 = vadd.f32 %v201, %v269
  %v271 = vpop.f32.mrb[0].mxu0
  %272 = vmatprep.mubr.f32.mxu0 0.0
  %273 = vmatmul.mubr.f32.gmra.mrb[0].mxu0 %v113
  %v274 = vpop.f32.mrb[0].mxu0
  %v275 = vadd.f32 %v201, %v274
  %v276 = vpop.f32.mrb[0].mxu0
  %277 = vdwg.mxu0
  %278 = vst.msk [vmem:[%s10] sm:$0xff] %vm39, %v270
  %279 = vst.msk [vmem:[%s10 + $0x8] sm:$0xff] %vm39, %v275
  %v280 = vld [vmem:[%s7] sm:$0xff]
  %v281 = vld [vmem:[%s7 + $0x8] sm:$0xff]
  %v282 = vld [vmem:[%s7 + $0x10] sm:$0xff]
  %v283 = vld [vmem:[%s7 + $0x18] sm:$0xff]
  %v284 = vld [vmem:[%s8] sm:$0x1]
  %v286 = vlaneseq
  %v287 = vshrl.u32 %v286, 7
  %v288 = vsub.s32 0, %v287
  %v289 = vrot.slane %v284, %v288
  %291 = vmatprep.subr.mxu0 0.0
  %292 = vmatpush1.msra.mxu0 %v280
  %293 = vmatprep.subr.mxu0 0.0
  %294 = vmatpush1.msra.mxu0 %v281
  %295 = vmatprep.subr.mxu0 0.0
  %296 = vmatpush1.msra.mxu0 %v282
  %297 = vmatprep.subr.mxu0 0.0
  %298 = vmatpush1.msra.mxu0 %v283
  %299 = vmatprep.subr.mxu0 0.0
  %300 = vmatpush1.msra.mxu0 0.0
  %301 = vmatprep.subr.mxu0 0.0
  %302 = vmatpush1.msra.mxu0 0.0
  %303 = vmatprep.subr.mxu0 0.0
  %304 = vmatpush1.msra.mxu0 0.0
  %305 = vmatprep.subr.mxu0 0.0
  %306 = vmatpush1.msra.mxu0 0.0
  %307 = vmatprep.subr.mxu0 0.0
  %308 = vmatpush1.msra.mxu0 0.0
  %309 = vmatprep.subr.mxu0 0.0
  %310 = vmatpush1.msra.mxu0 0.0
  %311 = vmatprep.subr.mxu0 0.0
  %312 = vmatpush1.msra.mxu0 0.0
  %313 = vmatprep.subr.mxu0 0.0
  %314 = vmatpush1.msra.mxu0 0.0
  %315 = vmatprep.subr.mxu0 0.0
  %316 = vmatpush1.msra.mxu0 0.0
  %317 = vmatprep.subr.mxu0 0.0
  %318 = vmatpush1.msra.mxu0 0.0
  %319 = vmatprep.subr.mxu0 0.0
  %320 = vmatpush1.msra.mxu0 0.0
  %321 = vmatprep.subr.mxu0 0.0
  %322 = vmatpush1.msra.mxu0 0.0
  %323 = vmatprep.subr.mxu0 0.0
  %324 = vmatpush1.msra.mxu0 0.0
  %325 = vmatprep.subr.mxu0 0.0
  %326 = vmatpush1.msra.mxu0 0.0
  %327 = vmatprep.subr.mxu0 0.0
  %328 = vmatpush1.msra.mxu0 0.0
  %329 = vmatprep.subr.mxu0 0.0
  %330 = vmatpush1.msra.mxu0 0.0
  %331 = vmatprep.subr.mxu0 0.0
  %332 = vmatpush1.msra.mxu0 0.0
  %333 = vmatprep.subr.mxu0 0.0
  %334 = vmatpush1.msra.mxu0 0.0
  %335 = vmatprep.subr.mxu0 0.0
  %336 = vmatpush1.msra.mxu0 0.0
  %337 = vmatprep.subr.mxu0 0.0
  %338 = vmatpush1.msra.mxu0 0.0
  %339 = vmatprep.subr.mxu0 0.0
  %340 = vmatpush1.msra.mxu0 0.0
  %341 = vmatprep.subr.mxu0 0.0
  %342 = vmatpush1.msra.mxu0 0.0
  %343 = vmatprep.subr.mxu0 0.0
  %344 = vmatpush1.msra.mxu0 0.0
  %345 = vmatprep.subr.mxu0 0.0
  %346 = vmatpush1.msra.mxu0 0.0
  %347 = vmatprep.subr.mxu0 0.0
  %348 = vmatpush1.msra.mxu0 0.0
  %349 = vmatprep.subr.mxu0 0.0
  %350 = vmatpush1.msra.mxu0 0.0
  %351 = vmatprep.subr.mxu0 0.0
  %352 = vmatpush1.msra.mxu0 0.0
  %353 = vmatprep.subr.mxu0 0.0
  %354 = vmatpush1.msra.mxu0 0.0
  %355 = vmatprep.mubr.f32.mxu0 0.0
  %356 = vmatmul.mubr.f32.gmra.mrb[0].mxu0 %v110
  %v357 = vpop.f32.mrb[0].mxu0
  %v358 = vadd.f32 %v289, %v357
  %v359 = vpop.f32.mrb[0].mxu0
  %360 = vmatprep.mubr.f32.mxu0 0.0
  %361 = vmatmul.mubr.f32.gmra.mrb[0].mxu0 %v113
  %v362 = vpop.f32.mrb[0].mxu0
  %v363 = vadd.f32 %v289, %v362
  %v364 = vpop.f32.mrb[0].mxu0
  %365 = vdwg.mxu0
  %366 = vst.msk [vmem:[%s11] sm:$0xff] %vm39, %v358
  %367 = vst.msk [vmem:[%s11 + $0x8] sm:$0xff] %vm39, %v363
  // Predicated region
  $region38: #{decoder_forward.17} parent=0 // pred_check
    _
  $region39: #{decoder_forward.17} parent=0 // pred_check_branch
    %369 = sbr.rel (0) target = $region41
  $region40: #{decoder_forward.17} parent=0 // pred_region
    _
  $region41: #{decoder_forward.17} parent=0 // pred_fallthru
    _
  // Predicated region
  $region42: #{decoder_forward.17} parent=0 // pred_check
    _
  $region43: #{decoder_forward.17} parent=0 // pred_check_branch
    %371 = sbr.rel (0) target = $region45
  $region44: #{decoder_forward.17} parent=0 // pred_region
    _
  $region45: #{decoder_forward.17} parent=0 // pred_fallthru
    _
  // Predicated region
  $region46: #{decoder_forward.17} parent=0 // pred_check
    _
  $region47: #{decoder_forward.17} parent=0 // pred_check_branch
    %373 = sbr.rel (0) target = $region49
  $region48: #{decoder_forward.17} parent=0 // pred_region
    _
  $region49: #{decoder_forward.17} parent=0 // pred_fallthru
    _
  // Predicated region
  $region50: #{decoder_forward.17} parent=0 // pred_check
    _
  $region51: #{decoder_forward.17} parent=0 // pred_check_branch
    %375 = sbr.rel (0) target = $region53
  $region52: #{decoder_forward.17} parent=0 // pred_region
    _
  $region53: #{decoder_forward.17} parent=0 // pred_fallthru
    _
  // Predicated region
  $region54: #{decoder_forward.17} parent=0 // pred_check
    _
  $region55: #{decoder_forward.17} parent=0 // pred_check_branch
    %377 = sbr.rel (0) target = $region57
  $region56: #{decoder_forward.17} parent=0 // pred_region
    _
  $region57: #{decoder_forward.17} parent=0 // pred_fallthru
    _
  // Predicated region
  $region58: #{decoder_forward.17} parent=0 // pred_check
    _
  $region59: #{decoder_forward.17} parent=0 // pred_check_branch
    %379 = sbr.rel (0) target = $region61
  $region60: #{decoder_forward.17} parent=0 // pred_region
    _
  $region61: #{decoder_forward.17} parent=0 // pred_fallthru
    _

// kernel: decoder_forward.20
$region0: #{decoder_forward.20}
  #allocation0 [shape = 'u32[]', space=smem, size = 0x4, offset = 0x4, fixed_abs, tag = 'smem constant byte address 0x4 - core index']
  #allocation1 [shape = 'u32[144,128]{1,0:T(1,128)}', space=vmem, size = 0x12000, scoped, tag = 'internal scratch']
  %s0 = inlined_call_operand.vmem [shape: f32[16,32], index: 0, kind: input, shape index: {}]
  %s1 = inlined_call_operand.vmem [shape: f32[1,32], index: 1, kind: input, shape index: {}]
  %s2 = inlined_call_operand.vmem [shape: f32[1,32], index: 2, kind: input, shape index: {}]
  %s3 = inlined_call_operand.vmem [shape: f32[32,32], index: 3, kind: input, shape index: {}]
  %s4 = inlined_call_operand.vmem [shape: f32[1,32], index: 4, kind: input, shape index: {}]
  %s5 = inlined_call_operand.vmem [shape: f32[16,32], index: 5, kind: output, shape index: {}]
  %s6 = sld [smem:[#allocation0]]
  $region30: #{decoder_forward.20} parent=0
    _
  %s8 = ssub.s32 1, %s6
  %s9 = scalar_select 0, %s8, %s6
  // Predicated region
  $region2: #{decoder_forward.20} parent=0 // pred_check
    _
  $region3: #{decoder_forward.20} parent=0 // pred_check_branch
    %11 = sbr.rel (0) target = $region5
  $region4: #{decoder_forward.20} parent=0 // pred_region
    _
  $region5: #{decoder_forward.20} parent=0 // pred_fallthru
    _
  // Predicated region
  $region6: #{decoder_forward.20} parent=0 // pred_check
    _
  $region7: #{decoder_forward.20} parent=0 // pred_check_branch
    %13 = sbr.rel (0) target = $region9
  $region8: #{decoder_forward.20} parent=0 // pred_region
    _
  $region9: #{decoder_forward.20} parent=0 // pred_fallthru
    _
  // Predicated region
  $region10: #{decoder_forward.20} parent=0 // pred_check
    _
  $region11: #{decoder_forward.20} parent=0 // pred_check_branch
    %15 = sbr.rel (0) target = $region13
  $region12: #{decoder_forward.20} parent=0 // pred_region
    _
  $region13: #{decoder_forward.20} parent=0 // pred_fallthru
    _
  // Predicated region
  $region14: #{decoder_forward.20} parent=0 // pred_check
    _
  $region15: #{decoder_forward.20} parent=0 // pred_check_branch
    %17 = sbr.rel (0) target = $region17
  $region16: #{decoder_forward.20} parent=0 // pred_region
    _
  $region17: #{decoder_forward.20} parent=0 // pred_fallthru
    _
  // Predicated region
  $region18: #{decoder_forward.20} parent=0 // pred_check
    _
  $region19: #{decoder_forward.20} parent=0 // pred_check_branch
    %19 = sbr.rel (0) target = $region21
  $region20: #{decoder_forward.20} parent=0 // pred_region
    _
  $region21: #{decoder_forward.20} parent=0 // pred_fallthru
    _
  %v20 = vld [vmem:[%s0] sm:$0xff]
  %v21 = vld [vmem:[%s0 + $0x8] sm:$0xff]
  %v22 = vld [vmem:[%s1] sm:$0x1]
  %v23 = vld [vmem:[%s2] sm:$0x1]
  %vm24 = vcmask 261120
  %v25 = vsel %vm24, %v20, 0.0
  %26 = vadd.xlane.f32.xlu0 %v25
  %v27 = vpop.xlane.xlu0 %26
  %v28 = vsel %vm24, %v21, 0.0
  %29 = vadd.xlane.f32.xlu0 %v28
  %v30 = vpop.xlane.xlu0 %29
  %v31 = vrcp.pop 32.0
  %v32 = vmul.f32 %v27, %v31
  %v33 = vmul.f32 %v30, %v31
  %v34 = vsub.f32 %v20, %v32
  %v35 = vsub.f32 %v21, %v33
  %v36 = vmul.f32 %v34, %v34
  %v37 = vmul.f32 %v35, %v35
  %v38 = vsel %vm24, %v36, 0.0
  %39 = vadd.xlane.f32.xlu0 %v38
  %v40 = vpop.xlane.xlu0 %39
  %v41 = vsel %vm24, %v37, 0.0
  %42 = vadd.xlane.f32.xlu0 %v41
  %v43 = vpop.xlane.xlu0 %42
  %v44 = vrcp.pop 31.0
  %v45 = vmul.f32 %v40, %v44
  %v46 = vmul.f32 %v43, %v44
  %v47 = vrsqrt.pop %v45
  %v48 = vmul.f32 %v45, %v47
  %vm49 = vcmp.eq.f32.partialorder %v45, inf
  %v50 = vsel %vm49, %v45, %v48
  %vm51 = vcmp.eq.f32.partialorder %v45, 0.0
  %v52 = vand.u32 %v45, 2147483648
  %v53 = vsel %vm51, %v52, %v50
  %v54 = vrsqrt.pop %v46
  %v55 = vmul.f32 %v46, %v54
  %vm56 = vcmp.eq.f32.partialorder %v46, inf
  %v57 = vsel %vm56, %v46, %v55
  %vm58 = vcmp.eq.f32.partialorder %v46, 0.0
  %v59 = vand.u32 %v46, 2147483648
  %v60 = vsel %vm58, %v59, %v57
  %v61 = vadd.f32 %v53, 1e-06
  %v62 = vadd.f32 %v60, 1e-06
  %v63 = vrcp.pop %v61
  %v64 = vrcp.pop %v62
  %v66 = vlaneseq
  %v67 = vshrl.u32 %v66, 7
  %v68 = vsub.s32 0, %v67
  %v69 = vrot.slane %v22, %v68
  %v71 = vmul.f32 %v69, %v34
  %v72 = vmul.f32 %v69, %v35
  %v73 = vmul.f32 %v71, %v63
  %v74 = vmul.f32 %v72, %v64
  %v76 = vlaneseq
  %v77 = vshrl.u32 %v76, 7
  %v78 = vsub.s32 0, %v77
  %v79 = vrot.slane %v23, %v78
  %v81 = vadd.f32 %v73, %v79
  %v82 = vadd.f32 %v74, %v79
  %v83 = vld [vmem:[%s3] sm:$0xff]
  %v84 = vld [vmem:[%s3 + $0x8] sm:$0xff]
  %v85 = vld [vmem:[%s3 + $0x10] sm:$0xff]
  %v86 = vld [vmem:[%s3 + $0x18] sm:$0xff]
  %v87 = vld [vmem:[%s4] sm:$0x1]
  %v89 = vlaneseq
  %v90 = vshrl.u32 %v89, 7
  %v91 = vsub.s32 0, %v90
  %v92 = vrot.slane %v87, %v91
  %v95 = vsel %vm24, %v81, 0
  %v98 = vsel %vm24, %v82, 0
  %100 = vmatprep.subr.mxu0 0.0
  %101 = vmatpush1.msra.mxu0 %v83
  %102 = vmatprep.subr.mxu0 0.0
  %103 = vmatpush1.msra.mxu0 %v84
  %104 = vmatprep.subr.mxu0 0.0
  %105 = vmatpush1.msra.mxu0 %v85
  %106 = vmatprep.subr.mxu0 0.0
  %107 = vmatpush1.msra.mxu0 %v86
  %108 = vmatprep.subr.mxu0 0.0
  %109 = vmatpush1.msra.mxu0 0.0
  %110 = vmatprep.subr.mxu0 0.0
  %111 = vmatpush1.msra.mxu0 0.0
  %112 = vmatprep.subr.mxu0 0.0
  %113 = vmatpush1.msra.mxu0 0.0
  %114 = vmatprep.subr.mxu0 0.0
  %115 = vmatpush1.msra.mxu0 0.0
  %116 = vmatprep.subr.mxu0 0.0
  %117 = vmatpush1.msra.mxu0 0.0
  %118 = vmatprep.subr.mxu0 0.0
  %119 = vmatpush1.msra.mxu0 0.0
  %120 = vmatprep.subr.mxu0 0.0
  %121 = vmatpush1.msra.mxu0 0.0
  %122 = vmatprep.subr.mxu0 0.0
  %123 = vmatpush1.msra.mxu0 0.0
  %124 = vmatprep.subr.mxu0 0.0
  %125 = vmatpush1.msra.mxu0 0.0
  %126 = vmatprep.subr.mxu0 0.0
  %127 = vmatpush1.msra.mxu0 0.0
  %128 = vmatprep.subr.mxu0 0.0
  %129 = vmatpush1.msra.mxu0 0.0
  %130 = vmatprep.subr.mxu0 0.0
  %131 = vmatpush1.msra.mxu0 0.0
  %132 = vmatprep.subr.mxu0 0.0
  %133 = vmatpush1.msra.mxu0 0.0
  %134 = vmatprep.subr.mxu0 0.0
  %135 = vmatpush1.msra.mxu0 0.0
  %136 = vmatprep.subr.mxu0 0.0
  %137 = vmatpush1.msra.mxu0 0.0
  %138 = vmatprep.subr.mxu0 0.0
  %139 = vmatpush1.msra.mxu0 0.0
  %140 = vmatprep.subr.mxu0 0.0
  %141 = vmatpush1.msra.mxu0 0.0
  %142 = vmatprep.subr.mxu0 0.0
  %143 = vmatpush1.msra.mxu0 0.0
  %144 = vmatprep.subr.mxu0 0.0
  %145 = vmatpush1.msra.mxu0 0.0
  %146 = vmatprep.subr.mxu0 0.0
  %147 = vmatpush1.msra.mxu0 0.0
  %148 = vmatprep.subr.mxu0 0.0
  %149 = vmatpush1.msra.mxu0 0.0
  %150 = vmatprep.subr.mxu0 0.0
  %151 = vmatpush1.msra.mxu0 0.0
  %152 = vmatprep.subr.mxu0 0.0
  %153 = vmatpush1.msra.mxu0 0.0
  %154 = vmatprep.subr.mxu0 0.0
  %155 = vmatpush1.msra.mxu0 0.0
  %156 = vmatprep.subr.mxu0 0.0
  %157 = vmatpush1.msra.mxu0 0.0
  %158 = vmatprep.subr.mxu0 0.0
  %159 = vmatpush1.msra.mxu0 0.0
  %160 = vmatprep.subr.mxu0 0.0
  %161 = vmatpush1.msra.mxu0 0.0
  %162 = vmatprep.subr.mxu0 0.0
  %163 = vmatpush1.msra.mxu0 0.0
  %164 = vmatprep.mubr.f32.mxu0 0.0
  %165 = vmatmul.mubr.f32.gmra.mrb[0].mxu0 %v95
  %v166 = vpop.f32.mrb[0].mxu0
  %v167 = vadd.f32 %v92, %v166
  %v168 = vpop.f32.mrb[0].mxu0
  %169 = vmatprep.mubr.f32.mxu0 0.0
  %170 = vmatmul.mubr.f32.gmra.mrb[0].mxu0 %v98
  %v171 = vpop.f32.mrb[0].mxu0
  %v172 = vadd.f32 %v92, %v171
  %v173 = vpop.f32.mrb[0].mxu0
  %174 = vdwg.mxu0
  %175 = vst.msk [vmem:[%s5] sm:$0xff] %vm24, %v167
  %176 = vst.msk [vmem:[%s5 + $0x8] sm:$0xff] %vm24, %v172
  // Predicated region
  $region22: #{decoder_forward.20} parent=0 // pred_check
    _
  $region23: #{decoder_forward.20} parent=0 // pred_check_branch
    %178 = sbr.rel (0) target = $region25
  $region24: #{decoder_forward.20} parent=0 // pred_region
    _
  $region25: #{decoder_forward.20} parent=0 // pred_fallthru
    _
  // Predicated region
  $region26: #{decoder_forward.20} parent=0 // pred_check
    _
  $region27: #{decoder_forward.20} parent=0 // pred_check_branch
    %180 = sbr.rel (0) target = $region29
  $region28: #{decoder_forward.20} parent=0 // pred_region
    _
  $region29: #{decoder_forward.20} parent=0 // pred_fallthru
    _

// kernel: decoder_forward.18
$region0: #{decoder_forward.18}
  #allocation0 [shape = 'u32[]', space=smem, size = 0x4, offset = 0x4, fixed_abs, tag = 'smem constant byte address 0x4 - core index']
  #allocation1 [shape = 'u32[144,128]{1,0:T(1,128)}', space=vmem, size = 0x12000, scoped, tag = 'internal scratch']
  %s0 = inlined_call_operand.vmem [shape: f32[2,8,32], index: 0, kind: input, shape index: {}]
  %s1 = inlined_call_operand.vmem [shape: f32[2,8,32], index: 1, kind: input, shape index: {}]
  %s2 = inlined_call_operand.vmem [shape: f32[2,8,32], index: 2, kind: input, shape index: {}]
  %s3 = inlined_call_operand.vmem [shape: f32[2,1,8,8], index: 3, kind: input, shape index: {}]
  %s4 = inlined_call_operand.vmem [shape: f32[2,8,32], index: 4, kind: output, shape index: {}]
  %s5 = sld [smem:[#allocation0]]
  $region49: #{decoder_forward.18} parent=0
    _
  %s7 = ssub.s32 1, %s5
  %s8 = scalar_select 0, %s7, %s5
  loop: start=0, step=1, limit=4
  $region2: #{decoder_forward.18} parent=0 // loop_pre_header
    _
  $region3: #{decoder_forward.18} parent=0 // loop_header
    %s10 = sphi 0, %s14
    %p11 = scmp.ge.s32.totalorder %s10, 4
    %s20 = sphi 0, %s22
    %s23 = sphi 0, %s20
    %s24 = sphi 0, %s23
    %s40 = sphi 0, %s24
    %s46 = sphi 0, %s48
    %s49 = sphi 0, %s46
    %s50 = sphi 0, %s49
    %s66 = sphi 0, %s50
    %s72 = sphi 0, %s74
    %s75 = sphi 0, %s72
    %s76 = sphi 0, %s75
    %s92 = sphi 0, %s76
    %s98 = sphi 0, %s100
    %s101 = sphi 0, %s98
    %s102 = sphi 0, %s101
    %s118 = sphi 0, %s102
    %s124 = sphi 0, %s126
    %s127 = sphi 0, %s124
    %s128 = sphi 0, %s127
    %s144 = sphi 0, %s128
  $region4: #{decoder_forward.18} parent=0 // loop_header_branch
    %13 = sbr.rel (%p11) target = $region8
  $region5: #{decoder_forward.18} parent=0 // loop_body
    %s15 = ssub.s32 %s10, 1
    %s16 = ssub.s32 %s10, 2
    %s17 = sadd.s32 %s10, 1
    %s18 = ssub.s32 %s10, %s17
    %p19 = scmp.eq.s32.totalorder %s18, 0
    %s21 = sadd.s32 %s20, 1
    %s22 = scalar_select %p19, %s20, %s21
    %p25 = pneg %p19
    %p26 = scmp.eq.s32.totalorder %s10, 1
    %p27 = por %p25, %p26
    %p28 = scmp.ne.s32.totalorder %s20, %s23
    %p29 = scmp.eq.s32.totalorder %s10, 0
    %p30 = por %p28, %p29
    %p31 = scmp.ne.s32.totalorder %s20, %s23
    %p32 = scmp.eq.s32.totalorder %s15, 1
    %p33 = por %p31, %p32
    %p34 = scmp.ne.s32.totalorder %s23, %s24
    %p35 = scmp.eq.s32.totalorder %s15, 0
    %p36 = por %p34, %p35
    %p37 = scmp.ne.s32.totalorder %s23, %s24
    %p38 = scmp.eq.s32.totalorder %s16, 1
    %p39 = por %p37, %p38
    %p41 = scmp.ne.s32.totalorder %s24, %s40
    %p42 = scmp.eq.s32.totalorder %s16, 0
    %p43 = por %p41, %p42
    %s44 = ssub.s32 %s10, %s17
    %p45 = scmp.eq.s32.totalorder %s44, 0
    %s47 = sadd.s32 %s46, 1
    %s48 = scalar_select %p45, %s46, %s47
    %p51 = pneg %p45
    %p52 = scmp.eq.s32.totalorder %s10, 1
    %p53 = por %p51, %p52
    %p54 = scmp.ne.s32.totalorder %s46, %s49
    %p55 = scmp.eq.s32.totalorder %s10, 0
    %p56 = por %p54, %p55
    %p57 = scmp.ne.s32.totalorder %s46, %s49
    %p58 = scmp.eq.s32.totalorder %s15, 1
    %p59 = por %p57, %p58
    %p60 = scmp.ne.s32.totalorder %s49, %s50
    %p61 = scmp.eq.s32.totalorder %s15, 0
    %p62 = por %p60, %p61
    %p63 = scmp.ne.s32.totalorder %s49, %s50
    %p64 = scmp.eq.s32.totalorder %s16, 1
    %p65 = por %p63, %p64
    %p67 = scmp.ne.s32.totalorder %s50, %s66
    %p68 = scmp.eq.s32.totalorder %s16, 0
    %p69 = por %p67, %p68
    %s70 = ssub.s32 %s10, %s17
    %p71 = scmp.eq.s32.totalorder %s70, 0
    %s73 = sadd.s32 %s72, 1
    %s74 = scalar_select %p71, %s72, %s73
    %p77 = pneg %p71
    %p78 = scmp.eq.s32.totalorder %s10, 1
    %p79 = por %p77, %p78
    %p80 = scmp.ne.s32.totalorder %s72, %s75
    %p81 = scmp.eq.s32.totalorder %s10, 0
    %p82 = por %p80, %p81
    %p83 = scmp.ne.s32.totalorder %s72, %s75
    %p84 = scmp.eq.s32.totalorder %s15, 1
    %p85 = por %p83, %p84
    %p86 = scmp.ne.s32.totalorder %s75, %s76
    %p87 = scmp.eq.s32.totalorder %s15, 0
    %p88 = por %p86, %p87
    %p89 = scmp.ne.s32.totalorder %s75, %s76
    %p90 = scmp.eq.s32.totalorder %s16, 1
    %p91 = por %p89, %p90
    %p93 = scmp.ne.s32.totalorder %s76, %s92
    %p94 = scmp.eq.s32.totalorder %s16, 0
    %p95 = por %p93, %p94
    %s96 = ssub.s32 %s10, %s17
    %p97 = scmp.eq.s32.totalorder %s96, 0
    %s99 = sadd.s32 %s98, 1
    %s100 = scalar_select %p97, %s98, %s99
    %p103 = pneg %p97
    %p104 = scmp.eq.s32.totalorder %s10, 1
    %p105 = por %p103, %p104
    %p106 = scmp.ne.s32.totalorder %s98, %s101
    %p107 = scmp.eq.s32.totalorder %s10, 0
    %p108 = por %p106, %p107
    %p109 = scmp.ne.s32.totalorder %s98, %s101
    %p110 = scmp.eq.s32.totalorder %s15, 1
    %p111 = por %p109, %p110
    %p112 = scmp.ne.s32.totalorder %s101, %s102
    %p113 = scmp.eq.s32.totalorder %s15, 0
    %p114 = por %p112, %p113
    %p115 = scmp.ne.s32.totalorder %s101, %s102
    %p116 = scmp.eq.s32.totalorder %s16, 1
    %p117 = por %p115, %p116
    %p119 = scmp.ne.s32.totalorder %s102, %s118
    %p120 = scmp.eq.s32.totalorder %s16, 0
    %p121 = por %p119, %p120
    %s122 = ssub.s32 %s10, %s17
    %p123 = scmp.eq.s32.totalorder %s122, 0
    %s125 = sadd.s32 %s124, 1
    %s126 = scalar_select %p123, %s124, %s125
    %p129 = pneg %p123
    %p130 = scmp.eq.s32.totalorder %s10, 1
    %p131 = por %p129, %p130
    %p132 = scmp.ne.s32.totalorder %s124, %s127
    %p133 = scmp.eq.s32.totalorder %s10, 0
    %p134 = por %p132, %p133
    %p135 = scmp.ne.s32.totalorder %s124, %s127
    %p136 = scmp.eq.s32.totalorder %s15, 1
    %p137 = por %p135, %p136
    %p138 = scmp.ne.s32.totalorder %s127, %s128
    %p139 = scmp.eq.s32.totalorder %s15, 0
    %p140 = por %p138, %p139
    %p141 = scmp.ne.s32.totalorder %s127, %s128
    %p142 = scmp.eq.s32.totalorder %s16, 1
    %p143 = por %p141, %p142
    %p145 = scmp.ne.s32.totalorder %s128, %s144
    %p146 = scmp.eq.s32.totalorder %s16, 0
    %p147 = por %p145, %p146
    %p148 = scmp.le.s32.totalorder 1, %s10
    %p149 = scmp.lt.s32.totalorder %s10, 3
    %p150 = pnand %p148, %p149
    %p151 = pneg %p150
    // Predicated region
    $region9: #{decoder_forward.18} parent=5 // pred_check
      _
    $region10: #{decoder_forward.18} parent=5 // pred_check_branch
      %153 = sbr.rel (%p150) target = $region12
    $region11: #{decoder_forward.18} parent=5 // pred_region
      %s154 = ssub.s32 %s10, 1
    $region12: #{decoder_forward.18} parent=5 // pred_fallthru
      _
    %p155 = scmp.lt.s32.totalorder %s10, 2
    // Predicated region
    $region13: #{decoder_forward.18} parent=5 // pred_check
      %p156 = pneg %p155
    $region14: #{decoder_forward.18} parent=5 // pred_check_branch
      %158 = sbr.rel (%p156) target = $region16
    $region15: #{decoder_forward.18} parent=5 // pred_region
      // Predicated region
      $region17: #{decoder_forward.18} parent=15 // pred_check
        %p159 = pneg %p30
      $region18: #{decoder_forward.18} parent=15 // pred_check_branch
        %161 = sbr.rel (%p159) target = $region20
      $region19: #{decoder_forward.18} parent=15 // pred_region
        %p162 = scmp.lt.s32.totalorder %s10, 1
        %s163 = scalar_select %p162, %s10, 1
        %s164 = smul.addr %s163, 8
        %s165 = scalar_lea.vmem %s0, %s164
      $region20: #{decoder_forward.18} parent=15 // pred_fallthru
        _
      // Predicated region
      $region21: #{decoder_forward.18} parent=15 // pred_check
        %p166 = pneg %p56
      $region22: #{decoder_forward.18} parent=15 // pred_check_branch
        %168 = sbr.rel (%p166) target = $region24
      $region23: #{decoder_forward.18} parent=15 // pred_region
        %p169 = scmp.lt.s32.totalorder %s10, 1
        %s170 = scalar_select %p169, %s10, 1
        %s171 = smul.addr %s170, 8
        %s172 = scalar_lea.vmem %s1, %s171
      $region24: #{decoder_forward.18} parent=15 // pred_fallthru
        _
      // Predicated region
      $region25: #{decoder_forward.18} parent=15 // pred_check
        %p173 = pneg %p82
      $region26: #{decoder_forward.18} parent=15 // pred_check_branch
        %175 = sbr.rel (%p173) target = $region28
      $region27: #{decoder_forward.18} parent=15 // pred_region
        %p176 = scmp.lt.s32.totalorder %s10, 1
        %s177 = scalar_select %p176, %s10, 1
        %s178 = smul.addr %s177, 8
        %s179 = scalar_lea.vmem %s2, %s178
      $region28: #{decoder_forward.18} parent=15 // pred_fallthru
        _
      // Predicated region
      $region29: #{decoder_forward.18} parent=15 // pred_check
        %p180 = pneg %p108
      $region30: #{decoder_forward.18} parent=15 // pred_check_branch
        %182 = sbr.rel (%p180) target = $region32
      $region31: #{decoder_forward.18} parent=15 // pred_region
        %p183 = scmp.lt.s32.totalorder %s10, 1
        %s184 = scalar_select %p183, %s10, 1
        %s185 = smul.addr %s184, 8
        %s186 = scalar_lea.vmem %s3, %s185
      $region32: #{decoder_forward.18} parent=15 // pred_fallthru
        _
    $region16: #{decoder_forward.18} parent=5 // pred_fallthru
      _
    %p187 = scmp.le.s32.totalorder 1, %s10
    %p188 = scmp.lt.s32.totalorder %s10, 3
    %p189 = pnand %p187, %p188
    %p190 = pneg %p189
    // Predicated region
    $region33: #{decoder_forward.18} parent=5 // pred_check
      _
    $region34: #{decoder_forward.18} parent=5 // pred_check_branch
      %192 = sbr.rel (%p189) target = $region36
    $region35: #{decoder_forward.18} parent=5 // pred_region
      %s193 = ssub.s32 %s10, 1
      %p194 = scmp.lt.s32.totalorder %s15, 1
      %s195 = scalar_select %p194, %s15, 1
      %s196 = smul.addr %s195, 8
      %s197 = scalar_lea.vmem %s0, %s196
      %p198 = pneg %p36
      %p199 = pneg %p33
      %p200 = scmp.lt.s32.totalorder %s15, 1
      %s201 = scalar_select %p200, %s15, 1
      %s202 = smul.addr %s201, 8
      %s203 = scalar_lea.vmem %s1, %s202
      %p204 = pneg %p62
      %p205 = pneg %p59
      %p206 = scmp.lt.s32.totalorder %s15, 1
      %s207 = scalar_select %p206, %s15, 1
      %s208 = smul.addr %s207, 8
      %s209 = scalar_lea.vmem %s2, %s208
      %p210 = pneg %p88
      %p211 = pneg %p85
      %p212 = scmp.lt.s32.totalorder %s15, 1
      %s213 = scalar_select %p212, %s15, 1
      %s214 = smul.addr %s213, 8
      %s215 = scalar_lea.vmem %s3, %s214
      %p216 = pneg %p114
      %p217 = pneg %p111
      %p218 = pneg %p140
      %p219 = pneg %p137
      %p220 = scmp.lt.s32.totalorder %s15, 1
      %s221 = scalar_select %p220, %s15, 1
      %s222 = smul.addr %s221, 8
      %s223 = scalar_lea.vmem %s4, %s222
      %p224 = scmp.lt.s32.totalorder %s15, 1
      %s225 = scalar_select %p224, %s15, 1
      %s226 = smul.addr %s225, 8
      %s227 = scalar_lea.vmem %s0, %s226
      %p228 = scmp.lt.s32.totalorder %s15, 1
      %s229 = scalar_select %p228, %s15, 1
      %s230 = smul.addr %s229, 8
      %s231 = scalar_lea.vmem %s1, %s230
      %p232 = scmp.lt.s32.totalorder %s15, 1
      %s233 = scalar_select %p232, %s15, 1
      %s234 = smul.addr %s233, 8
      %s235 = scalar_lea.vmem %s2, %s234
      %p236 = scmp.lt.s32.totalorder %s15, 1
      %s237 = scalar_select %p236, %s15, 1
      %s238 = smul.addr %s237, 8
      %s239 = scalar_lea.vmem %s3, %s238
      %p240 = scmp.lt.s32.totalorder %s15, 1
      %s241 = scalar_select %p240, %s15, 1
      %s242 = smul.addr %s241, 8
      %s243 = scalar_lea.vmem %s4, %s242
      %v244 = vld [vmem:[%s227] sm:$0xff]
      %v245 = vld [vmem:[%s231] sm:$0xff]
      %v246 = vld [vmem:[%s235] sm:$0xff]
      %v247 = vld [vmem:[%s239] sm:$0xff]
      %vm248 = vcmp.ne.f32.partialorder %v247, 0.0
      %v249 = vmul.f32 %v244, 0.35355338
      %vm250 = vcmask 64512
      %v252 = vsel %vm250, %v249, 0
      %v255 = vsel %vm250, %v245, 0
      %257 = vmatprep.subr.mxu0 0.0
      %258 = vmatpush1.xpose.msra.mxu0 %v255
      %259 = vmatprep.subr.mxu0 0.0
      %260 = vmatpush1.xpose.msra.mxu0 0.0
      %261 = vmatprep.subr.mxu0 0.0
      %262 = vmatpush1.xpose.msra.mxu0 0.0
      %263 = vmatprep.subr.mxu0 0.0
      %264 = vmatpush1.xpose.msra.mxu0 0.0
      %265 = vmatprep.subr.mxu0 0.0
      %266 = vmatpush1.xpose.msra.mxu0 0.0
      %267 = vmatprep.subr.mxu0 0.0
      %268 = vmatpush1.xpose.msra.mxu0 0.0
      %269 = vmatprep.subr.mxu0 0.0
      %270 = vmatpush1.xpose.msra.mxu0 0.0
      %271 = vmatprep.subr.mxu0 0.0
      %272 = vmatpush1.xpose.msra.mxu0 0.0
      %273 = vmatprep.subr.mxu0 0.0
      %274 = vmatpush1.xpose.msra.mxu0 0.0
      %275 = vmatprep.subr.mxu0 0.0
      %276 = vmatpush1.xpose.msra.mxu0 0.0
      %277 = vmatprep.subr.mxu0 0.0
      %278 = vmatpush1.xpose.msra.mxu0 0.0
      %279 = vmatprep.subr.mxu0 0.0
      %280 = vmatpush1.xpose.msra.mxu0 0.0
      %281 = vmatprep.subr.mxu0 0.0
      %282 = vmatpush1.xpose.msra.mxu0 0.0
      %283 = vmatprep.subr.mxu0 0.0
      %284 = vmatpush1.xpose.msra.mxu0 0.0
      %285 = vmatprep.subr.mxu0 0.0
      %286 = vmatpush1.xpose.msra.mxu0 0.0
      %287 = vmatprep.subr.mxu0 0.0
      %288 = vmatpush1.xpose.msra.mxu0 0.0
      %289 = vmatprep.subr.mxu0 0.0
      %290 = vmatpush1.xpose.msra.mxu0 0.0
      %291 = vmatprep.subr.mxu0 0.0
      %292 = vmatpush1.xpose.msra.mxu0 0.0
      %293 = vmatprep.subr.mxu0 0.0
      %294 = vmatpush1.xpose.msra.mxu0 0.0
      %295 = vmatprep.subr.mxu0 0.0
      %296 = vmatpush1.xpose.msra.mxu0 0.0
      %297 = vmatprep.subr.mxu0 0.0
      %298 = vmatpush1.xpose.msra.mxu0 0.0
      %299 = vmatprep.subr.mxu0 0.0
      %300 = vmatpush1.xpose.msra.mxu0 0.0
      %301 = vmatprep.subr.mxu0 0.0
      %302 = vmatpush1.xpose.msra.mxu0 0.0
      %303 = vmatprep.subr.mxu0 0.0
      %304 = vmatpush1.xpose.msra.mxu0 0.0
      %305 = vmatprep.subr.mxu0 0.0
      %306 = vmatpush1.xpose.msra.mxu0 0.0
      %307 = vmatprep.subr.mxu0 0.0
      %308 = vmatpush1.xpose.msra.mxu0 0.0
      %309 = vmatprep.subr.mxu0 0.0
      %310 = vmatpush1.xpose.msra.mxu0 0.0
      %311 = vmatprep.subr.mxu0 0.0
      %312 = vmatpush1.xpose.msra.mxu0 0.0
      %313 = vmatprep.subr.mxu0 0.0
      %314 = vmatpush1.xpose.msra.mxu0 0.0
      %315 = vmatprep.subr.mxu0 0.0
      %316 = vmatpush1.xpose.msra.mxu0 0.0
      %317 = vmatprep.subr.mxu0 0.0
      %318 = vmatpush1.xpose.msra.mxu0 0.0
      %319 = vmatprep.subr.mxu0 0.0
      %320 = vmatpush1.xpose.msra.mxu0 0.0
      %321 = vmatprep.mubr.f32.mxu0 0.0
      %322 = vmatmul.mubr.f32.gmra.mrb[0].mxu0 %v252
      %v323 = vpop.f32.mrb[0].mxu0
      %v324 = vadd.f32 0.0, %v323
      %v325 = vpop.f32.mrb[0].mxu0
      %326 = vdwg.mxu0
      %v327 = vsel %vm248, %v324, -1e+09
      %v328 = vsel %vm250, %v327, -inf
      %329 = vmax.xlane.f32.xlu0 %v328
      %v330 = vpop.xlane.xlu0 %329
      %v331 = vsub.f32 %v327, %v330
      %v332 = vmul.f32 %v331, 1.442695
      %v333 = vpow.pop %v332
      %v334 = vsel %vm250, %v333, 0.0
      %335 = vadd.xlane.f32.xlu0 %v334
      %v336 = vpop.xlane.xlu0 %335
      %v337 = vrcp.pop %v336
      %v338 = vmul.f32 %v333, %v337
      %v340 = vsel %vm250, %v338, 0
      %342 = vmatprep.subr.mxu0 0.0
      %343 = vmatpush1.msra.mxu0 %v246
      %344 = vmatprep.subr.mxu0 0.0
      %345 = vmatpush1.msra.mxu0 0.0
      %346 = vmatprep.subr.mxu0 0.0
      %347 = vmatpush1.msra.mxu0 0.0
      %348 = vmatprep.subr.mxu0 0.0
      %349 = vmatpush1.msra.mxu0 0.0
      %350 = vmatprep.subr.mxu0 0.0
      %351 = vmatpush1.msra.mxu0 0.0
      %352 = vmatprep.subr.mxu0 0.0
      %353 = vmatpush1.msra.mxu0 0.0
      %354 = vmatprep.subr.mxu0 0.0
      %355 = vmatpush1.msra.mxu0 0.0
      %356 = vmatprep.subr.mxu0 0.0
      %357 = vmatpush1.msra.mxu0 0.0
      %358 = vmatprep.subr.mxu0 0.0
      %359 = vmatpush1.msra.mxu0 0.0
      %360 = vmatprep.subr.mxu0 0.0
      %361 = vmatpush1.msra.mxu0 0.0
      %362 = vmatprep.subr.mxu0 0.0
      %363 = vmatpush1.msra.mxu0 0.0
      %364 = vmatprep.subr.mxu0 0.0
      %365 = vmatpush1.msra.mxu0 0.0
      %366 = vmatprep.subr.mxu0 0.0
      %367 = vmatpush1.msra.mxu0 0.0
      %368 = vmatprep.subr.mxu0 0.0
      %369 = vmatpush1.msra.mxu0 0.0
      %370 = vmatprep.subr.mxu0 0.0
      %371 = vmatpush1.msra.mxu0 0.0
      %372 = vmatprep.subr.mxu0 0.0
      %373 = vmatpush1.msra.mxu0 0.0
      %374 = vmatprep.subr.mxu0 0.0
      %375 = vmatpush1.msra.mxu0 0.0
      %376 = vmatprep.subr.mxu0 0.0
      %377 = vmatpush1.msra.mxu0 0.0
      %378 = vmatprep.subr.mxu0 0.0
      %379 = vmatpush1.msra.mxu0 0.0
      %380 = vmatprep.subr.mxu0 0.0
      %381 = vmatpush1.msra.mxu0 0.0
      %382 = vmatprep.subr.mxu0 0.0
      %383 = vmatpush1.msra.mxu0 0.0
      %384 = vmatprep.subr.mxu0 0.0
      %385 = vmatpush1.msra.mxu0 0.0
      %386 = vmatprep.subr.mxu0 0.0
      %387 = vmatpush1.msra.mxu0 0.0
      %388 = vmatprep.subr.mxu0 0.0
      %389 = vmatpush1.msra.mxu0 0.0
      %390 = vmatprep.subr.mxu0 0.0
      %391 = vmatpush1.msra.mxu0 0.0
      %392 = vmatprep.subr.mxu0 0.0
      %393 = vmatpush1.msra.mxu0 0.0
      %394 = vmatprep.subr.mxu0 0.0
      %395 = vmatpush1.msra.mxu0 0.0
      %396 = vmatprep.subr.mxu0 0.0
      %397 = vmatpush1.msra.mxu0 0.0
      %398 = vmatprep.subr.mxu0 0.0
      %399 = vmatpush1.msra.mxu0 0.0
      %400 = vmatprep.subr.mxu0 0.0
      %401 = vmatpush1.msra.mxu0 0.0
      %402 = vmatprep.subr.mxu0 0.0
      %403 = vmatpush1.msra.mxu0 0.0
      %404 = vmatprep.subr.mxu0 0.0
      %405 = vmatpush1.msra.mxu0 0.0
      %406 = vmatprep.mubr.f32.mxu0 0.0
      %407 = vmatmul.mubr.f32.gmra.mrb[0].mxu0 %v340
      %v408 = vpop.f32.mrb[0].mxu0
      %v409 = vadd.f32 0.0, %v408
      %v410 = vpop.f32.mrb[0].mxu0
      %411 = vdwg.mxu0
      %412 = vst.msk [vmem:[%s243] sm:$0xff] %vm250, %v409
      %413 = vrot.lane.b32.xlu0 %v249, 120
      %v414 = vpop.permute.xlu0 %413
      %415 = vrot.lane.b32.xlu0 %v245, 120
      %v416 = vpop.permute.xlu0 %415
      %v417 = vsel %vm250, %v414, 0
      %v419 = vsel %vm250, %v416, 0
      %421 = vmatprep.subr.mxu0 0.0
      %422 = vmatpush1.xpose.msra.mxu0 %v419
      %423 = vmatprep.subr.mxu0 0.0
      %424 = vmatpush1.xpose.msra.mxu0 0.0
      %425 = vmatprep.subr.mxu0 0.0
      %426 = vmatpush1.xpose.msra.mxu0 0.0
      %427 = vmatprep.subr.mxu0 0.0
      %428 = vmatpush1.xpose.msra.mxu0 0.0
      %429 = vmatprep.subr.mxu0 0.0
      %430 = vmatpush1.xpose.msra.mxu0 0.0
      %431 = vmatprep.subr.mxu0 0.0
      %432 = vmatpush1.xpose.msra.mxu0 0.0
      %433 = vmatprep.subr.mxu0 0.0
      %434 = vmatpush1.xpose.msra.mxu0 0.0
      %435 = vmatprep.subr.mxu0 0.0
      %436 = vmatpush1.xpose.msra.mxu0 0.0
      %437 = vmatprep.subr.mxu0 0.0
      %438 = vmatpush1.xpose.msra.mxu0 0.0
      %439 = vmatprep.subr.mxu0 0.0
      %440 = vmatpush1.xpose.msra.mxu0 0.0
      %441 = vmatprep.subr.mxu0 0.0
      %442 = vmatpush1.xpose.msra.mxu0 0.0
      %443 = vmatprep.subr.mxu0 0.0
      %444 = vmatpush1.xpose.msra.mxu0 0.0
      %445 = vmatprep.subr.mxu0 0.0
      %446 = vmatpush1.xpose.msra.mxu0 0.0
      %447 = vmatprep.subr.mxu0 0.0
      %448 = vmatpush1.xpose.msra.mxu0 0.0
      %449 = vmatprep.subr.mxu0 0.0
      %450 = vmatpush1.xpose.msra.mxu0 0.0
      %451 = vmatprep.subr.mxu0 0.0
      %452 = vmatpush1.xpose.msra.mxu0 0.0
      %453 = vmatprep.subr.mxu0 0.0
      %454 = vmatpush1.xpose.msra.mxu0 0.0
      %455 = vmatprep.subr.mxu0 0.0
      %456 = vmatpush1.xpose.msra.mxu0 0.0
      %457 = vmatprep.subr.mxu0 0.0
      %458 = vmatpush1.xpose.msra.mxu0 0.0
      %459 = vmatprep.subr.mxu0 0.0
      %460 = vmatpush1.xpose.msra.mxu0 0.0
      %461 = vmatprep.subr.mxu0 0.0
      %462 = vmatpush1.xpose.msra.mxu0 0.0
      %463 = vmatprep.subr.mxu0 0.0
      %464 = vmatpush1.xpose.msra.mxu0 0.0
      %465 = vmatprep.subr.mxu0 0.0
      %466 = vmatpush1.xpose.msra.mxu0 0.0
      %467 = vmatprep.subr.mxu0 0.0
      %468 = vmatpush1.xpose.msra.mxu0 0.0
      %469 = vmatprep.subr.mxu0 0.0
      %470 = vmatpush1.xpose.msra.mxu0 0.0
      %471 = vmatprep.subr.mxu0 0.0
      %472 = vmatpush1.xpose.msra.mxu0 0.0
      %473 = vmatprep.subr.mxu0 0.0
      %474 = vmatpush1.xpose.msra.mxu0 0.0
      %475 = vmatprep.subr.mxu0 0.0
      %476 = vmatpush1.xpose.msra.mxu0 0.0
      %477 = vmatprep.subr.mxu0 0.0
      %478 = vmatpush1.xpose.msra.mxu0 0.0
      %479 = vmatprep.subr.mxu0 0.0
      %480 = vmatpush1.xpose.msra.mxu0 0.0
      %481 = vmatprep.subr.mxu0 0.0
      %482 = vmatpush1.xpose.msra.mxu0 0.0
      %483 = vmatprep.subr.mxu0 0.0
      %484 = vmatpush1.xpose.msra.mxu0 0.0
      %485 = vmatprep.mubr.f32.mxu0 0.0
      %486 = vmatmul.mubr.f32.gmra.mrb[0].mxu0 %v417
      %v487 = vpop.f32.mrb[0].mxu0
      %v488 = vadd.f32 0.0, %v487
      %v489 = vpop.f32.mrb[0].mxu0
      %490 = vdwg.mxu0
      %v491 = vsel %vm248, %v488, -1e+09
      %v492 = vsel %vm250, %v491, -inf
      %493 = vmax.xlane.f32.xlu0 %v492
      %v494 = vpop.xlane.xlu0 %493
      %v495 = vsub.f32 %v491, %v494
      %v496 = vmul.f32 %v495, 1.442695
      %v497 = vpow.pop %v496
      %v498 = vsel %vm250, %v497, 0.0
      %499 = vadd.xlane.f32.xlu0 %v498
      %v500 = vpop.xlane.xlu0 %499
      %v501 = vrcp.pop %v500
      %v502 = vmul.f32 %v497, %v501
      %504 = vrot.lane.b32.xlu0 %v246, 120
      %v505 = vpop.permute.xlu0 %504
      %v508 = vsel %vm250, %v502, 0
      %510 = vmatprep.subr.mxu0 0.0
      %511 = vmatpush1.msra.mxu0 %v505
      %512 = vmatprep.subr.mxu0 0.0
      %513 = vmatpush1.msra.mxu0 0.0
      %514 = vmatprep.subr.mxu0 0.0
      %515 = vmatpush1.msra.mxu0 0.0
      %516 = vmatprep.subr.mxu0 0.0
      %517 = vmatpush1.msra.mxu0 0.0
      %518 = vmatprep.subr.mxu0 0.0
      %519 = vmatpush1.msra.mxu0 0.0
      %520 = vmatprep.subr.mxu0 0.0
      %521 = vmatpush1.msra.mxu0 0.0
      %522 = vmatprep.subr.mxu0 0.0
      %523 = vmatpush1.msra.mxu0 0.0
      %524 = vmatprep.subr.mxu0 0.0
      %525 = vmatpush1.msra.mxu0 0.0
      %526 = vmatprep.subr.mxu0 0.0
      %527 = vmatpush1.msra.mxu0 0.0
      %528 = vmatprep.subr.mxu0 0.0
      %529 = vmatpush1.msra.mxu0 0.0
      %530 = vmatprep.subr.mxu0 0.0
      %531 = vmatpush1.msra.mxu0 0.0
      %532 = vmatprep.subr.mxu0 0.0
      %533 = vmatpush1.msra.mxu0 0.0
      %534 = vmatprep.subr.mxu0 0.0
      %535 = vmatpush1.msra.mxu0 0.0
      %536 = vmatprep.subr.mxu0 0.0
      %537 = vmatpush1.msra.mxu0 0.0
      %538 = vmatprep.subr.mxu0 0.0
      %539 = vmatpush1.msra.mxu0 0.0
      %540 = vmatprep.subr.mxu0 0.0
      %541 = vmatpush1.msra.mxu0 0.0
      %542 = vmatprep.subr.mxu0 0.0
      %543 = vmatpush1.msra.mxu0 0.0
      %544 = vmatprep.subr.mxu0 0.0
      %545 = vmatpush1.msra.mxu0 0.0
      %546 = vmatprep.subr.mxu0 0.0
      %547 = vmatpush1.msra.mxu0 0.0
      %548 = vmatprep.subr.mxu0 0.0
      %549 = vmatpush1.msra.mxu0 0.0
      %550 = vmatprep.subr.mxu0 0.0
      %551 = vmatpush1.msra.mxu0 0.0
      %552 = vmatprep.subr.mxu0 0.0
      %553 = vmatpush1.msra.mxu0 0.0
      %554 = vmatprep.subr.mxu0 0.0
      %555 = vmatpush1.msra.mxu0 0.0
      %556 = vmatprep.subr.mxu0 0.0
      %557 = vmatpush1.msra.mxu0 0.0
      %558 = vmatprep.subr.mxu0 0.0
      %559 = vmatpush1.msra.mxu0 0.0
      %560 = vmatprep.subr.mxu0 0.0
      %561 = vmatpush1.msra.mxu0 0.0
      %562 = vmatprep.subr.mxu0 0.0
      %563 = vmatpush1.msra.mxu0 0.0
      %564 = vmatprep.subr.mxu0 0.0
      %565 = vmatpush1.msra.mxu0 0.0
      %566 = vmatprep.subr.mxu0 0.0
      %567 = vmatpush1.msra.mxu0 0.0
      %568 = vmatprep.subr.mxu0 0.0
      %569 = vmatpush1.msra.mxu0 0.0
      %570 = vmatprep.subr.mxu0 0.0
      %571 = vmatpush1.msra.mxu0 0.0
      %572 = vmatprep.subr.mxu0 0.0
      %573 = vmatpush1.msra.mxu0 0.0
      %574 = vmatprep.mubr.f32.mxu0 0.0
      %575 = vmatmul.mubr.f32.gmra.mrb[0].mxu0 %v508
      %v576 = vpop.f32.mrb[0].mxu0
      %v577 = vadd.f32 0.0, %v576
      %v578 = vpop.f32.mrb[0].mxu0
      %579 = vdwg.mxu0
      %581 = vrot.lane.b32.xlu0 %v577, 8
      %v582 = vpop.permute.xlu0 %581
      %vm584 = vcmask 130112
      %585 = vst.msk [vmem:[%s243] sm:$0xff] %vm584, %v582
      %586 = vrot.lane.b32.xlu0 %v249, 112
      %v587 = vpop.permute.xlu0 %586
      %588 = vrot.lane.b32.xlu0 %v245, 112
      %v589 = vpop.permute.xlu0 %588
      %v590 = vsel %vm250, %v587, 0
      %v592 = vsel %vm250, %v589, 0
      %594 = vmatprep.subr.mxu0 0.0
      %595 = vmatpush1.xpose.msra.mxu0 %v592
      %596 = vmatprep.subr.mxu0 0.0
      %597 = vmatpush1.xpose.msra.mxu0 0.0
      %598 = vmatprep.subr.mxu0 0.0
      %599 = vmatpush1.xpose.msra.mxu0 0.0
      %600 = vmatprep.subr.mxu0 0.0
      %601 = vmatpush1.xpose.msra.mxu0 0.0
      %602 = vmatprep.subr.mxu0 0.0
      %603 = vmatpush1.xpose.msra.mxu0 0.0
      %604 = vmatprep.subr.mxu0 0.0
      %605 = vmatpush1.xpose.msra.mxu0 0.0
      %606 = vmatprep.subr.mxu0 0.0
      %607 = vmatpush1.xpose.msra.mxu0 0.0
      %608 = vmatprep.subr.mxu0 0.0
      %609 = vmatpush1.xpose.msra.mxu0 0.0
      %610 = vmatprep.subr.mxu0 0.0
      %611 = vmatpush1.xpose.msra.mxu0 0.0
      %612 = vmatprep.subr.mxu0 0.0
      %613 = vmatpush1.xpose.msra.mxu0 0.0
      %614 = vmatprep.subr.mxu0 0.0
      %615 = vmatpush1.xpose.msra.mxu0 0.0
      %616 = vmatprep.subr.mxu0 0.0
      %617 = vmatpush1.xpose.msra.mxu0 0.0
      %618 = vmatprep.subr.mxu0 0.0
      %619 = vmatpush1.xpose.msra.mxu0 0.0
      %620 = vmatprep.subr.mxu0 0.0
      %621 = vmatpush1.xpose.msra.mxu0 0.0
      %622 = vmatprep.subr.mxu0 0.0
      %623 = vmatpush1.xpose.msra.mxu0 0.0
      %624 = vmatprep.subr.mxu0 0.0
      %625 = vmatpush1.xpose.msra.mxu0 0.0
      %626 = vmatprep.subr.mxu0 0.0
      %627 = vmatpush1.xpose.msra.mxu0 0.0
      %628 = vmatprep.subr.mxu0 0.0
      %629 = vmatpush1.xpose.msra.mxu0 0.0
      %630 = vmatprep.subr.mxu0 0.0
      %631 = vmatpush1.xpose.msra.mxu0 0.0
      %632 = vmatprep.subr.mxu0 0.0
      %633 = vmatpush1.xpose.msra.mxu0 0.0
      %634 = vmatprep.subr.mxu0 0.0
      %635 = vmatpush1.xpose.msra.mxu0 0.0
      %636 = vmatprep.subr.mxu0 0.0
      %637 = vmatpush1.xpose.msra.mxu0 0.0
      %638 = vmatprep.subr.mxu0 0.0
      %639 = vmatpush1.xpose.msra.mxu0 0.0
      %640 = vmatprep.subr.mxu0 0.0
      %641 = vmatpush1.xpose.msra.mxu0 0.0
      %642 = vmatprep.subr.mxu0 0.0
      %643 = vmatpush1.xpose.msra.mxu0 0.0
      %644 = vmatprep.subr.mxu0 0.0
      %645 = vmatpush1.xpose.msra.mxu0 0.0
      %646 = vmatprep.subr.mxu0 0.0
      %647 = vmatpush1.xpose.msra.mxu0 0.0
      %648 = vmatprep.subr.mxu0 0.0
      %649 = vmatpush1.xpose.msra.mxu0 0.0
      %650 = vmatprep.subr.mxu0 0.0
      %651 = vmatpush1.xpose.msra.mxu0 0.0
      %652 = vmatprep.subr.mxu0 0.0
      %653 = vmatpush1.xpose.msra.mxu0 0.0
      %654 = vmatprep.subr.mxu0 0.0
      %655 = vmatpush1.xpose.msra.mxu0 0.0
      %656 = vmatprep.subr.mxu0 0.0
      %657 = vmatpush1.xpose.msra.mxu0 0.0
      %658 = vmatprep.mubr.f32.mxu0 0.0
      %659 = vmatmul.mubr.f32.gmra.mrb[0].mxu0 %v590
      %v660 = vpop.f32.mrb[0].mxu0
      %v661 = vadd.f32 0.0, %v660
      %v662 = vpop.f32.mrb[0].mxu0
      %663 = vdwg.mxu0
      %v664 = vsel %vm248, %v661, -1e+09
      %v665 = vsel %vm250, %v664, -inf
      %666 = vmax.xlane.f32.xlu0 %v665
      %v667 = vpop.xlane.xlu0 %666
      %v668 = vsub.f32 %v664, %v667
      %v669 = vmul.f32 %v668, 1.442695
      %v670 = vpow.pop %v669
      %v671 = vsel %vm250, %v670, 0.0
      %672 = vadd.xlane.f32.xlu0 %v671
      %v673 = vpop.xlane.xlu0 %672
      %v674 = vrcp.pop %v673
      %v675 = vmul.f32 %v670, %v674
      %676 = vrot.lane.b32.xlu0 %v246, 112
      %v677 = vpop.permute.xlu0 %676
      %v680 = vsel %vm250, %v675, 0
      %682 = vmatprep.subr.mxu0 0.0
      %683 = vmatpush1.msra.mxu0 %v677
      %684 = vmatprep.subr.mxu0 0.0
      %685 = vmatpush1.msra.mxu0 0.0
      %686 = vmatprep.subr.mxu0 0.0
      %687 = vmatpush1.msra.mxu0 0.0
      %688 = vmatprep.subr.mxu0 0.0
      %689 = vmatpush1.msra.mxu0 0.0
      %690 = vmatprep.subr.mxu0 0.0
      %691 = vmatpush1.msra.mxu0 0.0
      %692 = vmatprep.subr.mxu0 0.0
      %693 = vmatpush1.msra.mxu0 0.0
      %694 = vmatprep.subr.mxu0 0.0
      %695 = vmatpush1.msra.mxu0 0.0
      %696 = vmatprep.subr.mxu0 0.0
      %697 = vmatpush1.msra.mxu0 0.0
      %698 = vmatprep.subr.mxu0 0.0
      %699 = vmatpush1.msra.mxu0 0.0
      %700 = vmatprep.subr.mxu0 0.0
      %701 = vmatpush1.msra.mxu0 0.0
      %702 = vmatprep.subr.mxu0 0.0
      %703 = vmatpush1.msra.mxu0 0.0
      %704 = vmatprep.subr.mxu0 0.0
      %705 = vmatpush1.msra.mxu0 0.0
      %706 = vmatprep.subr.mxu0 0.0
      %707 = vmatpush1.msra.mxu0 0.0
      %708 = vmatprep.subr.mxu0 0.0
      %709 = vmatpush1.msra.mxu0 0.0
      %710 = vmatprep.subr.mxu0 0.0
      %711 = vmatpush1.msra.mxu0 0.0
      %712 = vmatprep.subr.mxu0 0.0
      %713 = vmatpush1.msra.mxu0 0.0
      %714 = vmatprep.subr.mxu0 0.0
      %715 = vmatpush1.msra.mxu0 0.0
      %716 = vmatprep.subr.mxu0 0.0
      %717 = vmatpush1.msra.mxu0 0.0
      %718 = vmatprep.subr.mxu0 0.0
      %719 = vmatpush1.msra.mxu0 0.0
      %720 = vmatprep.subr.mxu0 0.0
      %721 = vmatpush1.msra.mxu0 0.0
      %722 = vmatprep.subr.mxu0 0.0
      %723 = vmatpush1.msra.mxu0 0.0
      %724 = vmatprep.subr.mxu0 0.0
      %725 = vmatpush1.msra.mxu0 0.0
      %726 = vmatprep.subr.mxu0 0.0
      %727 = vmatpush1.msra.mxu0 0.0
      %728 = vmatprep.subr.mxu0 0.0
      %729 = vmatpush1.msra.mxu0 0.0
      %730 = vmatprep.subr.mxu0 0.0
      %731 = vmatpush1.msra.mxu0 0.0
      %732 = vmatprep.subr.mxu0 0.0
      %733 = vmatpush1.msra.mxu0 0.0
      %734 = vmatprep.subr.mxu0 0.0
      %735 = vmatpush1.msra.mxu0 0.0
      %736 = vmatprep.subr.mxu0 0.0
      %737 = vmatpush1.msra.mxu0 0.0
      %738 = vmatprep.subr.mxu0 0.0
      %739 = vmatpush1.msra.mxu0 0.0
      %740 = vmatprep.subr.mxu0 0.0
      %741 = vmatpush1.msra.mxu0 0.0
      %742 = vmatprep.subr.mxu0 0.0
      %743 = vmatpush1.msra.mxu0 0.0
      %744 = vmatprep.subr.mxu0 0.0
      %745 = vmatpush1.msra.mxu0 0.0
      %746 = vmatprep.mubr.f32.mxu0 0.0
      %747 = vmatmul.mubr.f32.gmra.mrb[0].mxu0 %v680
      %v748 = vpop.f32.mrb[0].mxu0
      %v749 = vadd.f32 0.0, %v748
      %v750 = vpop.f32.mrb[0].mxu0
      %751 = vdwg.mxu0
      %753 = vrot.lane.b32.xlu0 %v749, 16
      %v754 = vpop.permute.xlu0 %753
      %vm756 = vcmask 195712
      %757 = vst.msk [vmem:[%s243] sm:$0xff] %vm756, %v754
      %758 = vrot.lane.b32.xlu0 %v249, 104
      %v759 = vpop.permute.xlu0 %758
      %760 = vrot.lane.b32.xlu0 %v245, 104
      %v761 = vpop.permute.xlu0 %760
      %v762 = vsel %vm250, %v759, 0
      %v764 = vsel %vm250, %v761, 0
      %766 = vmatprep.subr.mxu0 0.0
      %767 = vmatpush1.xpose.msra.mxu0 %v764
      %768 = vmatprep.subr.mxu0 0.0
      %769 = vmatpush1.xpose.msra.mxu0 0.0
      %770 = vmatprep.subr.mxu0 0.0
      %771 = vmatpush1.xpose.msra.mxu0 0.0
      %772 = vmatprep.subr.mxu0 0.0
      %773 = vmatpush1.xpose.msra.mxu0 0.0
      %774 = vmatprep.subr.mxu0 0.0
      %775 = vmatpush1.xpose.msra.mxu0 0.0
      %776 = vmatprep.subr.mxu0 0.0
      %777 = vmatpush1.xpose.msra.mxu0 0.0
      %778 = vmatprep.subr.mxu0 0.0
      %779 = vmatpush1.xpose.msra.mxu0 0.0
      %780 = vmatprep.subr.mxu0 0.0
      %781 = vmatpush1.xpose.msra.mxu0 0.0
      %782 = vmatprep.subr.mxu0 0.0
      %783 = vmatpush1.xpose.msra.mxu0 0.0
      %784 = vmatprep.subr.mxu0 0.0
      %785 = vmatpush1.xpose.msra.mxu0 0.0
      %786 = vmatprep.subr.mxu0 0.0
      %787 = vmatpush1.xpose.msra.mxu0 0.0
      %788 = vmatprep.subr.mxu0 0.0
      %789 = vmatpush1.xpose.msra.mxu0 0.0
      %790 = vmatprep.subr.mxu0 0.0
      %791 = vmatpush1.xpose.msra.mxu0 0.0
      %792 = vmatprep.subr.mxu0 0.0
      %793 = vmatpush1.xpose.msra.mxu0 0.0
      %794 = vmatprep.subr.mxu0 0.0
      %795 = vmatpush1.xpose.msra.mxu0 0.0
      %796 = vmatprep.subr.mxu0 0.0
      %797 = vmatpush1.xpose.msra.mxu0 0.0
      %798 = vmatprep.subr.mxu0 0.0
      %799 = vmatpush1.xpose.msra.mxu0 0.0
      %800 = vmatprep.subr.mxu0 0.0
      %801 = vmatpush1.xpose.msra.mxu0 0.0
      %802 = vmatprep.subr.mxu0 0.0
      %803 = vmatpush1.xpose.msra.mxu0 0.0
      %804 = vmatprep.subr.mxu0 0.0
      %805 = vmatpush1.xpose.msra.mxu0 0.0
      %806 = vmatprep.subr.mxu0 0.0
      %807 = vmatpush1.xpose.msra.mxu0 0.0
      %808 = vmatprep.subr.mxu0 0.0
      %809 = vmatpush1.xpose.msra.mxu0 0.0
      %810 = vmatprep.subr.mxu0 0.0
      %811 = vmatpush1.xpose.msra.mxu0 0.0
      %812 = vmatprep.subr.mxu0 0.0
      %813 = vmatpush1.xpose.msra.mxu0 0.0
      %814 = vmatprep.subr.mxu0 0.0
      %815 = vmatpush1.xpose.msra.mxu0 0.0
      %816 = vmatprep.subr.mxu0 0.0
      %817 = vmatpush1.xpose.msra.mxu0 0.0
      %818 = vmatprep.subr.mxu0 0.0
      %819 = vmatpush1.xpose.msra.mxu0 0.0
      %820 = vmatprep.subr.mxu0 0.0
      %821 = vmatpush1.xpose.msra.mxu0 0.0
      %822 = vmatprep.subr.mxu0 0.0
      %823 = vmatpush1.xpose.msra.mxu0 0.0
      %824 = vmatprep.subr.mxu0 0.0
      %825 = vmatpush1.xpose.msra.mxu0 0.0
      %826 = vmatprep.subr.mxu0 0.0
      %827 = vmatpush1.xpose.msra.mxu0 0.0
      %828 = vmatprep.subr.mxu0 0.0
      %829 = vmatpush1.xpose.msra.mxu0 0.0
      %830 = vmatprep.mubr.f32.mxu0 0.0
      %831 = vmatmul.mubr.f32.gmra.mrb[0].mxu0 %v762
      %v832 = vpop.f32.mrb[0].mxu0
      %v833 = vadd.f32 0.0, %v832
      %v834 = vpop.f32.mrb[0].mxu0
      %835 = vdwg.mxu0
      %v836 = vsel %vm248, %v833, -1e+09
      %v837 = vsel %vm250, %v836, -inf
      %838 = vmax.xlane.f32.xlu0 %v837
      %v839 = vpop.xlane.xlu0 %838
      %v840 = vsub.f32 %v836, %v839
      %v841 = vmul.f32 %v840, 1.442695
      %v842 = vpow.pop %v841
      %v843 = vsel %vm250, %v842, 0.0
      %844 = vadd.xlane.f32.xlu0 %v843
      %v845 = vpop.xlane.xlu0 %844
      %v846 = vrcp.pop %v845
      %v847 = vmul.f32 %v842, %v846
      %848 = vrot.lane.b32.xlu0 %v246, 104
      %v849 = vpop.permute.xlu0 %848
      %v852 = vsel %vm250, %v847, 0
      %854 = vmatprep.subr.mxu0 0.0
      %855 = vmatpush1.msra.mxu0 %v849
      %856 = vmatprep.subr.mxu0 0.0
      %857 = vmatpush1.msra.mxu0 0.0
      %858 = vmatprep.subr.mxu0 0.0
      %859 = vmatpush1.msra.mxu0 0.0
      %860 = vmatprep.subr.mxu0 0.0
      %861 = vmatpush1.msra.mxu0 0.0
      %862 = vmatprep.subr.mxu0 0.0
      %863 = vmatpush1.msra.mxu0 0.0
      %864 = vmatprep.subr.mxu0 0.0
      %865 = vmatpush1.msra.mxu0 0.0
      %866 = vmatprep.subr.mxu0 0.0
      %867 = vmatpush1.msra.mxu0 0.0
      %868 = vmatprep.subr.mxu0 0.0
      %869 = vmatpush1.msra.mxu0 0.0
      %870 = vmatprep.subr.mxu0 0.0
      %871 = vmatpush1.msra.mxu0 0.0
      %872 = vmatprep.subr.mxu0 0.0
      %873 = vmatpush1.msra.mxu0 0.0
      %874 = vmatprep.subr.mxu0 0.0
      %875 = vmatpush1.msra.mxu0 0.0
      %876 = vmatprep.subr.mxu0 0.0
      %877 = vmatpush1.msra.mxu0 0.0
      %878 = vmatprep.subr.mxu0 0.0
      %879 = vmatpush1.msra.mxu0 0.0
      %880 = vmatprep.subr.mxu0 0.0
      %881 = vmatpush1.msra.mxu0 0.0
      %882 = vmatprep.subr.mxu0 0.0
      %883 = vmatpush1.msra.mxu0 0.0
      %884 = vmatprep.subr.mxu0 0.0
      %885 = vmatpush1.msra.mxu0 0.0
      %886 = vmatprep.subr.mxu0 0.0
      %887 = vmatpush1.msra.mxu0 0.0
      %888 = vmatprep.subr.mxu0 0.0
      %889 = vmatpush1.msra.mxu0 0.0
      %890 = vmatprep.subr.mxu0 0.0
      %891 = vmatpush1.msra.mxu0 0.0
      %892 = vmatprep.subr.mxu0 0.0
      %893 = vmatpush1.msra.mxu0 0.0
      %894 = vmatprep.subr.mxu0 0.0
      %895 = vmatpush1.msra.mxu0 0.0
      %896 = vmatprep.subr.mxu0 0.0
      %897 = vmatpush1.msra.mxu0 0.0
      %898 = vmatprep.subr.mxu0 0.0
      %899 = vmatpush1.msra.mxu0 0.0
      %900 = vmatprep.subr.mxu0 0.0
      %901 = vmatpush1.msra.mxu0 0.0
      %902 = vmatprep.subr.mxu0 0.0
      %903 = vmatpush1.msra.mxu0 0.0
      %904 = vmatprep.subr.mxu0 0.0
      %905 = vmatpush1.msra.mxu0 0.0
      %906 = vmatprep.subr.mxu0 0.0
      %907 = vmatpush1.msra.mxu0 0.0
      %908 = vmatprep.subr.mxu0 0.0
      %909 = vmatpush1.msra.mxu0 0.0
      %910 = vmatprep.subr.mxu0 0.0
      %911 = vmatpush1.msra.mxu0 0.0
      %912 = vmatprep.subr.mxu0 0.0
      %913 = vmatpush1.msra.mxu0 0.0
      %914 = vmatprep.subr.mxu0 0.0
      %915 = vmatpush1.msra.mxu0 0.0
      %916 = vmatprep.subr.mxu0 0.0
      %917 = vmatpush1.msra.mxu0 0.0
      %918 = vmatprep.mubr.f32.mxu0 0.0
      %919 = vmatmul.mubr.f32.gmra.mrb[0].mxu0 %v852
      %v920 = vpop.f32.mrb[0].mxu0
      %v921 = vadd.f32 0.0, %v920
      %v922 = vpop.f32.mrb[0].mxu0
      %923 = vdwg.mxu0
      %925 = vrot.lane.b32.xlu0 %v921, 24
      %v926 = vpop.permute.xlu0 %925
      %vm928 = vcmask 261312
      %929 = vst.msk [vmem:[%s243] sm:$0xff] %vm928, %v926
      %p930 = scmp.lt.s32.totalorder %s15, 1
      %s931 = scalar_select %p930, %s15, 1
      %s932 = smul.addr %s931, 8
      %s933 = scalar_lea.vmem %s4, %s932
      // Predicated region
      $region37: #{decoder_forward.18} parent=35 // pred_check
        %p934 = pneg %p137
      $region38: #{decoder_forward.18} parent=35 // pred_check_branch
        %936 = sbr.rel (%p934) target = $region40
      $region39: #{decoder_forward.18} parent=35 // pred_region
        _
      $region40: #{decoder_forward.18} parent=35 // pred_fallthru
        _
    $region36: #{decoder_forward.18} parent=5 // pred_fallthru
      _
    %p937 = scmp.le.s32.totalorder 2, %s10
    // Predicated region
    $region41: #{decoder_forward.18} parent=5 // pred_check
      %p938 = pneg %p937
    $region42: #{decoder_forward.18} parent=5 // pred_check_branch
      %940 = sbr.rel (%p938) target = $region44
    $region43: #{decoder_forward.18} parent=5 // pred_region
      %s941 = ssub.s32 %s10, 2
      // Predicated region
      $region45: #{decoder_forward.18} parent=43 // pred_check
        %p942 = pneg %p143
      $region46: #{decoder_forward.18} parent=43 // pred_check_branch
        %944 = sbr.rel (%p942) target = $region48
      $region47: #{decoder_forward.18} parent=43 // pred_region
        %p945 = scmp.lt.s32.totalorder %s16, 1
        %s946 = scalar_select %p945, %s16, 1
        %s947 = smul.addr %s946, 8
        %s948 = scalar_lea.vmem %s4, %s947
      $region48: #{decoder_forward.18} parent=43 // pred_fallthru
        _
    $region44: #{decoder_forward.18} parent=5 // pred_fallthru
      _
  $region6: #{decoder_forward.18} parent=0 // loop_footer
    %s14 = sadd.s32 1, %s10
  $region7: #{decoder_forward.18} parent=0 // loop_footer_branch
    %9 = sbr.rel target = $region3
  $region8: #{decoder_forward.18} parent=0 // loop_exit
    _

// kernel: decoder_forward.33
$region0: #{decoder_forward.33}
  #allocation0 [shape = 'u32[]', space=smem, size = 0x4, offset = 0x4, fixed_abs, tag = 'smem constant byte address 0x4 - core index']
  #allocation1 [shape = 'u32[144,128]{1,0:T(1,128)}', space=vmem, size = 0x12000, scoped, tag = 'internal scratch']
  %s0 = inlined_call_operand.vmem [shape: f32[16,32], index: 0, kind: input, shape index: {}]
  %s1 = inlined_call_operand.vmem [shape: f32[1,32], index: 1, kind: input, shape index: {}]
  %s2 = inlined_call_operand.vmem [shape: f32[1,32], index: 2, kind: input, shape index: {}]
  %s3 = inlined_call_operand.hbm [shape: f32[16,32], index: 3, kind: output, shape index: {}]
  %s4 = sld [smem:[#allocation0]]
  $region22: #{decoder_forward.33} parent=0
    _
  %s6 = ssub.s32 1, %s4
  %s7 = scalar_select 0, %s6, %s4
  $region1: #{decoder_forward.33} parent=0
    #allocation2 [shape = 'u8[8192]{0}', space=vmem, size = 0x2000, scoped, tag = 'output window, operand 0, single buffered']
    #allocation3 [shape = 's32[1]{0}', space=sflag, size = 0x4, scoped, tag = 'scoped memory for decoder_forward.33']
    %8 = vsyncpa [#allocation3], 0
    // Predicated region
    $region2: #{decoder_forward.33} parent=1 // pred_check
      _
    $region3: #{decoder_forward.33} parent=1 // pred_check_branch
      %10 = sbr.rel (0) target = $region5
    $region4: #{decoder_forward.33} parent=1 // pred_region
      _
    $region5: #{decoder_forward.33} parent=1 // pred_fallthru
      _
    // Predicated region
    $region6: #{decoder_forward.33} parent=1 // pred_check
      _
    $region7: #{decoder_forward.33} parent=1 // pred_check_branch
      %12 = sbr.rel (0) target = $region9
    $region8: #{decoder_forward.33} parent=1 // pred_region
      _
    $region9: #{decoder_forward.33} parent=1 // pred_fallthru
      _
    // Predicated region
    $region10: #{decoder_forward.33} parent=1 // pred_check
      _
    $region11: #{decoder_forward.33} parent=1 // pred_check_branch
      %14 = sbr.rel (0) target = $region13
    $region12: #{decoder_forward.33} parent=1 // pred_region
      _
    $region13: #{decoder_forward.33} parent=1 // pred_fallthru
      _
    %v15 = vld [vmem:[%s0] sm:$0xff]
    %v16 = vld [vmem:[%s0 + $0x8] sm:$0xff]
    %v17 = vld [vmem:[%s1] sm:$0x1]
    %v18 = vld [vmem:[%s2] sm:$0x1]
    %vm19 = vcmask 261120
    %v20 = vsel %vm19, %v15, 0.0
    %21 = vadd.xlane.f32.xlu0 %v20
    %v22 = vpop.xlane.xlu0 %21
    %v23 = vsel %vm19, %v16, 0.0
    %24 = vadd.xlane.f32.xlu0 %v23
    %v25 = vpop.xlane.xlu0 %24
    %v26 = vrcp.pop 32.0
    %v27 = vmul.f32 %v22, %v26
    %v28 = vmul.f32 %v25, %v26
    %v29 = vsub.f32 %v15, %v27
    %v30 = vsub.f32 %v16, %v28
    %v31 = vmul.f32 %v29, %v29
    %v32 = vmul.f32 %v30, %v30
    %v33 = vsel %vm19, %v31, 0.0
    %34 = vadd.xlane.f32.xlu0 %v33
    %v35 = vpop.xlane.xlu0 %34
    %v36 = vsel %vm19, %v32, 0.0
    %37 = vadd.xlane.f32.xlu0 %v36
    %v38 = vpop.xlane.xlu0 %37
    %v39 = vrcp.pop 31.0
    %v40 = vmul.f32 %v35, %v39
    %v41 = vmul.f32 %v38, %v39
    %v42 = vrsqrt.pop %v40
    %v43 = vmul.f32 %v40, %v42
    %vm44 = vcmp.eq.f32.partialorder %v40, inf
    %v45 = vsel %vm44, %v40, %v43
    %vm46 = vcmp.eq.f32.partialorder %v40, 0.0
    %v47 = vand.u32 %v40, 2147483648
    %v48 = vsel %vm46, %v47, %v45
    %v49 = vrsqrt.pop %v41
    %v50 = vmul.f32 %v41, %v49
    %vm51 = vcmp.eq.f32.partialorder %v41, inf
    %v52 = vsel %vm51, %v41, %v50
    %vm53 = vcmp.eq.f32.partialorder %v41, 0.0
    %v54 = vand.u32 %v41, 2147483648
    %v55 = vsel %vm53, %v54, %v52
    %v56 = vadd.f32 %v48, 1e-06
    %v57 = vadd.f32 %v55, 1e-06
    %v58 = vrcp.pop %v56
    %v59 = vrcp.pop %v57
    %v61 = vlaneseq
    %v62 = vshrl.u32 %v61, 7
    %v63 = vsub.s32 0, %v62
    %v64 = vrot.slane %v17, %v63
    %v66 = vmul.f32 %v64, %v29
    %v67 = vmul.f32 %v64, %v30
    %v68 = vmul.f32 %v66, %v58
    %v69 = vmul.f32 %v67, %v59
    %v71 = vlaneseq
    %v72 = vshrl.u32 %v71, 7
    %v73 = vsub.s32 0, %v72
    %v74 = vrot.slane %v18, %v73
    %v76 = vadd.f32 %v68, %v74
    %v77 = vadd.f32 %v69, %v74
    %78 = vst.msk [vmem:[#allocation2] sm:$0xff] %vm19, %v76
    %79 = vst.msk [vmem:[#allocation2 + $0x8] sm:$0xff] %vm19, %v77
    // Predicated region
    $region14: #{decoder_forward.33} parent=1 // pred_check
      _
    $region15: #{decoder_forward.33} parent=1 // pred_check_branch
      %81 = sbr.rel (0) target = $region17
    $region16: #{decoder_forward.33} parent=1 // pred_region
      %s83 = ssub.s32 256, 256
      %84 = vsyncadd [#allocation3], %s83
      %s85 = sshll.u32 [#allocation2], 4
      %s86 = int_to_ptr.vmem [resolvable:$true] %s85
      %91 = dma.vmem_to_hbm [thread:$0]  %s86, 256, %s3, [#allocation3], 128, 128, 8
    $region17: #{decoder_forward.33} parent=1 // pred_fallthru
      _
    // Predicated region
    $region18: #{decoder_forward.33} parent=1 // pred_check
      _
    $region19: #{decoder_forward.33} parent=1 // pred_check_branch
      %93 = sbr.rel (0) target = $region21
    $region20: #{decoder_forward.33} parent=1 // pred_region
      %94 = dma.done [#allocation3], 256
    $region21: #{decoder_forward.33} parent=1 // pred_fallthru
      _
    %95 = vsyncpa [#allocation3], 1

// kernel: decoder_forward.21
$region0: #{decoder_forward.21}
  #allocation0 [shape = 'u32[]', space=smem, size = 0x4, offset = 0x4, fixed_abs, tag = 'smem constant byte address 0x4 - core index']
  #allocation1 [shape = 'u32[144,128]{1,0:T(1,128)}', space=vmem, size = 0x12000, scoped, tag = 'internal scratch']
  %s0 = inlined_call_operand.vmem [shape: f32[16,32], index: 0, kind: input, shape index: {}]
  %s1 = inlined_call_operand.vmem [shape: f32[32,32], index: 1, kind: input, shape index: {}]
  %s2 = inlined_call_operand.vmem [shape: f32[1,32], index: 2, kind: input, shape index: {}]
  %s3 = inlined_call_operand.vmem [shape: f32[32,32], index: 3, kind: input, shape index: {}]
  %s4 = inlined_call_operand.vmem [shape: f32[1,32], index: 4, kind: input, shape index: {}]
  %s5 = inlined_call_operand.vmem [shape: f32[16,32], index: 5, kind: output, shape index: {0}]
  %s6 = inlined_call_operand.vmem [shape: f32[16,32], index: 6, kind: output, shape index: {1}]
  %7 = xla_tuple %s5, %s6
  %s8 = sld [smem:[#allocation0]]
  $region38: #{decoder_forward.21} parent=0
    _
  %s10 = ssub.s32 1, %s8
  %s11 = scalar_select 0, %s10, %s8
  // Predicated region
  $region2: #{decoder_forward.21} parent=0 // pred_check
    _
  $region3: #{decoder_forward.21} parent=0 // pred_check_branch
    %13 = sbr.rel (0) target = $region5
  $region4: #{decoder_forward.21} parent=0 // pred_region
    _
  $region5: #{decoder_forward.21} parent=0 // pred_fallthru
    _
  // Predicated region
  $region6: #{decoder_forward.21} parent=0 // pred_check
    _
  $region7: #{decoder_forward.21} parent=0 // pred_check_branch
    %15 = sbr.rel (0) target = $region9
  $region8: #{decoder_forward.21} parent=0 // pred_region
    _
  $region9: #{decoder_forward.21} parent=0 // pred_fallthru
    _
  // Predicated region
  $region10: #{decoder_forward.21} parent=0 // pred_check
    _
  $region11: #{decoder_forward.21} parent=0 // pred_check_branch
    %17 = sbr.rel (0) target = $region13
  $region12: #{decoder_forward.21} parent=0 // pred_region
    _
  $region13: #{decoder_forward.21} parent=0 // pred_fallthru
    _
  // Predicated region
  $region14: #{decoder_forward.21} parent=0 // pred_check
    _
  $region15: #{decoder_forward.21} parent=0 // pred_check_branch
    %19 = sbr.rel (0) target = $region17
  $region16: #{decoder_forward.21} parent=0 // pred_region
    _
  $region17: #{decoder_forward.21} parent=0 // pred_fallthru
    _
  // Predicated region
  $region18: #{decoder_forward.21} parent=0 // pred_check
    _
  $region19: #{decoder_forward.21} parent=0 // pred_check_branch
    %21 = sbr.rel (0) target = $region21
  $region20: #{decoder_forward.21} parent=0 // pred_region
    _
  $region21: #{decoder_forward.21} parent=0 // pred_fallthru
    _
  %v22 = vld [vmem:[%s0] sm:$0xff]
  %v23 = vld [vmem:[%s0 + $0x8] sm:$0xff]
  %v24 = vld [vmem:[%s1] sm:$0xff]
  %v25 = vld [vmem:[%s1 + $0x8] sm:$0xff]
  %v26 = vld [vmem:[%s1 + $0x10] sm:$0xff]
  %v27 = vld [vmem:[%s1 + $0x18] sm:$0xff]
  %v28 = vld [vmem:[%s2] sm:$0x1]
  %v30 = vlaneseq
  %v31 = vshrl.u32 %v30, 7
  %v32 = vsub.s32 0, %v31
  %v33 = vrot.slane %v28, %v32
  %vm35 = vcmask 261120
  %v37 = vsel %vm35, %v22, 0
  %v40 = vsel %vm35, %v23, 0
  %42 = vmatprep.subr.mxu0 0.0
  %43 = vmatpush1.msra.mxu0 %v24
  %44 = vmatprep.subr.mxu0 0.0
  %45 = vmatpush1.msra.mxu0 %v25
  %46 = vmatprep.subr.mxu0 0.0
  %47 = vmatpush1.msra.mxu0 %v26
  %48 = vmatprep.subr.mxu0 0.0
  %49 = vmatpush1.msra.mxu0 %v27
  %50 = vmatprep.subr.mxu0 0.0
  %51 = vmatpush1.msra.mxu0 0.0
  %52 = vmatprep.subr.mxu0 0.0
  %53 = vmatpush1.msra.mxu0 0.0
  %54 = vmatprep.subr.mxu0 0.0
  %55 = vmatpush1.msra.mxu0 0.0
  %56 = vmatprep.subr.mxu0 0.0
  %57 = vmatpush1.msra.mxu0 0.0
  %58 = vmatprep.subr.mxu0 0.0
  %59 = vmatpush1.msra.mxu0 0.0
  %60 = vmatprep.subr.mxu0 0.0
  %61 = vmatpush1.msra.mxu0 0.0
  %62 = vmatprep.subr.mxu0 0.0
  %63 = vmatpush1.msra.mxu0 0.0
  %64 = vmatprep.subr.mxu0 0.0
  %65 = vmatpush1.msra.mxu0 0.0
  %66 = vmatprep.subr.mxu0 0.0
  %67 = vmatpush1.msra.mxu0 0.0
  %68 = vmatprep.subr.mxu0 0.0
  %69 = vmatpush1.msra.mxu0 0.0
  %70 = vmatprep.subr.mxu0 0.0
  %71 = vmatpush1.msra.mxu0 0.0
  %72 = vmatprep.subr.mxu0 0.0
  %73 = vmatpush1.msra.mxu0 0.0
  %74 = vmatprep.subr.mxu0 0.0
  %75 = vmatpush1.msra.mxu0 0.0
  %76 = vmatprep.subr.mxu0 0.0
  %77 = vmatpush1.msra.mxu0 0.0
  %78 = vmatprep.subr.mxu0 0.0
  %79 = vmatpush1.msra.mxu0 0.0
  %80 = vmatprep.subr.mxu0 0.0
  %81 = vmatpush1.msra.mxu0 0.0
  %82 = vmatprep.subr.mxu0 0.0
  %83 = vmatpush1.msra.mxu0 0.0
  %84 = vmatprep.subr.mxu0 0.0
  %85 = vmatpush1.msra.mxu0 0.0
  %86 = vmatprep.subr.mxu0 0.0
  %87 = vmatpush1.msra.mxu0 0.0
  %88 = vmatprep.subr.mxu0 0.0
  %89 = vmatpush1.msra.mxu0 0.0
  %90 = vmatprep.subr.mxu0 0.0
  %91 = vmatpush1.msra.mxu0 0.0
  %92 = vmatprep.subr.mxu0 0.0
  %93 = vmatpush1.msra.mxu0 0.0
  %94 = vmatprep.subr.mxu0 0.0
  %95 = vmatpush1.msra.mxu0 0.0
  %96 = vmatprep.subr.mxu0 0.0
  %97 = vmatpush1.msra.mxu0 0.0
  %98 = vmatprep.subr.mxu0 0.0
  %99 = vmatpush1.msra.mxu0 0.0
  %100 = vmatprep.subr.mxu0 0.0
  %101 = vmatpush1.msra.mxu0 0.0
  %102 = vmatprep.subr.mxu0 0.0
  %103 = vmatpush1.msra.mxu0 0.0
  %104 = vmatprep.subr.mxu0 0.0
  %105 = vmatpush1.msra.mxu0 0.0
  %106 = vmatprep.mubr.f32.mxu0 0.0
  %107 = vmatmul.mubr.f32.gmra.mrb[0].mxu0 %v37
  %v108 = vpop.f32.mrb[0].mxu0
  %v109 = vadd.f32 %v33, %v108
  %v110 = vpop.f32.mrb[0].mxu0
  %111 = vmatprep.mubr.f32.mxu0 0.0
  %112 = vmatmul.mubr.f32.gmra.mrb[0].mxu0 %v40
  %v113 = vpop.f32.mrb[0].mxu0
  %v114 = vadd.f32 %v33, %v113
  %v115 = vpop.f32.mrb[0].mxu0
  %116 = vdwg.mxu0
  %117 = vst.msk [vmem:[%s5] sm:$0xff] %vm35, %v109
  %118 = vst.msk [vmem:[%s5 + $0x8] sm:$0xff] %vm35, %v114
  %v119 = vld [vmem:[%s3] sm:$0xff]
  %v120 = vld [vmem:[%s3 + $0x8] sm:$0xff]
  %v121 = vld [vmem:[%s3 + $0x10] sm:$0xff]
  %v122 = vld [vmem:[%s3 + $0x18] sm:$0xff]
  %v123 = vld [vmem:[%s4] sm:$0x1]
  %v125 = vlaneseq
  %v126 = vshrl.u32 %v125, 7
  %v127 = vsub.s32 0, %v126
  %v128 = vrot.slane %v123, %v127
  %130 = vmatprep.subr.mxu0 0.0
  %131 = vmatpush1.msra.mxu0 %v119
  %132 = vmatprep.subr.mxu0 0.0
  %133 = vmatpush1.msra.mxu0 %v120
  %134 = vmatprep.subr.mxu0 0.0
  %135 = vmatpush1.msra.mxu0 %v121
  %136 = vmatprep.subr.mxu0 0.0
  %137 = vmatpush1.msra.mxu0 %v122
  %138 = vmatprep.subr.mxu0 0.0
  %139 = vmatpush1.msra.mxu0 0.0
  %140 = vmatprep.subr.mxu0 0.0
  %141 = vmatpush1.msra.mxu0 0.0
  %142 = vmatprep.subr.mxu0 0.0
  %143 = vmatpush1.msra.mxu0 0.0
  %144 = vmatprep.subr.mxu0 0.0
  %145 = vmatpush1.msra.mxu0 0.0
  %146 = vmatprep.subr.mxu0 0.0
  %147 = vmatpush1.msra.mxu0 0.0
  %148 = vmatprep.subr.mxu0 0.0
  %149 = vmatpush1.msra.mxu0 0.0
  %150 = vmatprep.subr.mxu0 0.0
  %151 = vmatpush1.msra.mxu0 0.0
  %152 = vmatprep.subr.mxu0 0.0
  %153 = vmatpush1.msra.mxu0 0.0
  %154 = vmatprep.subr.mxu0 0.0
  %155 = vmatpush1.msra.mxu0 0.0
  %156 = vmatprep.subr.mxu0 0.0
  %157 = vmatpush1.msra.mxu0 0.0
  %158 = vmatprep.subr.mxu0 0.0
  %159 = vmatpush1.msra.mxu0 0.0
  %160 = vmatprep.subr.mxu0 0.0
  %161 = vmatpush1.msra.mxu0 0.0
  %162 = vmatprep.subr.mxu0 0.0
  %163 = vmatpush1.msra.mxu0 0.0
  %164 = vmatprep.subr.mxu0 0.0
  %165 = vmatpush1.msra.mxu0 0.0
  %166 = vmatprep.subr.mxu0 0.0
  %167 = vmatpush1.msra.mxu0 0.0
  %168 = vmatprep.subr.mxu0 0.0
  %169 = vmatpush1.msra.mxu0 0.0
  %170 = vmatprep.subr.mxu0 0.0
  %171 = vmatpush1.msra.mxu0 0.0
  %172 = vmatprep.subr.mxu0 0.0
  %173 = vmatpush1.msra.mxu0 0.0
  %174 = vmatprep.subr.mxu0 0.0
  %175 = vmatpush1.msra.mxu0 0.0
  %176 = vmatprep.subr.mxu0 0.0
  %177 = vmatpush1.msra.mxu0 0.0
  %178 = vmatprep.subr.mxu0 0.0
  %179 = vmatpush1.msra.mxu0 0.0
  %180 = vmatprep.subr.mxu0 0.0
  %181 = vmatpush1.msra.mxu0 0.0
  %182 = vmatprep.subr.mxu0 0.0
  %183 = vmatpush1.msra.mxu0 0.0
  %184 = vmatprep.subr.mxu0 0.0
  %185 = vmatpush1.msra.mxu0 0.0
  %186 = vmatprep.subr.mxu0 0.0
  %187 = vmatpush1.msra.mxu0 0.0
  %188 = vmatprep.subr.mxu0 0.0
  %189 = vmatpush1.msra.mxu0 0.0
  %190 = vmatprep.subr.mxu0 0.0
  %191 = vmatpush1.msra.mxu0 0.0
  %192 = vmatprep.subr.mxu0 0.0
  %193 = vmatpush1.msra.mxu0 0.0
  %194 = vmatprep.mubr.f32.mxu0 0.0
  %195 = vmatmul.mubr.f32.gmra.mrb[0].mxu0 %v37
  %v196 = vpop.f32.mrb[0].mxu0
  %v197 = vadd.f32 %v128, %v196
  %v198 = vpop.f32.mrb[0].mxu0
  %199 = vmatprep.mubr.f32.mxu0 0.0
  %200 = vmatmul.mubr.f32.gmra.mrb[0].mxu0 %v40
  %v201 = vpop.f32.mrb[0].mxu0
  %v202 = vadd.f32 %v128, %v201
  %v203 = vpop.f32.mrb[0].mxu0
  %204 = vdwg.mxu0
  %205 = vst.msk [vmem:[%s6] sm:$0xff] %vm35, %v197
  %206 = vst.msk [vmem:[%s6 + $0x8] sm:$0xff] %vm35, %v202
  // Predicated region
  $region22: #{decoder_forward.21} parent=0 // pred_check
    _
  $region23: #{decoder_forward.21} parent=0 // pred_check_branch
    %208 = sbr.rel (0) target = $region25
  $region24: #{decoder_forward.21} parent=0 // pred_region
    _
  $region25: #{decoder_forward.21} parent=0 // pred_fallthru
    _
  // Predicated region
  $region26: #{decoder_forward.21} parent=0 // pred_check
    _
  $region27: #{decoder_forward.21} parent=0 // pred_check_branch
    %210 = sbr.rel (0) target = $region29
  $region28: #{decoder_forward.21} parent=0 // pred_region
    _
  $region29: #{decoder_forward.21} parent=0 // pred_fallthru
    _
  // Predicated region
  $region30: #{decoder_forward.21} parent=0 // pred_check
    _
  $region31: #{decoder_forward.21} parent=0 // pred_check_branch
    %212 = sbr.rel (0) target = $region33
  $region32: #{decoder_forward.21} parent=0 // pred_region
    _
  $region33: #{decoder_forward.21} parent=0 // pred_fallthru
    _
  // Predicated region
  $region34: #{decoder_forward.21} parent=0 // pred_check
    _
  $region35: #{decoder_forward.21} parent=0 // pred_check_branch
    %214 = sbr.rel (0) target = $region37
  $region36: #{decoder_forward.21} parent=0 // pred_region
    _
  $region37: #{decoder_forward.21} parent=0 // pred_fallthru
    _

// kernel: decoder_forward.24
$region0: #{decoder_forward.24}
  #allocation0 [shape = 'u32[]', space=smem, size = 0x4, offset = 0x4, fixed_abs, tag = 'smem constant byte address 0x4 - core index']
  #allocation1 [shape = 'u32[144,128]{1,0:T(1,128)}', space=vmem, size = 0x12000, scoped, tag = 'internal scratch']
  #allocation2 [shape = 'f32[16,32]{1,0:T(8,128)}', space=vmem, size = 0x2000, scoped, tag = 'scratch operand']
  #allocation3 [shape = 'f32[16,32]{1,0:T(8,128)}', space=vmem, size = 0x2000, scoped, tag = 'scratch operand']
  %s0 = inlined_call_operand.vmem [shape: f32[16,32], index: 0, kind: input, shape index: {}]
  %s1 = inlined_call_operand.vmem [shape: f32[1,32], index: 1, kind: input, shape index: {}]
  %s2 = inlined_call_operand.vmem [shape: f32[1,32], index: 2, kind: input, shape index: {}]
  %s3 = inlined_call_operand.vmem [shape: f32[32,64], index: 3, kind: input, shape index: {}]
  %s4 = inlined_call_operand.vmem [shape: f32[1,64], index: 4, kind: input, shape index: {}]
  %s5 = inlined_call_operand.vmem [shape: f32[64,32], index: 5, kind: input, shape index: {}]
  %s6 = inlined_call_operand.vmem [shape: f32[1,32], index: 6, kind: input, shape index: {}]
  %s7 = inlined_call_operand.vmem [shape: f32[16,32], index: 7, kind: output, shape index: {}]
  %s8 = sld [smem:[#allocation0]]
  $region46: #{decoder_forward.24} parent=0
    _
  %s10 = ssub.s32 1, %s8
  %s11 = scalar_select 0, %s10, %s8
  // Predicated region
  $region2: #{decoder_forward.24} parent=0 // pred_check
    _
  $region3: #{decoder_forward.24} parent=0 // pred_check_branch
    %13 = sbr.rel (0) target = $region5
  $region4: #{decoder_forward.24} parent=0 // pred_region
    _
  $region5: #{decoder_forward.24} parent=0 // pred_fallthru
    _
  // Predicated region
  $region6: #{decoder_forward.24} parent=0 // pred_check
    _
  $region7: #{decoder_forward.24} parent=0 // pred_check_branch
    %15 = sbr.rel (0) target = $region9
  $region8: #{decoder_forward.24} parent=0 // pred_region
    _
  $region9: #{decoder_forward.24} parent=0 // pred_fallthru
    _
  // Predicated region
  $region10: #{decoder_forward.24} parent=0 // pred_check
    _
  $region11: #{decoder_forward.24} parent=0 // pred_check_branch
    %17 = sbr.rel (0) target = $region13
  $region12: #{decoder_forward.24} parent=0 // pred_region
    _
  $region13: #{decoder_forward.24} parent=0 // pred_fallthru
    _
  // Predicated region
  $region14: #{decoder_forward.24} parent=0 // pred_check
    _
  $region15: #{decoder_forward.24} parent=0 // pred_check_branch
    %19 = sbr.rel (0) target = $region17
  $region16: #{decoder_forward.24} parent=0 // pred_region
    _
  $region17: #{decoder_forward.24} parent=0 // pred_fallthru
    _
  // Predicated region
  $region18: #{decoder_forward.24} parent=0 // pred_check
    _
  $region19: #{decoder_forward.24} parent=0 // pred_check_branch
    %21 = sbr.rel (0) target = $region21
  $region20: #{decoder_forward.24} parent=0 // pred_region
    _
  $region21: #{decoder_forward.24} parent=0 // pred_fallthru
    _
  // Predicated region
  $region22: #{decoder_forward.24} parent=0 // pred_check
    _
  $region23: #{decoder_forward.24} parent=0 // pred_check_branch
    %23 = sbr.rel (0) target = $region25
  $region24: #{decoder_forward.24} parent=0 // pred_region
    _
  $region25: #{decoder_forward.24} parent=0 // pred_fallthru
    _
  // Predicated region
  $region26: #{decoder_forward.24} parent=0 // pred_check
    _
  $region27: #{decoder_forward.24} parent=0 // pred_check_branch
    %25 = sbr.rel (0) target = $region29
  $region28: #{decoder_forward.24} parent=0 // pred_region
    _
  $region29: #{decoder_forward.24} parent=0 // pred_fallthru
    _
  %p26 = scmp.eq.s32.totalorder 0, 0
  // Predicated region
  $region30: #{decoder_forward.24} parent=0 // pred_check
    %p27 = pneg %p26
  $region31: #{decoder_forward.24} parent=0 // pred_check_branch
    %29 = sbr.rel (%p27) target = $region33
  $region32: #{decoder_forward.24} parent=0 // pred_region
    %v30 = vld [vmem:[%s0] sm:$0xff]
    %v31 = vld [vmem:[%s0 + $0x8] sm:$0xff]
    %v32 = vld [vmem:[%s1] sm:$0x1]
    %v33 = vld [vmem:[%s2] sm:$0x1]
    %vm34 = vcmask 261120
    %v35 = vsel %vm34, %v30, 0.0
    %36 = vadd.xlane.f32.xlu0 %v35
    %v37 = vpop.xlane.xlu0 %36
    %v38 = vsel %vm34, %v31, 0.0
    %39 = vadd.xlane.f32.xlu0 %v38
    %v40 = vpop.xlane.xlu0 %39
    %v41 = vrcp.pop 32.0
    %v42 = vmul.f32 %v37, %v41
    %v43 = vmul.f32 %v40, %v41
    %v44 = vsub.f32 %v30, %v42
    %v45 = vsub.f32 %v31, %v43
    %v46 = vmul.f32 %v44, %v44
    %v47 = vmul.f32 %v45, %v45
    %v48 = vsel %vm34, %v46, 0.0
    %49 = vadd.xlane.f32.xlu0 %v48
    %v50 = vpop.xlane.xlu0 %49
    %v51 = vsel %vm34, %v47, 0.0
    %52 = vadd.xlane.f32.xlu0 %v51
    %v53 = vpop.xlane.xlu0 %52
    %v54 = vrcp.pop 31.0
    %v55 = vmul.f32 %v50, %v54
    %v56 = vmul.f32 %v53, %v54
    %v57 = vrsqrt.pop %v55
    %v58 = vmul.f32 %v55, %v57
    %vm59 = vcmp.eq.f32.partialorder %v55, inf
    %v60 = vsel %vm59, %v55, %v58
    %vm61 = vcmp.eq.f32.partialorder %v55, 0.0
    %v62 = vand.u32 %v55, 2147483648
    %v63 = vsel %vm61, %v62, %v60
    %v64 = vrsqrt.pop %v56
    %v65 = vmul.f32 %v56, %v64
    %vm66 = vcmp.eq.f32.partialorder %v56, inf
    %v67 = vsel %vm66, %v56, %v65
    %vm68 = vcmp.eq.f32.partialorder %v56, 0.0
    %v69 = vand.u32 %v56, 2147483648
    %v70 = vsel %vm68, %v69, %v67
    %v71 = vadd.f32 %v63, 1e-06
    %v72 = vadd.f32 %v70, 1e-06
    %v73 = vrcp.pop %v71
    %v74 = vrcp.pop %v72
    %v76 = vlaneseq
    %v77 = vshrl.u32 %v76, 7
    %v78 = vsub.s32 0, %v77
    %v79 = vrot.slane %v32, %v78
    %v81 = vmul.f32 %v79, %v44
    %v82 = vmul.f32 %v79, %v45
    %v83 = vmul.f32 %v81, %v73
    %v84 = vmul.f32 %v82, %v74
    %v86 = vlaneseq
    %v87 = vshrl.u32 %v86, 7
    %v88 = vsub.s32 0, %v87
    %v89 = vrot.slane %v33, %v88
    %v91 = vadd.f32 %v83, %v89
    %v92 = vadd.f32 %v84, %v89
    %93 = vst.msk [vmem:[#allocation2] sm:$0xff] %vm34, %v91
    %94 = vst.msk [vmem:[#allocation2 + $0x8] sm:$0xff] %vm34, %v92
    %95 = vst.msk [vmem:[#allocation3] sm:$0xff] %vm34, 0.0
    %96 = vst.msk [vmem:[#allocation3 + $0x8] sm:$0xff] %vm34, 0.0
  $region33: #{decoder_forward.24} parent=0 // pred_fallthru
    _
  %v97 = vld [vmem:[#allocation2] sm:$0xff]
  %v98 = vld [vmem:[#allocation2 + $0x8] sm:$0xff]
  %v99 = vld [vmem:[%s3] sm:$0xff]
  %v100 = vld [vmem:[%s3 + $0x8] sm:$0xff]
  %v101 = vld [vmem:[%s3 + $0x10] sm:$0xff]
  %v102 = vld [vmem:[%s3 + $0x18] sm:$0xff]
  %v103 = vld [vmem:[%s4] sm:$0x1]
  %v105 = vlaneseq
  %v106 = vshrl.u32 %v105, 7
  %v107 = vsub.s32 0, %v106
  %v108 = vrot.slane %v103, %v107
  %vm110 = vcmask 261120
  %v112 = vsel %vm110, %v97, 0
  %v115 = vsel %vm110, %v98, 0
  %117 = vmatprep.subr.mxu0 0.0
  %118 = vmatpush1.msra.mxu0 %v99
  %119 = vmatprep.subr.mxu0 0.0
  %120 = vmatpush1.msra.mxu0 %v100
  %121 = vmatprep.subr.mxu0 0.0
  %122 = vmatpush1.msra.mxu0 %v101
  %123 = vmatprep.subr.mxu0 0.0
  %124 = vmatpush1.msra.mxu0 %v102
  %125 = vmatprep.subr.mxu0 0.0
  %126 = vmatpush1.msra.mxu0 0.0
  %127 = vmatprep.subr.mxu0 0.0
  %128 = vmatpush1.msra.mxu0 0.0
  %129 = vmatprep.subr.mxu0 0.0
  %130 = vmatpush1.msra.mxu0 0.0
  %131 = vmatprep.subr.mxu0 0.0
  %132 = vmatpush1.msra.mxu0 0.0
  %133 = vmatprep.subr.mxu0 0.0
  %134 = vmatpush1.msra.mxu0 0.0
  %135 = vmatprep.subr.mxu0 0.0
  %136 = vmatpush1.msra.mxu0 0.0
  %137 = vmatprep.subr.mxu0 0.0
  %138 = vmatpush1.msra.mxu0 0.0
  %139 = vmatprep.subr.mxu0 0.0
  %140 = vmatpush1.msra.mxu0 0.0
  %141 = vmatprep.subr.mxu0 0.0
  %142 = vmatpush1.msra.mxu0 0.0
  %143 = vmatprep.subr.mxu0 0.0
  %144 = vmatpush1.msra.mxu0 0.0
  %145 = vmatprep.subr.mxu0 0.0
  %146 = vmatpush1.msra.mxu0 0.0
  %147 = vmatprep.subr.mxu0 0.0
  %148 = vmatpush1.msra.mxu0 0.0
  %149 = vmatprep.subr.mxu0 0.0
  %150 = vmatpush1.msra.mxu0 0.0
  %151 = vmatprep.subr.mxu0 0.0
  %152 = vmatpush1.msra.mxu0 0.0
  %153 = vmatprep.subr.mxu0 0.0
  %154 = vmatpush1.msra.mxu0 0.0
  %155 = vmatprep.subr.mxu0 0.0
  %156 = vmatpush1.msra.mxu0 0.0
  %157 = vmatprep.subr.mxu0 0.0
  %158 = vmatpush1.msra.mxu0 0.0
  %159 = vmatprep.subr.mxu0 0.0
  %160 = vmatpush1.msra.mxu0 0.0
  %161 = vmatprep.subr.mxu0 0.0
  %162 = vmatpush1.msra.mxu0 0.0
  %163 = vmatprep.subr.mxu0 0.0
  %164 = vmatpush1.msra.mxu0 0.0
  %165 = vmatprep.subr.mxu0 0.0
  %166 = vmatpush1.msra.mxu0 0.0
  %167 = vmatprep.subr.mxu0 0.0
  %168 = vmatpush1.msra.mxu0 0.0
  %169 = vmatprep.subr.mxu0 0.0
  %170 = vmatpush1.msra.mxu0 0.0
  %171 = vmatprep.subr.mxu0 0.0
  %172 = vmatpush1.msra.mxu0 0.0
  %173 = vmatprep.subr.mxu0 0.0
  %174 = vmatpush1.msra.mxu0 0.0
  %175 = vmatprep.subr.mxu0 0.0
  %176 = vmatpush1.msra.mxu0 0.0
  %177 = vmatprep.subr.mxu0 0.0
  %178 = vmatpush1.msra.mxu0 0.0
  %179 = vmatprep.subr.mxu0 0.0
  %180 = vmatpush1.msra.mxu0 0.0
  %181 = vmatprep.mubr.f32.mxu0 0.0
  %182 = vmatmul.mubr.f32.gmra.mrb[0].mxu0 %v112
  %v183 = vpop.f32.mrb[0].mxu0
  %v184 = vadd.f32 %v108, %v183
  %v185 = vpop.f32.mrb[0].mxu0
  %186 = vmatprep.mubr.f32.mxu0 0.0
  %187 = vmatmul.mubr.f32.gmra.mrb[0].mxu0 %v115
  %v188 = vpop.f32.mrb[0].mxu0
  %v189 = vadd.f32 %v108, %v188
  %v190 = vpop.f32.mrb[0].mxu0
  %191 = vdwg.mxu0
  %v192 = vmax.f32 %v184, 0.0
  %v193 = vmax.f32 %v189, 0.0
  %v194 = vld [vmem:[#allocation3] sm:$0xff]
  %v195 = vld [vmem:[#allocation3 + $0x8] sm:$0xff]
  %v196 = vld [vmem:[%s5] sm:$0xff]
  %v197 = vld [vmem:[%s5 + $0x8] sm:$0xff]
  %v198 = vld [vmem:[%s5 + $0x10] sm:$0xff]
  %v199 = vld [vmem:[%s5 + $0x18] sm:$0xff]
  %v200 = vld [vmem:[%s5 + $0x20] sm:$0xff]
  %v201 = vld [vmem:[%s5 + $0x28] sm:$0xff]
  %v202 = vld [vmem:[%s5 + $0x30] sm:$0xff]
  %v203 = vld [vmem:[%s5 + $0x38] sm:$0xff]
  %vm204 = vcmask 523264
  %v206 = vsel %vm204, %v192, 0
  %v209 = vsel %vm204, %v193, 0
  %211 = vmatprep.subr.mxu0 0.0
  %212 = vmatpush1.msra.mxu0 %v196
  %213 = vmatprep.subr.mxu0 0.0
  %214 = vmatpush1.msra.mxu0 %v197
  %215 = vmatprep.subr.mxu0 0.0
  %216 = vmatpush1.msra.mxu0 %v198
  %217 = vmatprep.subr.mxu0 0.0
  %218 = vmatpush1.msra.mxu0 %v199
  %219 = vmatprep.subr.mxu0 0.0
  %220 = vmatpush1.msra.mxu0 %v200
  %221 = vmatprep.subr.mxu0 0.0
  %222 = vmatpush1.msra.mxu0 %v201
  %223 = vmatprep.subr.mxu0 0.0
  %224 = vmatpush1.msra.mxu0 %v202
  %225 = vmatprep.subr.mxu0 0.0
  %226 = vmatpush1.msra.mxu0 %v203
  %227 = vmatprep.subr.mxu0 0.0
  %228 = vmatpush1.msra.mxu0 0.0
  %229 = vmatprep.subr.mxu0 0.0
  %230 = vmatpush1.msra.mxu0 0.0
  %231 = vmatprep.subr.mxu0 0.0
  %232 = vmatpush1.msra.mxu0 0.0
  %233 = vmatprep.subr.mxu0 0.0
  %234 = vmatpush1.msra.mxu0 0.0
  %235 = vmatprep.subr.mxu0 0.0
  %236 = vmatpush1.msra.mxu0 0.0
  %237 = vmatprep.subr.mxu0 0.0
  %238 = vmatpush1.msra.mxu0 0.0
  %239 = vmatprep.subr.mxu0 0.0
  %240 = vmatpush1.msra.mxu0 0.0
  %241 = vmatprep.subr.mxu0 0.0
  %242 = vmatpush1.msra.mxu0 0.0
  %243 = vmatprep.subr.mxu0 0.0
  %244 = vmatpush1.msra.mxu0 0.0
  %245 = vmatprep.subr.mxu0 0.0
  %246 = vmatpush1.msra.mxu0 0.0
  %247 = vmatprep.subr.mxu0 0.0
  %248 = vmatpush1.msra.mxu0 0.0
  %249 = vmatprep.subr.mxu0 0.0
  %250 = vmatpush1.msra.mxu0 0.0
  %251 = vmatprep.subr.mxu0 0.0
  %252 = vmatpush1.msra.mxu0 0.0
  %253 = vmatprep.subr.mxu0 0.0
  %254 = vmatpush1.msra.mxu0 0.0
  %255 = vmatprep.subr.mxu0 0.0
  %256 = vmatpush1.msra.mxu0 0.0
  %257 = vmatprep.subr.mxu0 0.0
  %258 = vmatpush1.msra.mxu0 0.0
  %259 = vmatprep.subr.mxu0 0.0
  %260 = vmatpush1.msra.mxu0 0.0
  %261 = vmatprep.subr.mxu0 0.0
  %262 = vmatpush1.msra.mxu0 0.0
  %263 = vmatprep.subr.mxu0 0.0
  %264 = vmatpush1.msra.mxu0 0.0
  %265 = vmatprep.subr.mxu0 0.0
  %266 = vmatpush1.msra.mxu0 0.0
  %267 = vmatprep.subr.mxu0 0.0
  %268 = vmatpush1.msra.mxu0 0.0
  %269 = vmatprep.subr.mxu0 0.0
  %270 = vmatpush1.msra.mxu0 0.0
  %271 = vmatprep.subr.mxu0 0.0
  %272 = vmatpush1.msra.mxu0 0.0
  %273 = vmatprep.subr.mxu0 0.0
  %274 = vmatpush1.msra.mxu0 0.0
  %275 = vmatprep.mubr.f32.mxu0 0.0
  %276 = vmatmul.mubr.f32.gmra.mrb[0].mxu0 %v206
  %v277 = vpop.f32.mrb[0].mxu0
  %v278 = vadd.f32 0.0, %v277
  %v279 = vpop.f32.mrb[0].mxu0
  %280 = vmatprep.mubr.f32.mxu0 0.0
  %281 = vmatmul.mubr.f32.gmra.mrb[0].mxu0 %v209
  %v282 = vpop.f32.mrb[0].mxu0
  %v283 = vadd.f32 0.0, %v282
  %v284 = vpop.f32.mrb[0].mxu0
  %285 = vdwg.mxu0
  %v286 = vadd.f32 %v194, %v278
  %v287 = vadd.f32 %v195, %v283
  %288 = vst.msk [vmem:[#allocation3] sm:$0xff] %vm110, %v286
  %289 = vst.msk [vmem:[#allocation3 + $0x8] sm:$0xff] %vm110, %v287
  // Predicated region
  $region34: #{decoder_forward.24} parent=0 // pred_check
    %p290 = pneg %p26
  $region35: #{decoder_forward.24} parent=0 // pred_check_branch
    %292 = sbr.rel (%p290) target = $region37
  $region36: #{decoder_forward.24} parent=0 // pred_region
    %v293 = vld [vmem:[#allocation3] sm:$0xff]
    %v294 = vld [vmem:[#allocation3 + $0x8] sm:$0xff]
    %v295 = vld [vmem:[%s6] sm:$0x1]
    %v297 = vlaneseq
    %v298 = vshrl.u32 %v297, 7
    %v299 = vsub.s32 0, %v298
    %v300 = vrot.slane %v295, %v299
    %v302 = vadd.f32 %v293, %v300
    %v303 = vadd.f32 %v294, %v300
    %v304 = vld [vmem:[%s0] sm:$0xff]
    %v305 = vld [vmem:[%s0 + $0x8] sm:$0xff]
    %v306 = vadd.f32 %v302, %v304
    %v307 = vadd.f32 %v303, %v305
    %308 = vst.msk [vmem:[%s7] sm:$0xff] %vm110, %v306
    %309 = vst.msk [vmem:[%s7 + $0x8] sm:$0xff] %vm110, %v307
  $region37: #{decoder_forward.24} parent=0 // pred_fallthru
    _
  // Predicated region
  $region38: #{decoder_forward.24} parent=0 // pred_check
    _
  $region39: #{decoder_forward.24} parent=0 // pred_check_branch
    %311 = sbr.rel (0) target = $region41
  $region40: #{decoder_forward.24} parent=0 // pred_region
    _
  $region41: #{decoder_forward.24} parent=0 // pred_fallthru
    _
  // Predicated region
  $region42: #{decoder_forward.24} parent=0 // pred_check
    _
  $region43: #{decoder_forward.24} parent=0 // pred_check_branch
    %313 = sbr.rel (0) target = $region45
  $region44: #{decoder_forward.24} parent=0 // pred_region
    _
  $region45: #{decoder_forward.24} parent=0 // pred_fallthru
    _

// kernel: decoder_forward.22
$region0: #{decoder_forward.22}
  #allocation0 [shape = 'u32[]', space=smem, size = 0x4, offset = 0x4, fixed_abs, tag = 'smem constant byte address 0x4 - core index']
  #allocation1 [shape = 'u32[144,128]{1,0:T(1,128)}', space=vmem, size = 0x12000, scoped, tag = 'internal scratch']
  %s0 = inlined_call_operand.vmem [shape: f32[2,8,32], index: 0, kind: input, shape index: {}]
  %s1 = inlined_call_operand.vmem [shape: f32[2,8,32], index: 1, kind: input, shape index: {}]
  %s2 = inlined_call_operand.vmem [shape: f32[2,8,32], index: 2, kind: input, shape index: {}]
  %s3 = inlined_call_operand.vmem [shape: f32[2,1,1,8], index: 3, kind: input, shape index: {}]
  %s4 = inlined_call_operand.vmem [shape: f32[2,8,32], index: 4, kind: output, shape index: {}]
  %s5 = sld [smem:[#allocation0]]
  $region49: #{decoder_forward.22} parent=0
    _
  %s7 = ssub.s32 1, %s5
  %s8 = scalar_select 0, %s7, %s5
  loop: start=0, step=1, limit=4
  $region2: #{decoder_forward.22} parent=0 // loop_pre_header
    _
  $region3: #{decoder_forward.22} parent=0 // loop_header
    %s10 = sphi 0, %s14
    %p11 = scmp.ge.s32.totalorder %s10, 4
    %s20 = sphi 0, %s22
    %s23 = sphi 0, %s20
    %s24 = sphi 0, %s23
    %s40 = sphi 0, %s24
    %s46 = sphi 0, %s48
    %s49 = sphi 0, %s46
    %s50 = sphi 0, %s49
    %s66 = sphi 0, %s50
    %s72 = sphi 0, %s74
    %s75 = sphi 0, %s72
    %s76 = sphi 0, %s75
    %s92 = sphi 0, %s76
    %s98 = sphi 0, %s100
    %s101 = sphi 0, %s98
    %s102 = sphi 0, %s101
    %s118 = sphi 0, %s102
    %s124 = sphi 0, %s126
    %s127 = sphi 0, %s124
    %s128 = sphi 0, %s127
    %s144 = sphi 0, %s128
  $region4: #{decoder_forward.22} parent=0 // loop_header_branch
    %13 = sbr.rel (%p11) target = $region8
  $region5: #{decoder_forward.22} parent=0 // loop_body
    %s15 = ssub.s32 %s10, 1
    %s16 = ssub.s32 %s10, 2
    %s17 = sadd.s32 %s10, 1
    %s18 = ssub.s32 %s10, %s17
    %p19 = scmp.eq.s32.totalorder %s18, 0
    %s21 = sadd.s32 %s20, 1
    %s22 = scalar_select %p19, %s20, %s21
    %p25 = pneg %p19
    %p26 = scmp.eq.s32.totalorder %s10, 1
    %p27 = por %p25, %p26
    %p28 = scmp.ne.s32.totalorder %s20, %s23
    %p29 = scmp.eq.s32.totalorder %s10, 0
    %p30 = por %p28, %p29
    %p31 = scmp.ne.s32.totalorder %s20, %s23
    %p32 = scmp.eq.s32.totalorder %s15, 1
    %p33 = por %p31, %p32
    %p34 = scmp.ne.s32.totalorder %s23, %s24
    %p35 = scmp.eq.s32.totalorder %s15, 0
    %p36 = por %p34, %p35
    %p37 = scmp.ne.s32.totalorder %s23, %s24
    %p38 = scmp.eq.s32.totalorder %s16, 1
    %p39 = por %p37, %p38
    %p41 = scmp.ne.s32.totalorder %s24, %s40
    %p42 = scmp.eq.s32.totalorder %s16, 0
    %p43 = por %p41, %p42
    %s44 = ssub.s32 %s10, %s17
    %p45 = scmp.eq.s32.totalorder %s44, 0
    %s47 = sadd.s32 %s46, 1
    %s48 = scalar_select %p45, %s46, %s47
    %p51 = pneg %p45
    %p52 = scmp.eq.s32.totalorder %s10, 1
    %p53 = por %p51, %p52
    %p54 = scmp.ne.s32.totalorder %s46, %s49
    %p55 = scmp.eq.s32.totalorder %s10, 0
    %p56 = por %p54, %p55
    %p57 = scmp.ne.s32.totalorder %s46, %s49
    %p58 = scmp.eq.s32.totalorder %s15, 1
    %p59 = por %p57, %p58
    %p60 = scmp.ne.s32.totalorder %s49, %s50
    %p61 = scmp.eq.s32.totalorder %s15, 0
    %p62 = por %p60, %p61
    %p63 = scmp.ne.s32.totalorder %s49, %s50
    %p64 = scmp.eq.s32.totalorder %s16, 1
    %p65 = por %p63, %p64
    %p67 = scmp.ne.s32.totalorder %s50, %s66
    %p68 = scmp.eq.s32.totalorder %s16, 0
    %p69 = por %p67, %p68
    %s70 = ssub.s32 %s10, %s17
    %p71 = scmp.eq.s32.totalorder %s70, 0
    %s73 = sadd.s32 %s72, 1
    %s74 = scalar_select %p71, %s72, %s73
    %p77 = pneg %p71
    %p78 = scmp.eq.s32.totalorder %s10, 1
    %p79 = por %p77, %p78
    %p80 = scmp.ne.s32.totalorder %s72, %s75
    %p81 = scmp.eq.s32.totalorder %s10, 0
    %p82 = por %p80, %p81
    %p83 = scmp.ne.s32.totalorder %s72, %s75
    %p84 = scmp.eq.s32.totalorder %s15, 1
    %p85 = por %p83, %p84
    %p86 = scmp.ne.s32.totalorder %s75, %s76
    %p87 = scmp.eq.s32.totalorder %s15, 0
    %p88 = por %p86, %p87
    %p89 = scmp.ne.s32.totalorder %s75, %s76
    %p90 = scmp.eq.s32.totalorder %s16, 1
    %p91 = por %p89, %p90
    %p93 = scmp.ne.s32.totalorder %s76, %s92
    %p94 = scmp.eq.s32.totalorder %s16, 0
    %p95 = por %p93, %p94
    %s96 = ssub.s32 %s10, %s17
    %p97 = scmp.eq.s32.totalorder %s96, 0
    %s99 = sadd.s32 %s98, 1
    %s100 = scalar_select %p97, %s98, %s99
    %p103 = pneg %p97
    %p104 = scmp.eq.s32.totalorder %s10, 1
    %p105 = por %p103, %p104
    %p106 = scmp.ne.s32.totalorder %s98, %s101
    %p107 = scmp.eq.s32.totalorder %s10, 0
    %p108 = por %p106, %p107
    %p109 = scmp.ne.s32.totalorder %s98, %s101
    %p110 = scmp.eq.s32.totalorder %s15, 1
    %p111 = por %p109, %p110
    %p112 = scmp.ne.s32.totalorder %s101, %s102
    %p113 = scmp.eq.s32.totalorder %s15, 0
    %p114 = por %p112, %p113
    %p115 = scmp.ne.s32.totalorder %s101, %s102
    %p116 = scmp.eq.s32.totalorder %s16, 1
    %p117 = por %p115, %p116
    %p119 = scmp.ne.s32.totalorder %s102, %s118
    %p120 = scmp.eq.s32.totalorder %s16, 0
    %p121 = por %p119, %p120
    %s122 = ssub.s32 %s10, %s17
    %p123 = scmp.eq.s32.totalorder %s122, 0
    %s125 = sadd.s32 %s124, 1
    %s126 = scalar_select %p123, %s124, %s125
    %p129 = pneg %p123
    %p130 = scmp.eq.s32.totalorder %s10, 1
    %p131 = por %p129, %p130
    %p132 = scmp.ne.s32.totalorder %s124, %s127
    %p133 = scmp.eq.s32.totalorder %s10, 0
    %p134 = por %p132, %p133
    %p135 = scmp.ne.s32.totalorder %s124, %s127
    %p136 = scmp.eq.s32.totalorder %s15, 1
    %p137 = por %p135, %p136
    %p138 = scmp.ne.s32.totalorder %s127, %s128
    %p139 = scmp.eq.s32.totalorder %s15, 0
    %p140 = por %p138, %p139
    %p141 = scmp.ne.s32.totalorder %s127, %s128
    %p142 = scmp.eq.s32.totalorder %s16, 1
    %p143 = por %p141, %p142
    %p145 = scmp.ne.s32.totalorder %s128, %s144
    %p146 = scmp.eq.s32.totalorder %s16, 0
    %p147 = por %p145, %p146
    %p148 = scmp.le.s32.totalorder 1, %s10
    %p149 = scmp.lt.s32.totalorder %s10, 3
    %p150 = pnand %p148, %p149
    %p151 = pneg %p150
    // Predicated region
    $region9: #{decoder_forward.22} parent=5 // pred_check
      _
    $region10: #{decoder_forward.22} parent=5 // pred_check_branch
      %153 = sbr.rel (%p150) target = $region12
    $region11: #{decoder_forward.22} parent=5 // pred_region
      %s154 = ssub.s32 %s10, 1
    $region12: #{decoder_forward.22} parent=5 // pred_fallthru
      _
    %p155 = scmp.lt.s32.totalorder %s10, 2
    // Predicated region
    $region13: #{decoder_forward.22} parent=5 // pred_check
      %p156 = pneg %p155
    $region14: #{decoder_forward.22} parent=5 // pred_check_branch
      %158 = sbr.rel (%p156) target = $region16
    $region15: #{decoder_forward.22} parent=5 // pred_region
      // Predicated region
      $region17: #{decoder_forward.22} parent=15 // pred_check
        %p159 = pneg %p30
      $region18: #{decoder_forward.22} parent=15 // pred_check_branch
        %161 = sbr.rel (%p159) target = $region20
      $region19: #{decoder_forward.22} parent=15 // pred_region
        %p162 = scmp.lt.s32.totalorder %s10, 1
        %s163 = scalar_select %p162, %s10, 1
        %s164 = smul.addr %s163, 8
        %s165 = scalar_lea.vmem %s0, %s164
      $region20: #{decoder_forward.22} parent=15 // pred_fallthru
        _
      // Predicated region
      $region21: #{decoder_forward.22} parent=15 // pred_check
        %p166 = pneg %p56
      $region22: #{decoder_forward.22} parent=15 // pred_check_branch
        %168 = sbr.rel (%p166) target = $region24
      $region23: #{decoder_forward.22} parent=15 // pred_region
        %p169 = scmp.lt.s32.totalorder %s10, 1
        %s170 = scalar_select %p169, %s10, 1
        %s171 = smul.addr %s170, 8
        %s172 = scalar_lea.vmem %s1, %s171
      $region24: #{decoder_forward.22} parent=15 // pred_fallthru
        _
      // Predicated region
      $region25: #{decoder_forward.22} parent=15 // pred_check
        %p173 = pneg %p82
      $region26: #{decoder_forward.22} parent=15 // pred_check_branch
        %175 = sbr.rel (%p173) target = $region28
      $region27: #{decoder_forward.22} parent=15 // pred_region
        %p176 = scmp.lt.s32.totalorder %s10, 1
        %s177 = scalar_select %p176, %s10, 1
        %s178 = smul.addr %s177, 8
        %s179 = scalar_lea.vmem %s2, %s178
      $region28: #{decoder_forward.22} parent=15 // pred_fallthru
        _
      // Predicated region
      $region29: #{decoder_forward.22} parent=15 // pred_check
        %p180 = pneg %p108
      $region30: #{decoder_forward.22} parent=15 // pred_check_branch
        %182 = sbr.rel (%p180) target = $region32
      $region31: #{decoder_forward.22} parent=15 // pred_region
        %p183 = scmp.lt.s32.totalorder %s10, 1
        %s184 = scalar_select %p183, %s10, 1
        %s185 = scalar_lea.vmem %s3, %s184
      $region32: #{decoder_forward.22} parent=15 // pred_fallthru
        _
    $region16: #{decoder_forward.22} parent=5 // pred_fallthru
      _
    %p186 = scmp.le.s32.totalorder 1, %s10
    %p187 = scmp.lt.s32.totalorder %s10, 3
    %p188 = pnand %p186, %p187
    %p189 = pneg %p188
    // Predicated region
    $region33: #{decoder_forward.22} parent=5 // pred_check
      _
    $region34: #{decoder_forward.22} parent=5 // pred_check_branch
      %191 = sbr.rel (%p188) target = $region36
    $region35: #{decoder_forward.22} parent=5 // pred_region
      %s192 = ssub.s32 %s10, 1
      %p193 = scmp.lt.s32.totalorder %s15, 1
      %s194 = scalar_select %p193, %s15, 1
      %s195 = smul.addr %s194, 8
      %s196 = scalar_lea.vmem %s0, %s195
      %p197 = pneg %p36
      %p198 = pneg %p33
      %p199 = scmp.lt.s32.totalorder %s15, 1
      %s200 = scalar_select %p199, %s15, 1
      %s201 = smul.addr %s200, 8
      %s202 = scalar_lea.vmem %s1, %s201
      %p203 = pneg %p62
      %p204 = pneg %p59
      %p205 = scmp.lt.s32.totalorder %s15, 1
      %s206 = scalar_select %p205, %s15, 1
      %s207 = smul.addr %s206, 8
      %s208 = scalar_lea.vmem %s2, %s207
      %p209 = pneg %p88
      %p210 = pneg %p85
      %p211 = scmp.lt.s32.totalorder %s15, 1
      %s212 = scalar_select %p211, %s15, 1
      %s213 = scalar_lea.vmem %s3, %s212
      %p214 = pneg %p114
      %p215 = pneg %p111
      %p216 = pneg %p140
      %p217 = pneg %p137
      %p218 = scmp.lt.s32.totalorder %s15, 1
      %s219 = scalar_select %p218, %s15, 1
      %s220 = smul.addr %s219, 8
      %s221 = scalar_lea.vmem %s4, %s220
      %p222 = scmp.lt.s32.totalorder %s15, 1
      %s223 = scalar_select %p222, %s15, 1
      %s224 = smul.addr %s223, 8
      %s225 = scalar_lea.vmem %s0, %s224
      %p226 = scmp.lt.s32.totalorder %s15, 1
      %s227 = scalar_select %p226, %s15, 1
      %s228 = smul.addr %s227, 8
      %s229 = scalar_lea.vmem %s1, %s228
      %p230 = scmp.lt.s32.totalorder %s15, 1
      %s231 = scalar_select %p230, %s15, 1
      %s232 = smul.addr %s231, 8
      %s233 = scalar_lea.vmem %s2, %s232
      %p234 = scmp.lt.s32.totalorder %s15, 1
      %s235 = scalar_select %p234, %s15, 1
      %s236 = scalar_lea.vmem %s3, %s235
      %p237 = scmp.lt.s32.totalorder %s15, 1
      %s238 = scalar_select %p237, %s15, 1
      %s239 = smul.addr %s238, 8
      %s240 = scalar_lea.vmem %s4, %s239
      %v241 = vld [vmem:[%s225] sm:$0xff]
      %v242 = vld [vmem:[%s229] sm:$0xff]
      %v243 = vld [vmem:[%s233] sm:$0xff]
      %v244 = vld [vmem:[%s236] sm:$0x1]
      %vm245 = vcmp.ne.f32.partialorder %v244, 0.0
      %v246 = vsel %vm245, 1, 0
      %v247 = vlaneseq
      %v248 = vshrl.u32 %v247, 7
      %v249 = vsub.s32 0, %v248
      %v250 = vrot.slane %v246, %v249
      %vm251 = vcmp.eq.s32.totalorder %v250, 1
      %v252 = vmul.f32 %v241, 0.35355338
      %vm253 = vcmask 64512
      %v255 = vsel %vm253, %v252, 0
      %v258 = vsel %vm253, %v242, 0
      %260 = vmatprep.subr.mxu0 0.0
      %261 = vmatpush1.xpose.msra.mxu0 %v258
      %262 = vmatprep.subr.mxu0 0.0
      %263 = vmatpush1.xpose.msra.mxu0 0.0
      %264 = vmatprep.subr.mxu0 0.0
      %265 = vmatpush1.xpose.msra.mxu0 0.0
      %266 = vmatprep.subr.mxu0 0.0
      %267 = vmatpush1.xpose.msra.mxu0 0.0
      %268 = vmatprep.subr.mxu0 0.0
      %269 = vmatpush1.xpose.msra.mxu0 0.0
      %270 = vmatprep.subr.mxu0 0.0
      %271 = vmatpush1.xpose.msra.mxu0 0.0
      %272 = vmatprep.subr.mxu0 0.0
      %273 = vmatpush1.xpose.msra.mxu0 0.0
      %274 = vmatprep.subr.mxu0 0.0
      %275 = vmatpush1.xpose.msra.mxu0 0.0
      %276 = vmatprep.subr.mxu0 0.0
      %277 = vmatpush1.xpose.msra.mxu0 0.0
      %278 = vmatprep.subr.mxu0 0.0
      %279 = vmatpush1.xpose.msra.mxu0 0.0
      %280 = vmatprep.subr.mxu0 0.0
      %281 = vmatpush1.xpose.msra.mxu0 0.0
      %282 = vmatprep.subr.mxu0 0.0
      %283 = vmatpush1.xpose.msra.mxu0 0.0
      %284 = vmatprep.subr.mxu0 0.0
      %285 = vmatpush1.xpose.msra.mxu0 0.0
      %286 = vmatprep.subr.mxu0 0.0
      %287 = vmatpush1.xpose.msra.mxu0 0.0
      %288 = vmatprep.subr.mxu0 0.0
      %289 = vmatpush1.xpose.msra.mxu0 0.0
      %290 = vmatprep.subr.mxu0 0.0
      %291 = vmatpush1.xpose.msra.mxu0 0.0
      %292 = vmatprep.subr.mxu0 0.0
      %293 = vmatpush1.xpose.msra.mxu0 0.0
      %294 = vmatprep.subr.mxu0 0.0
      %295 = vmatpush1.xpose.msra.mxu0 0.0
      %296 = vmatprep.subr.mxu0 0.0
      %297 = vmatpush1.xpose.msra.mxu0 0.0
      %298 = vmatprep.subr.mxu0 0.0
      %299 = vmatpush1.xpose.msra.mxu0 0.0
      %300 = vmatprep.subr.mxu0 0.0
      %301 = vmatpush1.xpose.msra.mxu0 0.0
      %302 = vmatprep.subr.mxu0 0.0
      %303 = vmatpush1.xpose.msra.mxu0 0.0
      %304 = vmatprep.subr.mxu0 0.0
      %305 = vmatpush1.xpose.msra.mxu0 0.0
      %306 = vmatprep.subr.mxu0 0.0
      %307 = vmatpush1.xpose.msra.mxu0 0.0
      %308 = vmatprep.subr.mxu0 0.0
      %309 = vmatpush1.xpose.msra.mxu0 0.0
      %310 = vmatprep.subr.mxu0 0.0
      %311 = vmatpush1.xpose.msra.mxu0 0.0
      %312 = vmatprep.subr.mxu0 0.0
      %313 = vmatpush1.xpose.msra.mxu0 0.0
      %314 = vmatprep.subr.mxu0 0.0
      %315 = vmatpush1.xpose.msra.mxu0 0.0
      %316 = vmatprep.subr.mxu0 0.0
      %317 = vmatpush1.xpose.msra.mxu0 0.0
      %318 = vmatprep.subr.mxu0 0.0
      %319 = vmatpush1.xpose.msra.mxu0 0.0
      %320 = vmatprep.subr.mxu0 0.0
      %321 = vmatpush1.xpose.msra.mxu0 0.0
      %322 = vmatprep.subr.mxu0 0.0
      %323 = vmatpush1.xpose.msra.mxu0 0.0
      %324 = vmatprep.mubr.f32.mxu0 0.0
      %325 = vmatmul.mubr.f32.gmra.mrb[0].mxu0 %v255
      %v326 = vpop.f32.mrb[0].mxu0
      %v327 = vadd.f32 0.0, %v326
      %v328 = vpop.f32.mrb[0].mxu0
      %329 = vdwg.mxu0
      %v330 = vsel %vm251, %v327, -1e+09
      %v331 = vsel %vm253, %v330, -inf
      %332 = vmax.xlane.f32.xlu0 %v331
      %v333 = vpop.xlane.xlu0 %332
      %v334 = vsub.f32 %v330, %v333
      %v335 = vmul.f32 %v334, 1.442695
      %v336 = vpow.pop %v335
      %v337 = vsel %vm253, %v336, 0.0
      %338 = vadd.xlane.f32.xlu0 %v337
      %v339 = vpop.xlane.xlu0 %338
      %v340 = vrcp.pop %v339
      %v341 = vmul.f32 %v336, %v340
      %v343 = vsel %vm253, %v341, 0
      %345 = vmatprep.subr.mxu0 0.0
      %346 = vmatpush1.msra.mxu0 %v243
      %347 = vmatprep.subr.mxu0 0.0
      %348 = vmatpush1.msra.mxu0 0.0
      %349 = vmatprep.subr.mxu0 0.0
      %350 = vmatpush1.msra.mxu0 0.0
      %351 = vmatprep.subr.mxu0 0.0
      %352 = vmatpush1.msra.mxu0 0.0
      %353 = vmatprep.subr.mxu0 0.0
      %354 = vmatpush1.msra.mxu0 0.0
      %355 = vmatprep.subr.mxu0 0.0
      %356 = vmatpush1.msra.mxu0 0.0
      %357 = vmatprep.subr.mxu0 0.0
      %358 = vmatpush1.msra.mxu0 0.0
      %359 = vmatprep.subr.mxu0 0.0
      %360 = vmatpush1.msra.mxu0 0.0
      %361 = vmatprep.subr.mxu0 0.0
      %362 = vmatpush1.msra.mxu0 0.0
      %363 = vmatprep.subr.mxu0 0.0
      %364 = vmatpush1.msra.mxu0 0.0
      %365 = vmatprep.subr.mxu0 0.0
      %366 = vmatpush1.msra.mxu0 0.0
      %367 = vmatprep.subr.mxu0 0.0
      %368 = vmatpush1.msra.mxu0 0.0
      %369 = vmatprep.subr.mxu0 0.0
      %370 = vmatpush1.msra.mxu0 0.0
      %371 = vmatprep.subr.mxu0 0.0
      %372 = vmatpush1.msra.mxu0 0.0
      %373 = vmatprep.subr.mxu0 0.0
      %374 = vmatpush1.msra.mxu0 0.0
      %375 = vmatprep.subr.mxu0 0.0
      %376 = vmatpush1.msra.mxu0 0.0
      %377 = vmatprep.subr.mxu0 0.0
      %378 = vmatpush1.msra.mxu0 0.0
      %379 = vmatprep.subr.mxu0 0.0
      %380 = vmatpush1.msra.mxu0 0.0
      %381 = vmatprep.subr.mxu0 0.0
      %382 = vmatpush1.msra.mxu0 0.0
      %383 = vmatprep.subr.mxu0 0.0
      %384 = vmatpush1.msra.mxu0 0.0
      %385 = vmatprep.subr.mxu0 0.0
      %386 = vmatpush1.msra.mxu0 0.0
      %387 = vmatprep.subr.mxu0 0.0
      %388 = vmatpush1.msra.mxu0 0.0
      %389 = vmatprep.subr.mxu0 0.0
      %390 = vmatpush1.msra.mxu0 0.0
      %391 = vmatprep.subr.mxu0 0.0
      %392 = vmatpush1.msra.mxu0 0.0
      %393 = vmatprep.subr.mxu0 0.0
      %394 = vmatpush1.msra.mxu0 0.0
      %395 = vmatprep.subr.mxu0 0.0
      %396 = vmatpush1.msra.mxu0 0.0
      %397 = vmatprep.subr.mxu0 0.0
      %398 = vmatpush1.msra.mxu0 0.0
      %399 = vmatprep.subr.mxu0 0.0
      %400 = vmatpush1.msra.mxu0 0.0
      %401 = vmatprep.subr.mxu0 0.0
      %402 = vmatpush1.msra.mxu0 0.0
      %403 = vmatprep.subr.mxu0 0.0
      %404 = vmatpush1.msra.mxu0 0.0
      %405 = vmatprep.subr.mxu0 0.0
      %406 = vmatpush1.msra.mxu0 0.0
      %407 = vmatprep.subr.mxu0 0.0
      %408 = vmatpush1.msra.mxu0 0.0
      %409 = vmatprep.mubr.f32.mxu0 0.0
      %410 = vmatmul.mubr.f32.gmra.mrb[0].mxu0 %v343
      %v411 = vpop.f32.mrb[0].mxu0
      %v412 = vadd.f32 0.0, %v411
      %v413 = vpop.f32.mrb[0].mxu0
      %414 = vdwg.mxu0
      %415 = vst.msk [vmem:[%s240] sm:$0xff] %vm253, %v412
      %416 = vrot.lane.b32.xlu0 %v252, 120
      %v417 = vpop.permute.xlu0 %416
      %418 = vrot.lane.b32.xlu0 %v242, 120
      %v419 = vpop.permute.xlu0 %418
      %v420 = vsel %vm253, %v417, 0
      %v422 = vsel %vm253, %v419, 0
      %424 = vmatprep.subr.mxu0 0.0
      %425 = vmatpush1.xpose.msra.mxu0 %v422
      %426 = vmatprep.subr.mxu0 0.0
      %427 = vmatpush1.xpose.msra.mxu0 0.0
      %428 = vmatprep.subr.mxu0 0.0
      %429 = vmatpush1.xpose.msra.mxu0 0.0
      %430 = vmatprep.subr.mxu0 0.0
      %431 = vmatpush1.xpose.msra.mxu0 0.0
      %432 = vmatprep.subr.mxu0 0.0
      %433 = vmatpush1.xpose.msra.mxu0 0.0
      %434 = vmatprep.subr.mxu0 0.0
      %435 = vmatpush1.xpose.msra.mxu0 0.0
      %436 = vmatprep.subr.mxu0 0.0
      %437 = vmatpush1.xpose.msra.mxu0 0.0
      %438 = vmatprep.subr.mxu0 0.0
      %439 = vmatpush1.xpose.msra.mxu0 0.0
      %440 = vmatprep.subr.mxu0 0.0
      %441 = vmatpush1.xpose.msra.mxu0 0.0
      %442 = vmatprep.subr.mxu0 0.0
      %443 = vmatpush1.xpose.msra.mxu0 0.0
      %444 = vmatprep.subr.mxu0 0.0
      %445 = vmatpush1.xpose.msra.mxu0 0.0
      %446 = vmatprep.subr.mxu0 0.0
      %447 = vmatpush1.xpose.msra.mxu0 0.0
      %448 = vmatprep.subr.mxu0 0.0
      %449 = vmatpush1.xpose.msra.mxu0 0.0
      %450 = vmatprep.subr.mxu0 0.0
      %451 = vmatpush1.xpose.msra.mxu0 0.0
      %452 = vmatprep.subr.mxu0 0.0
      %453 = vmatpush1.xpose.msra.mxu0 0.0
      %454 = vmatprep.subr.mxu0 0.0
      %455 = vmatpush1.xpose.msra.mxu0 0.0
      %456 = vmatprep.subr.mxu0 0.0
      %457 = vmatpush1.xpose.msra.mxu0 0.0
      %458 = vmatprep.subr.mxu0 0.0
      %459 = vmatpush1.xpose.msra.mxu0 0.0
      %460 = vmatprep.subr.mxu0 0.0
      %461 = vmatpush1.xpose.msra.mxu0 0.0
      %462 = vmatprep.subr.mxu0 0.0
      %463 = vmatpush1.xpose.msra.mxu0 0.0
      %464 = vmatprep.subr.mxu0 0.0
      %465 = vmatpush1.xpose.msra.mxu0 0.0
      %466 = vmatprep.subr.mxu0 0.0
      %467 = vmatpush1.xpose.msra.mxu0 0.0
      %468 = vmatprep.subr.mxu0 0.0
      %469 = vmatpush1.xpose.msra.mxu0 0.0
      %470 = vmatprep.subr.mxu0 0.0
      %471 = vmatpush1.xpose.msra.mxu0 0.0
      %472 = vmatprep.subr.mxu0 0.0
      %473 = vmatpush1.xpose.msra.mxu0 0.0
      %474 = vmatprep.subr.mxu0 0.0
      %475 = vmatpush1.xpose.msra.mxu0 0.0
      %476 = vmatprep.subr.mxu0 0.0
      %477 = vmatpush1.xpose.msra.mxu0 0.0
      %478 = vmatprep.subr.mxu0 0.0
      %479 = vmatpush1.xpose.msra.mxu0 0.0
      %480 = vmatprep.subr.mxu0 0.0
      %481 = vmatpush1.xpose.msra.mxu0 0.0
      %482 = vmatprep.subr.mxu0 0.0
      %483 = vmatpush1.xpose.msra.mxu0 0.0
      %484 = vmatprep.subr.mxu0 0.0
      %485 = vmatpush1.xpose.msra.mxu0 0.0
      %486 = vmatprep.subr.mxu0 0.0
      %487 = vmatpush1.xpose.msra.mxu0 0.0
      %488 = vmatprep.mubr.f32.mxu0 0.0
      %489 = vmatmul.mubr.f32.gmra.mrb[0].mxu0 %v420
      %v490 = vpop.f32.mrb[0].mxu0
      %v491 = vadd.f32 0.0, %v490
      %v492 = vpop.f32.mrb[0].mxu0
      %493 = vdwg.mxu0
      %v494 = vsel %vm251, %v491, -1e+09
      %v495 = vsel %vm253, %v494, -inf
      %496 = vmax.xlane.f32.xlu0 %v495
      %v497 = vpop.xlane.xlu0 %496
      %v498 = vsub.f32 %v494, %v497
      %v499 = vmul.f32 %v498, 1.442695
      %v500 = vpow.pop %v499
      %v501 = vsel %vm253, %v500, 0.0
      %502 = vadd.xlane.f32.xlu0 %v501
      %v503 = vpop.xlane.xlu0 %502
      %v504 = vrcp.pop %v503
      %v505 = vmul.f32 %v500, %v504
      %507 = vrot.lane.b32.xlu0 %v243, 120
      %v508 = vpop.permute.xlu0 %507
      %v511 = vsel %vm253, %v505, 0
      %513 = vmatprep.subr.mxu0 0.0
      %514 = vmatpush1.msra.mxu0 %v508
      %515 = vmatprep.subr.mxu0 0.0
      %516 = vmatpush1.msra.mxu0 0.0
      %517 = vmatprep.subr.mxu0 0.0
      %518 = vmatpush1.msra.mxu0 0.0
      %519 = vmatprep.subr.mxu0 0.0
      %520 = vmatpush1.msra.mxu0 0.0
      %521 = vmatprep.subr.mxu0 0.0
      %522 = vmatpush1.msra.mxu0 0.0
      %523 = vmatprep.subr.mxu0 0.0
      %524 = vmatpush1.msra.mxu0 0.0
      %525 = vmatprep.subr.mxu0 0.0
      %526 = vmatpush1.msra.mxu0 0.0
      %527 = vmatprep.subr.mxu0 0.0
      %528 = vmatpush1.msra.mxu0 0.0
      %529 = vmatprep.subr.mxu0 0.0
      %530 = vmatpush1.msra.mxu0 0.0
      %531 = vmatprep.subr.mxu0 0.0
      %532 = vmatpush1.msra.mxu0 0.0
      %533 = vmatprep.subr.mxu0 0.0
      %534 = vmatpush1.msra.mxu0 0.0
      %535 = vmatprep.subr.mxu0 0.0
      %536 = vmatpush1.msra.mxu0 0.0
      %537 = vmatprep.subr.mxu0 0.0
      %538 = vmatpush1.msra.mxu0 0.0
      %539 = vmatprep.subr.mxu0 0.0
      %540 = vmatpush1.msra.mxu0 0.0
      %541 = vmatprep.subr.mxu0 0.0
      %542 = vmatpush1.msra.mxu0 0.0
      %543 = vmatprep.subr.mxu0 0.0
      %544 = vmatpush1.msra.mxu0 0.0
      %545 = vmatprep.subr.mxu0 0.0
      %546 = vmatpush1.msra.mxu0 0.0
      %547 = vmatprep.subr.mxu0 0.0
      %548 = vmatpush1.msra.mxu0 0.0
      %549 = vmatprep.subr.mxu0 0.0
      %550 = vmatpush1.msra.mxu0 0.0
      %551 = vmatprep.subr.mxu0 0.0
      %552 = vmatpush1.msra.mxu0 0.0
      %553 = vmatprep.subr.mxu0 0.0
      %554 = vmatpush1.msra.mxu0 0.0
      %555 = vmatprep.subr.mxu0 0.0
      %556 = vmatpush1.msra.mxu0 0.0
      %557 = vmatprep.subr.mxu0 0.0
      %558 = vmatpush1.msra.mxu0 0.0
      %559 = vmatprep.subr.mxu0 0.0
      %560 = vmatpush1.msra.mxu0 0.0
      %561 = vmatprep.subr.mxu0 0.0
      %562 = vmatpush1.msra.mxu0 0.0
      %563 = vmatprep.subr.mxu0 0.0
      %564 = vmatpush1.msra.mxu0 0.0
      %565 = vmatprep.subr.mxu0 0.0
      %566 = vmatpush1.msra.mxu0 0.0
      %567 = vmatprep.subr.mxu0 0.0
      %568 = vmatpush1.msra.mxu0 0.0
      %569 = vmatprep.subr.mxu0 0.0
      %570 = vmatpush1.msra.mxu0 0.0
      %571 = vmatprep.subr.mxu0 0.0
      %572 = vmatpush1.msra.mxu0 0.0
      %573 = vmatprep.subr.mxu0 0.0
      %574 = vmatpush1.msra.mxu0 0.0
      %575 = vmatprep.subr.mxu0 0.0
      %576 = vmatpush1.msra.mxu0 0.0
      %577 = vmatprep.mubr.f32.mxu0 0.0
      %578 = vmatmul.mubr.f32.gmra.mrb[0].mxu0 %v511
      %v579 = vpop.f32.mrb[0].mxu0
      %v580 = vadd.f32 0.0, %v579
      %v581 = vpop.f32.mrb[0].mxu0
      %582 = vdwg.mxu0
      %584 = vrot.lane.b32.xlu0 %v580, 8
      %v585 = vpop.permute.xlu0 %584
      %vm587 = vcmask 130112
      %588 = vst.msk [vmem:[%s240] sm:$0xff] %vm587, %v585
      %589 = vrot.lane.b32.xlu0 %v252, 112
      %v590 = vpop.permute.xlu0 %589
      %591 = vrot.lane.b32.xlu0 %v242, 112
      %v592 = vpop.permute.xlu0 %591
      %v593 = vsel %vm253, %v590, 0
      %v595 = vsel %vm253, %v592, 0
      %597 = vmatprep.subr.mxu0 0.0
      %598 = vmatpush1.xpose.msra.mxu0 %v595
      %599 = vmatprep.subr.mxu0 0.0
      %600 = vmatpush1.xpose.msra.mxu0 0.0
      %601 = vmatprep.subr.mxu0 0.0
      %602 = vmatpush1.xpose.msra.mxu0 0.0
      %603 = vmatprep.subr.mxu0 0.0
      %604 = vmatpush1.xpose.msra.mxu0 0.0
      %605 = vmatprep.subr.mxu0 0.0
      %606 = vmatpush1.xpose.msra.mxu0 0.0
      %607 = vmatprep.subr.mxu0 0.0
      %608 = vmatpush1.xpose.msra.mxu0 0.0
      %609 = vmatprep.subr.mxu0 0.0
      %610 = vmatpush1.xpose.msra.mxu0 0.0
      %611 = vmatprep.subr.mxu0 0.0
      %612 = vmatpush1.xpose.msra.mxu0 0.0
      %613 = vmatprep.subr.mxu0 0.0
      %614 = vmatpush1.xpose.msra.mxu0 0.0
      %615 = vmatprep.subr.mxu0 0.0
      %616 = vmatpush1.xpose.msra.mxu0 0.0
      %617 = vmatprep.subr.mxu0 0.0
      %618 = vmatpush1.xpose.msra.mxu0 0.0
      %619 = vmatprep.subr.mxu0 0.0
      %620 = vmatpush1.xpose.msra.mxu0 0.0
      %621 = vmatprep.subr.mxu0 0.0
      %622 = vmatpush1.xpose.msra.mxu0 0.0
      %623 = vmatprep.subr.mxu0 0.0
      %624 = vmatpush1.xpose.msra.mxu0 0.0
      %625 = vmatprep.subr.mxu0 0.0
      %626 = vmatpush1.xpose.msra.mxu0 0.0
      %627 = vmatprep.subr.mxu0 0.0
      %628 = vmatpush1.xpose.msra.mxu0 0.0
      %629 = vmatprep.subr.mxu0 0.0
      %630 = vmatpush1.xpose.msra.mxu0 0.0
      %631 = vmatprep.subr.mxu0 0.0
      %632 = vmatpush1.xpose.msra.mxu0 0.0
      %633 = vmatprep.subr.mxu0 0.0
      %634 = vmatpush1.xpose.msra.mxu0 0.0
      %635 = vmatprep.subr.mxu0 0.0
      %636 = vmatpush1.xpose.msra.mxu0 0.0
      %637 = vmatprep.subr.mxu0 0.0
      %638 = vmatpush1.xpose.msra.mxu0 0.0
      %639 = vmatprep.subr.mxu0 0.0
      %640 = vmatpush1.xpose.msra.mxu0 0.0
      %641 = vmatprep.subr.mxu0 0.0
      %642 = vmatpush1.xpose.msra.mxu0 0.0
      %643 = vmatprep.subr.mxu0 0.0
      %644 = vmatpush1.xpose.msra.mxu0 0.0
      %645 = vmatprep.subr.mxu0 0.0
      %646 = vmatpush1.xpose.msra.mxu0 0.0
      %647 = vmatprep.subr.mxu0 0.0
      %648 = vmatpush1.xpose.msra.mxu0 0.0
      %649 = vmatprep.subr.mxu0 0.0
      %650 = vmatpush1.xpose.msra.mxu0 0.0
      %651 = vmatprep.subr.mxu0 0.0
      %652 = vmatpush1.xpose.msra.mxu0 0.0
      %653 = vmatprep.subr.mxu0 0.0
      %654 = vmatpush1.xpose.msra.mxu0 0.0
      %655 = vmatprep.subr.mxu0 0.0
      %656 = vmatpush1.xpose.msra.mxu0 0.0
      %657 = vmatprep.subr.mxu0 0.0
      %658 = vmatpush1.xpose.msra.mxu0 0.0
      %659 = vmatprep.subr.mxu0 0.0
      %660 = vmatpush1.xpose.msra.mxu0 0.0
      %661 = vmatprep.mubr.f32.mxu0 0.0
      %662 = vmatmul.mubr.f32.gmra.mrb[0].mxu0 %v593
      %v663 = vpop.f32.mrb[0].mxu0
      %v664 = vadd.f32 0.0, %v663
      %v665 = vpop.f32.mrb[0].mxu0
      %666 = vdwg.mxu0
      %v667 = vsel %vm251, %v664, -1e+09
      %v668 = vsel %vm253, %v667, -inf
      %669 = vmax.xlane.f32.xlu0 %v668
      %v670 = vpop.xlane.xlu0 %669
      %v671 = vsub.f32 %v667, %v670
      %v672 = vmul.f32 %v671, 1.442695
      %v673 = vpow.pop %v672
      %v674 = vsel %vm253, %v673, 0.0
      %675 = vadd.xlane.f32.xlu0 %v674
      %v676 = vpop.xlane.xlu0 %675
      %v677 = vrcp.pop %v676
      %v678 = vmul.f32 %v673, %v677
      %679 = vrot.lane.b32.xlu0 %v243, 112
      %v680 = vpop.permute.xlu0 %679
      %v683 = vsel %vm253, %v678, 0
      %685 = vmatprep.subr.mxu0 0.0
      %686 = vmatpush1.msra.mxu0 %v680
      %687 = vmatprep.subr.mxu0 0.0
      %688 = vmatpush1.msra.mxu0 0.0
      %689 = vmatprep.subr.mxu0 0.0
      %690 = vmatpush1.msra.mxu0 0.0
      %691 = vmatprep.subr.mxu0 0.0
      %692 = vmatpush1.msra.mxu0 0.0
      %693 = vmatprep.subr.mxu0 0.0
      %694 = vmatpush1.msra.mxu0 0.0
      %695 = vmatprep.subr.mxu0 0.0
      %696 = vmatpush1.msra.mxu0 0.0
      %697 = vmatprep.subr.mxu0 0.0
      %698 = vmatpush1.msra.mxu0 0.0
      %699 = vmatprep.subr.mxu0 0.0
      %700 = vmatpush1.msra.mxu0 0.0
      %701 = vmatprep.subr.mxu0 0.0
      %702 = vmatpush1.msra.mxu0 0.0
      %703 = vmatprep.subr.mxu0 0.0
      %704 = vmatpush1.msra.mxu0 0.0
      %705 = vmatprep.subr.mxu0 0.0
      %706 = vmatpush1.msra.mxu0 0.0
      %707 = vmatprep.subr.mxu0 0.0
      %708 = vmatpush1.msra.mxu0 0.0
      %709 = vmatprep.subr.mxu0 0.0
      %710 = vmatpush1.msra.mxu0 0.0
      %711 = vmatprep.subr.mxu0 0.0
      %712 = vmatpush1.msra.mxu0 0.0
      %713 = vmatprep.subr.mxu0 0.0
      %714 = vmatpush1.msra.mxu0 0.0
      %715 = vmatprep.subr.mxu0 0.0
      %716 = vmatpush1.msra.mxu0 0.0
      %717 = vmatprep.subr.mxu0 0.0
      %718 = vmatpush1.msra.mxu0 0.0
      %719 = vmatprep.subr.mxu0 0.0
      %720 = vmatpush1.msra.mxu0 0.0
      %721 = vmatprep.subr.mxu0 0.0
      %722 = vmatpush1.msra.mxu0 0.0
      %723 = vmatprep.subr.mxu0 0.0
      %724 = vmatpush1.msra.mxu0 0.0
      %725 = vmatprep.subr.mxu0 0.0
      %726 = vmatpush1.msra.mxu0 0.0
      %727 = vmatprep.subr.mxu0 0.0
      %728 = vmatpush1.msra.mxu0 0.0
      %729 = vmatprep.subr.mxu0 0.0
      %730 = vmatpush1.msra.mxu0 0.0
      %731 = vmatprep.subr.mxu0 0.0
      %732 = vmatpush1.msra.mxu0 0.0
      %733 = vmatprep.subr.mxu0 0.0
      %734 = vmatpush1.msra.mxu0 0.0
      %735 = vmatprep.subr.mxu0 0.0
      %736 = vmatpush1.msra.mxu0 0.0
      %737 = vmatprep.subr.mxu0 0.0
      %738 = vmatpush1.msra.mxu0 0.0
      %739 = vmatprep.subr.mxu0 0.0
      %740 = vmatpush1.msra.mxu0 0.0
      %741 = vmatprep.subr.mxu0 0.0
      %742 = vmatpush1.msra.mxu0 0.0
      %743 = vmatprep.subr.mxu0 0.0
      %744 = vmatpush1.msra.mxu0 0.0
      %745 = vmatprep.subr.mxu0 0.0
      %746 = vmatpush1.msra.mxu0 0.0
      %747 = vmatprep.subr.mxu0 0.0
      %748 = vmatpush1.msra.mxu0 0.0
      %749 = vmatprep.mubr.f32.mxu0 0.0
      %750 = vmatmul.mubr.f32.gmra.mrb[0].mxu0 %v683
      %v751 = vpop.f32.mrb[0].mxu0
      %v752 = vadd.f32 0.0, %v751
      %v753 = vpop.f32.mrb[0].mxu0
      %754 = vdwg.mxu0
      %756 = vrot.lane.b32.xlu0 %v752, 16
      %v757 = vpop.permute.xlu0 %756
      %vm759 = vcmask 195712
      %760 = vst.msk [vmem:[%s240] sm:$0xff] %vm759, %v757
      %761 = vrot.lane.b32.xlu0 %v252, 104
      %v762 = vpop.permute.xlu0 %761
      %763 = vrot.lane.b32.xlu0 %v242, 104
      %v764 = vpop.permute.xlu0 %763
      %v765 = vsel %vm253, %v762, 0
      %v767 = vsel %vm253, %v764, 0
      %769 = vmatprep.subr.mxu0 0.0
      %770 = vmatpush1.xpose.msra.mxu0 %v767
      %771 = vmatprep.subr.mxu0 0.0
      %772 = vmatpush1.xpose.msra.mxu0 0.0
      %773 = vmatprep.subr.mxu0 0.0
      %774 = vmatpush1.xpose.msra.mxu0 0.0
      %775 = vmatprep.subr.mxu0 0.0
      %776 = vmatpush1.xpose.msra.mxu0 0.0
      %777 = vmatprep.subr.mxu0 0.0
      %778 = vmatpush1.xpose.msra.mxu0 0.0
      %779 = vmatprep.subr.mxu0 0.0
      %780 = vmatpush1.xpose.msra.mxu0 0.0
      %781 = vmatprep.subr.mxu0 0.0
      %782 = vmatpush1.xpose.msra.mxu0 0.0
      %783 = vmatprep.subr.mxu0 0.0
      %784 = vmatpush1.xpose.msra.mxu0 0.0
      %785 = vmatprep.subr.mxu0 0.0
      %786 = vmatpush1.xpose.msra.mxu0 0.0
      %787 = vmatprep.subr.mxu0 0.0
      %788 = vmatpush1.xpose.msra.mxu0 0.0
      %789 = vmatprep.subr.mxu0 0.0
      %790 = vmatpush1.xpose.msra.mxu0 0.0
      %791 = vmatprep.subr.mxu0 0.0
      %792 = vmatpush1.xpose.msra.mxu0 0.0
      %793 = vmatprep.subr.mxu0 0.0
      %794 = vmatpush1.xpose.msra.mxu0 0.0
      %795 = vmatprep.subr.mxu0 0.0
      %796 = vmatpush1.xpose.msra.mxu0 0.0
      %797 = vmatprep.subr.mxu0 0.0
      %798 = vmatpush1.xpose.msra.mxu0 0.0
      %799 = vmatprep.subr.mxu0 0.0
      %800 = vmatpush1.xpose.msra.mxu0 0.0
      %801 = vmatprep.subr.mxu0 0.0
      %802 = vmatpush1.xpose.msra.mxu0 0.0
      %803 = vmatprep.subr.mxu0 0.0
      %804 = vmatpush1.xpose.msra.mxu0 0.0
      %805 = vmatprep.subr.mxu0 0.0
      %806 = vmatpush1.xpose.msra.mxu0 0.0
      %807 = vmatprep.subr.mxu0 0.0
      %808 = vmatpush1.xpose.msra.mxu0 0.0
      %809 = vmatprep.subr.mxu0 0.0
      %810 = vmatpush1.xpose.msra.mxu0 0.0
      %811 = vmatprep.subr.mxu0 0.0
      %812 = vmatpush1.xpose.msra.mxu0 0.0
      %813 = vmatprep.subr.mxu0 0.0
      %814 = vmatpush1.xpose.msra.mxu0 0.0
      %815 = vmatprep.subr.mxu0 0.0
      %816 = vmatpush1.xpose.msra.mxu0 0.0
      %817 = vmatprep.subr.mxu0 0.0
      %818 = vmatpush1.xpose.msra.mxu0 0.0
      %819 = vmatprep.subr.mxu0 0.0
      %820 = vmatpush1.xpose.msra.mxu0 0.0
      %821 = vmatprep.subr.mxu0 0.0
      %822 = vmatpush1.xpose.msra.mxu0 0.0
      %823 = vmatprep.subr.mxu0 0.0
      %824 = vmatpush1.xpose.msra.mxu0 0.0
      %825 = vmatprep.subr.mxu0 0.0
      %826 = vmatpush1.xpose.msra.mxu0 0.0
      %827 = vmatprep.subr.mxu0 0.0
      %828 = vmatpush1.xpose.msra.mxu0 0.0
      %829 = vmatprep.subr.mxu0 0.0
      %830 = vmatpush1.xpose.msra.mxu0 0.0
      %831 = vmatprep.subr.mxu0 0.0
      %832 = vmatpush1.xpose.msra.mxu0 0.0
      %833 = vmatprep.mubr.f32.mxu0 0.0
      %834 = vmatmul.mubr.f32.gmra.mrb[0].mxu0 %v765
      %v835 = vpop.f32.mrb[0].mxu0
      %v836 = vadd.f32 0.0, %v835
      %v837 = vpop.f32.mrb[0].mxu0
      %838 = vdwg.mxu0
      %v839 = vsel %vm251, %v836, -1e+09
      %v840 = vsel %vm253, %v839, -inf
      %841 = vmax.xlane.f32.xlu0 %v840
      %v842 = vpop.xlane.xlu0 %841
      %v843 = vsub.f32 %v839, %v842
      %v844 = vmul.f32 %v843, 1.442695
      %v845 = vpow.pop %v844
      %v846 = vsel %vm253, %v845, 0.0
      %847 = vadd.xlane.f32.xlu0 %v846
      %v848 = vpop.xlane.xlu0 %847
      %v849 = vrcp.pop %v848
      %v850 = vmul.f32 %v845, %v849
      %851 = vrot.lane.b32.xlu0 %v243, 104
      %v852 = vpop.permute.xlu0 %851
      %v855 = vsel %vm253, %v850, 0
      %857 = vmatprep.subr.mxu0 0.0
      %858 = vmatpush1.msra.mxu0 %v852
      %859 = vmatprep.subr.mxu0 0.0
      %860 = vmatpush1.msra.mxu0 0.0
      %861 = vmatprep.subr.mxu0 0.0
      %862 = vmatpush1.msra.mxu0 0.0
      %863 = vmatprep.subr.mxu0 0.0
      %864 = vmatpush1.msra.mxu0 0.0
      %865 = vmatprep.subr.mxu0 0.0
      %866 = vmatpush1.msra.mxu0 0.0
      %867 = vmatprep.subr.mxu0 0.0
      %868 = vmatpush1.msra.mxu0 0.0
      %869 = vmatprep.subr.mxu0 0.0
      %870 = vmatpush1.msra.mxu0 0.0
      %871 = vmatprep.subr.mxu0 0.0
      %872 = vmatpush1.msra.mxu0 0.0
      %873 = vmatprep.subr.mxu0 0.0
      %874 = vmatpush1.msra.mxu0 0.0
      %875 = vmatprep.subr.mxu0 0.0
      %876 = vmatpush1.msra.mxu0 0.0
      %877 = vmatprep.subr.mxu0 0.0
      %878 = vmatpush1.msra.mxu0 0.0
      %879 = vmatprep.subr.mxu0 0.0
      %880 = vmatpush1.msra.mxu0 0.0
      %881 = vmatprep.subr.mxu0 0.0
      %882 = vmatpush1.msra.mxu0 0.0
      %883 = vmatprep.subr.mxu0 0.0
      %884 = vmatpush1.msra.mxu0 0.0
      %885 = vmatprep.subr.mxu0 0.0
      %886 = vmatpush1.msra.mxu0 0.0
      %887 = vmatprep.subr.mxu0 0.0
      %888 = vmatpush1.msra.mxu0 0.0
      %889 = vmatprep.subr.mxu0 0.0
      %890 = vmatpush1.msra.mxu0 0.0
      %891 = vmatprep.subr.mxu0 0.0
      %892 = vmatpush1.msra.mxu0 0.0
      %893 = vmatprep.subr.mxu0 0.0
      %894 = vmatpush1.msra.mxu0 0.0
      %895 = vmatprep.subr.mxu0 0.0
      %896 = vmatpush1.msra.mxu0 0.0
      %897 = vmatprep.subr.mxu0 0.0
      %898 = vmatpush1.msra.mxu0 0.0
      %899 = vmatprep.subr.mxu0 0.0
      %900 = vmatpush1.msra.mxu0 0.0
      %901 = vmatprep.subr.mxu0 0.0
      %902 = vmatpush1.msra.mxu0 0.0
      %903 = vmatprep.subr.mxu0 0.0
      %904 = vmatpush1.msra.mxu0 0.0
      %905 = vmatprep.subr.mxu0 0.0
      %906 = vmatpush1.msra.mxu0 0.0
      %907 = vmatprep.subr.mxu0 0.0
      %908 = vmatpush1.msra.mxu0 0.0
      %909 = vmatprep.subr.mxu0 0.0
      %910 = vmatpush1.msra.mxu0 0.0
      %911 = vmatprep.subr.mxu0 0.0
      %912 = vmatpush1.msra.mxu0 0.0
      %913 = vmatprep.subr.mxu0 0.0
      %914 = vmatpush1.msra.mxu0 0.0
      %915 = vmatprep.subr.mxu0 0.0
      %916 = vmatpush1.msra.mxu0 0.0
      %917 = vmatprep.subr.mxu0 0.0
      %918 = vmatpush1.msra.mxu0 0.0
      %919 = vmatprep.subr.mxu0 0.0
      %920 = vmatpush1.msra.mxu0 0.0
      %921 = vmatprep.mubr.f32.mxu0 0.0
      %922 = vmatmul.mubr.f32.gmra.mrb[0].mxu0 %v855
      %v923 = vpop.f32.mrb[0].mxu0
      %v924 = vadd.f32 0.0, %v923
      %v925 = vpop.f32.mrb[0].mxu0
      %926 = vdwg.mxu0
      %928 = vrot.lane.b32.xlu0 %v924, 24
      %v929 = vpop.permute.xlu0 %928
      %vm931 = vcmask 261312
      %932 = vst.msk [vmem:[%s240] sm:$0xff] %vm931, %v929
      %p933 = scmp.lt.s32.totalorder %s15, 1
      %s934 = scalar_select %p933, %s15, 1
      %s935 = smul.addr %s934, 8
      %s936 = scalar_lea.vmem %s4, %s935
      // Predicated region
      $region37: #{decoder_forward.22} parent=35 // pred_check
        %p937 = pneg %p137
      $region38: #{decoder_forward.22} parent=35 // pred_check_branch
        %939 = sbr.rel (%p937) target = $region40
      $region39: #{decoder_forward.22} parent=35 // pred_region
        _
      $region40: #{decoder_forward.22} parent=35 // pred_fallthru
        _
    $region36: #{decoder_forward.22} parent=5 // pred_fallthru
      _
    %p940 = scmp.le.s32.totalorder 2, %s10
    // Predicated region
    $region41: #{decoder_forward.22} parent=5 // pred_check
      %p941 = pneg %p940
    $region42: #{decoder_forward.22} parent=5 // pred_check_branch
      %943 = sbr.rel (%p941) target = $region44
    $region43: #{decoder_forward.22} parent=5 // pred_region
      %s944 = ssub.s32 %s10, 2
      // Predicated region
      $region45: #{decoder_forward.22} parent=43 // pred_check
        %p945 = pneg %p143
      $region46: #{decoder_forward.22} parent=43 // pred_check_branch
        %947 = sbr.rel (%p945) target = $region48
      $region47: #{decoder_forward.22} parent=43 // pred_region
        %p948 = scmp.lt.s32.totalorder %s16, 1
        %s949 = scalar_select %p948, %s16, 1
        %s950 = smul.addr %s949, 8
        %s951 = scalar_lea.vmem %s4, %s950
      $region48: #{decoder_forward.22} parent=43 // pred_fallthru
        _
    $region44: #{decoder_forward.22} parent=5 // pred_fallthru
      _
  $region6: #{decoder_forward.22} parent=0 // loop_footer
    %s14 = sadd.s32 1, %s10
  $region7: #{decoder_forward.22} parent=0 // loop_footer_branch
    %9 = sbr.rel target = $region3
  $region8: #{decoder_forward.22} parent=0 // loop_exit
    _

</llo_original>
